<compile_context>
chip_gen: v6e
topology: v6e:2x2x1
jax: 0.10.0
libtpu: 0.0.40
codegen_flags: <defaults>
</compile_context>

<pallas_src>
import jax
import jax.numpy as jnp
from jax import lax
from jax.experimental import pallas as pl
from jax.experimental.pallas import tpu as pltpu

MATMUL_DTYPE = jnp.float32   # bf16 on v6e/v7x production; operands only on v5e
_SUBLANE = 8
_LANE = 128


def _round_up(n, m):
    return ((n + m - 1) // m) * m


def _vmem_limit(need_bytes):
    # Size to actual buffers with headroom; never below the 32 MiB default,
    # never above the smallest physical VMEM across generations (64 MiB, v7x).
    return int(min(64 << 20, max(32 << 20, 2 * need_bytes)))


# ----------------------------------------------------------------------------
# Kernel 1: fused input projection  gx = X @ W_ih_fused + (b_ih + b_hh)
# ----------------------------------------------------------------------------

def gates_x_kernel(x_ref, w_ref, b_ref, out_ref):
    x = x_ref[...].astype(MATMUL_DTYPE)
    w = w_ref[...].astype(MATMUL_DTYPE)
    out_ref[...] = (
        jnp.dot(x, w, preferred_element_type=jnp.float32) + b_ref[...]
    ).astype(out_ref.dtype)


def gates_x(x_flat, w_ih_f, b_f, *, row_tile=256):
    """x_flat: (N, D) time-major rows. w_ih_f: (D, 4H). b_f: (1, 4H).
    Returns gx: (N, 4H), gate order (i, f, o, g)."""
    N, D = x_flat.shape
    G4 = w_ih_f.shape[-1]
    tile = row_tile if (N % row_tile == 0) else N     # row-parallel tiling
    grid = (N // tile,)
    need = 4 * (2 * tile * D + D * G4 + G4 + 2 * tile * G4)
    return pl.pallas_call(
        gates_x_kernel,
        out_shape=jax.ShapeDtypeStruct((N, G4), jnp.float32),
        grid=grid,
        in_specs=[
            pl.BlockSpec((tile, D), lambda r: (r, 0)),
            pl.BlockSpec((D, G4), lambda r: (0, 0)),
            pl.BlockSpec((1, G4), lambda r: (0, 0)),
        ],
        out_specs=pl.BlockSpec((tile, G4), lambda r: (r, 0)),
        compiler_params=pltpu.CompilerParams(
            dimension_semantics=("parallel",),
            vmem_limit_bytes=_vmem_limit(need)),
    )(x_flat, w_ih_f, b_f)


# ----------------------------------------------------------------------------
# Kernel 2: recurrence (T-chunked grid, in-kernel time loop, fused FC epilogue)
# ----------------------------------------------------------------------------

def make_lstm_recurrent_kernel(Tc, Bp, H, apply_fc):
    H3 = 3 * H

    def kernel(gx_ref, whh_ref, *rest):
        if apply_fc:
            wfc_ref, bfc_ref, out_ref, h_ref, c_ref, hs_ref = rest
        else:
            out_ref, h_ref, c_ref = rest

        # h/c live in VMEM scratch across T-chunks; zero them on the first chunk.
        @pl.when(pl.program_id(0) == 0)
        def _():
            h_ref[...] = jnp.zeros_like(h_ref)
            c_ref[...] = jnp.zeros_like(c_ref)

        w_hh = whh_ref[...].astype(MATMUL_DTYPE)          # (H, 4H), loop-invariant

        def step(t, carry):
            h, c = carry
            row = pl.multiple_of(t * Bp, Bp)               # sublane-aligned
            gx_t = gx_ref[pl.ds(row, Bp), :]               # (Bp, 4H), i|f|o|g
            gates = gx_t + jnp.dot(h.astype(MATMUL_DTYPE), w_hh,
                                   preferred_element_type=jnp.float32)
            s = jax.nn.sigmoid(gates[:, :H3])              # one launch: i|f|o
            g = jnp.tanh(gates[:, H3:])                    # one launch: g
            c_new = s[:, H:2 * H] * c + s[:, :H] * g
            h_new = s[:, 2 * H:H3] * jnp.tanh(c_new)
            if apply_fc:
                hs_ref[pl.ds(row, Bp), :] = h_new          # FC happens after loop
            else:
                out_ref[pl.ds(row, Bp), :] = h_new.astype(out_ref.dtype)
            return h_new, c_new

        unroll = True if Tc <= 32 else 8
        h_fin, c_fin = lax.fori_loop(0, Tc, step, (h_ref[...], c_ref[...]),
                                     unroll=unroll)
        h_ref[...] = h_fin
        c_ref[...] = c_fin

        if apply_fc:
            # One well-shaped (Tc*Bp, H) x (H, CP) matmul, off the serial path.
            hs = hs_ref[...].astype(MATMUL_DTYPE)
            wfc = wfc_ref[...].astype(MATMUL_DTYPE)
            out_ref[...] = (
                jnp.dot(hs, wfc, preferred_element_type=jnp.float32)
                + bfc_ref[...]
            ).astype(out_ref.dtype)

    return kernel


def _pick_t_chunk(T, Bp, H, G4, out_w, budget_bytes=8 << 20):
    # Bound chunk-scaled VMEM (double-buffered gx + out blocks, hs scratch).
    per_step = 4 * Bp * (2 * G4 + 2 * out_w + H)
    tc = int(min(max(1, budget_bytes // max(per_step, 1)), T))
    while T % tc:
        tc -= 1
    return tc


def lstm_recurrent(gx, w_hh_f, Bp, wfc_pad=None, bfc_pad=None):
    """gx: (T*Bp, 4H) time-major, gate order (i,f,o,g). w_hh_f: (H, 4H).
    If wfc_pad/bfc_pad are given ((H, CP)/(1, CP)): returns (T*Bp, CP);
    otherwise returns the hidden states (T*Bp, H)."""
    N, G4 = gx.shape
    H = w_hh_f.shape[0]
    T = N // Bp
    apply_fc = wfc_pad is not None
    out_w = wfc_pad.shape[-1] if apply_fc else H

    Tc = _pick_t_chunk(T, Bp, H, G4, out_w)
    n_chunks = T // Tc
    rows = Tc * Bp

    kernel = make_lstm_recurrent_kernel(Tc, Bp, H, apply_fc)

    in_specs = [
        pl.BlockSpec((rows, G4), lambda c: (c, 0)),
        pl.BlockSpec((H, G4), lambda c: (0, 0)),
    ]
    args = [gx, w_hh_f]
    scratch = [pltpu.VMEM((Bp, H), jnp.float32),       # h carry
               pltpu.VMEM((Bp, H), jnp.float32)]       # c carry
    need = 4 * (2 * rows * G4 + H * G4 + 2 * rows * out_w + 2 * Bp * H)
    if apply_fc:
        CP = out_w
        in_specs += [pl.BlockSpec((H, CP), lambda c: (0, 0)),
                     pl.BlockSpec((1, CP), lambda c: (0, 0))]
        args += [wfc_pad, bfc_pad]
        scratch.append(pltpu.VMEM((rows, H), jnp.float32))   # per-chunk h slab
        need += 4 * (H * CP + CP + rows * H)

    return pl.pallas_call(
        kernel,
        out_shape=jax.ShapeDtypeStruct((N, out_w), jnp.float32),
        grid=(n_chunks,),
        in_specs=in_specs,
        out_specs=pl.BlockSpec((rows, out_w), lambda c: (c, 0)),
        scratch_shapes=scratch,
        compiler_params=pltpu.CompilerParams(
            dimension_semantics=("arbitrary",),        # chunks are sequential
            vmem_limit_bytes=_vmem_limit(need)),
    )(*args)


# ----------------------------------------------------------------------------
# One-time parameter prep (hoisted out of the per-call forward)
# ----------------------------------------------------------------------------

_GATE_PERM = (0, 1, 3, 2)   # PyTorch row-blocks (i,f,g,o) -> kernel (i,f,o,g)


def _reorder_gates(w, H):
    w4 = w.reshape(4, H, -1)
    return jnp.concatenate([w4[i] for i in _GATE_PERM], axis=0)


def prepare_params(params):
    layers = []
    for layer in params["lstm"]:
        H = layer["w_hh"].shape[1]
        layers.append({
            "w_ih_f": jnp.transpose(_reorder_gates(layer["w_ih"], H)),   # (D, 4H)
            "w_hh_f": jnp.transpose(_reorder_gates(layer["w_hh"], H)),   # (H, 4H)
            "b_f": _reorder_gates(layer["b_ih"] + layer["b_hh"],
                                  H).reshape(1, 4 * H),                  # (1, 4H)
        })
    H_last = params["lstm"][-1]["w_hh"].shape[1]
    C = params["fc_w"].shape[0]
    CP = _round_up(C, _LANE)                        # lane-dense padded FC width
    wfc_pad = jnp.zeros((H_last, CP), jnp.float32).at[:, :C].set(
        jnp.transpose(params["fc_w"]))
    bfc_pad = jnp.zeros((1, CP), jnp.float32).at[:, :C].set(
        params["fc_b"].reshape(1, C))
    return {"layers": layers, "wfc_pad": wfc_pad, "bfc_pad": bfc_pad}


# ----------------------------------------------------------------------------
# Forward
# ----------------------------------------------------------------------------

def make_lstm_rnn_forward(num_classes):
    @jax.jit
    def forward(x, prepped):
        B, T, _ = x.shape
        Bp = _round_up(B, _SUBLANE)                 # sublane-aligned batch
        x_p = x if Bp == B else jnp.pad(x, ((0, Bp - B), (0, 0), (0, 0)))
        # time-major rows (row = t*Bp + b); only relayout in the whole forward
        h_flat = jnp.transpose(x_p, (1, 0, 2)).reshape(T * Bp, -1)

        layers = prepped["layers"]
        n_layers = len(layers)
        out_flat = None
        for li, layer in enumerate(layers):
            gx = gates_x(h_flat, layer["w_ih_f"], layer["b_f"])    # (T*Bp, 4H)
            if li == n_layers - 1:
                out_flat = lstm_recurrent(gx, layer["w_hh_f"], Bp,
                                          prepped["wfc_pad"],
                                          prepped["bfc_pad"])      # (T*Bp, CP)
            else:
                h_flat = lstm_recurrent(gx, layer["w_hh_f"], Bp)   # (T*Bp, H)

        CP = prepped["wfc_pad"].shape[-1]
        out = jnp.transpose(out_flat.reshape(T, Bp, CP), (1, 0, 2))
        return out[:B, :, :num_classes]

    return forward


# ----------------------------------------------------------------------------
# Deterministic parameter init (PyTorch-style uniform(-1/sqrt(H), 1/sqrt(H)))
# ----------------------------------------------------------------------------

def init_params(key, input_size, hidden_size, num_layers, num_classes):
    k = 1.0 / jnp.sqrt(hidden_size)
    params = {"lstm": []}
    for layer in range(num_layers):
        d_in = input_size if layer == 0 else hidden_size
        key, k1, k2, k3, k4 = jax.random.split(key, 5)
        params["lstm"].append({
            "w_ih": jax.random.uniform(k1, (4 * hidden_size, d_in),
                                       jnp.float32, -k, k),
            "w_hh": jax.random.uniform(k2, (4 * hidden_size, hidden_size),
                                       jnp.float32, -k, k),
            "b_ih": jax.random.uniform(k3, (4 * hidden_size,),
                                       jnp.float32, -k, k),
            "b_hh": jax.random.uniform(k4, (4 * hidden_size,),
                                       jnp.float32, -k, k),
        })
    key, k5, k6 = jax.random.split(key, 3)
    params["fc_w"] = jax.random.uniform(k5, (num_classes, hidden_size),
                                        jnp.float32, -k, k)
    params["fc_b"] = jax.random.uniform(k6, (num_classes,),
                                        jnp.float32, -k, k)
    return params


# ----------------------------------------------------------------------------
# Pure-JAX reference (for correctness check)
# ----------------------------------------------------------------------------

def reference_forward(x, params):
    B, T, _ = x.shape
    h_seq = x
    for layer in params["lstm"]:
        H = layer["w_hh"].shape[1]
        w_ih_t = layer["w_ih"].T
        w_hh_t = layer["w_hh"].T
        b = layer["b_ih"] + layer["b_hh"]

        def step(carry, x_t):
            h, c = carry
            gates = x_t @ w_ih_t + h @ w_hh_t + b
            i = jax.nn.sigmoid(gates[:, 0 * H:1 * H])
            f = jax.nn.sigmoid(gates[:, 1 * H:2 * H])
            g = jnp.tanh(gates[:, 2 * H:3 * H])
            o = jax.nn.sigmoid(gates[:, 3 * H:4 * H])
            c = f * c + i * g
            h = o * jnp.tanh(c)
            return (h, c), h

        h0 = jnp.zeros((B, H), jnp.float32)
        c0 = jnp.zeros((B, H), jnp.float32)
        _, hs = jax.lax.scan(step, (h0, c0), jnp.transpose(h_seq, (1, 0, 2)))
        h_seq = jnp.transpose(hs, (1, 0, 2))
    return h_seq @ params["fc_w"].T + params["fc_b"]


# ----------------------------------------------------------------------------
# Main
# ----------------------------------------------------------------------------

if __name__ == "__main__":
    B, T = 2, 8
    input_size, hidden_size, num_layers, num_classes = 16, 32, 2, 1

    key = jax.random.PRNGKey(0)
    key, kx, kp = jax.random.split(key, 3)
    x = jax.random.normal(kx, (B, T, input_size), jnp.float32)
    params = init_params(kp, input_size, hidden_size, num_layers, num_classes)

    prepped = prepare_params(params)                 # one-time weight relayout
    forward = make_lstm_rnn_forward(num_classes)

    out = jax.block_until_ready(forward(x, prepped))

    ref = reference_forward(x, params)
    assert out.shape == (B, T, num_classes), out.shape
    assert jnp.allclose(out, ref, atol=1e-5, rtol=1e-5), (
        float(jnp.max(jnp.abs(out - ref))))

    print("KERNEL_OK")
</pallas_src>

<mosaic_0001>
module attributes {stable_mosaic.version = 11 : i64} {
  func.func @gates_x_kernel(%arg0: i32, %arg1: memref<64x16xf32, #tpu.memory_space<vmem>>, %arg2: memref<16x128xf32, #tpu.memory_space<vmem>>, %arg3: memref<1x128xf32, #tpu.memory_space<vmem>>, %arg4: memref<64x128xf32, #tpu.memory_space<vmem>>) attributes {dimension_semantics = [#tpu.dimension_semantics<parallel>], iteration_bounds = array<i64: 1>, scalar_prefetch = 0 : i64, scratch_operands = 0 : i64, tpu.core_type = #tpu.core_type<tc>, window_params = [{transform_indices = @transform_0, window_bounds = array<i64: 64, 16>}, {pipeline_mode = #tpu.pipeline_mode<synchronous>, transform_indices = @transform_1, window_bounds = array<i64: 16, 128>}, {pipeline_mode = #tpu.pipeline_mode<synchronous>, transform_indices = @transform_2, window_bounds = array<i64: 1, 128>}, {transform_indices = @transform_3, window_bounds = array<i64: 64, 128>}]} {
    %c0 = arith.constant 0 : index
    %c0_0 = arith.constant 0 : index
    %0 = vector.load %arg1[%c0, %c0_0] : memref<64x16xf32, #tpu.memory_space<vmem>>, vector<64x16xf32>
    %c0_1 = arith.constant 0 : index
    %c0_2 = arith.constant 0 : index
    %1 = vector.load %arg2[%c0_1, %c0_2] : memref<16x128xf32, #tpu.memory_space<vmem>>, vector<16x128xf32>
    %cst = arith.constant dense<0.000000e+00> : vector<64x128xf32>
    %2 = tpu.matmul %0, %1, %cst {dimension_numbers = #tpu.dot_dimension_numbers<[1], [0], [0], [1], [0, 0, 1, 1], [], []>} : vector<64x16xf32>, vector<16x128xf32>, vector<64x128xf32> -> vector<64x128xf32>
    %c0_3 = arith.constant 0 : index
    %c0_4 = arith.constant 0 : index
    %3 = vector.load %arg3[%c0_3, %c0_4] : memref<1x128xf32, #tpu.memory_space<vmem>>, vector<1x128xf32>
    %4 = vector.broadcast %3 : vector<1x128xf32> to vector<64x128xf32>
    %5 = arith.addf %2, %4 : vector<64x128xf32>
    %c0_5 = arith.constant 0 : index
    %c0_6 = arith.constant 0 : index
    %6 = vector.load %arg4[%c0_5, %c0_6] : memref<64x128xf32, #tpu.memory_space<vmem>>, vector<64x128xf32>
    tpu.vector_store %arg4[%c0_5, %c0_6], %5 {strides = array<i32>} : memref<64x128xf32, #tpu.memory_space<vmem>>, vector<64x128xf32>,
    return
  }
  func.func @transform_0(%arg0: i32) -> (i32, i32) {
    %c0_i32 = arith.constant 0 : i32
    %c0_i32_0 = arith.constant 0 : i32
    return %arg0, %c0_i32 : i32, i32
  }
  func.func @transform_1(%arg0: i32) -> (i32, i32) {
    %c0_i32 = arith.constant 0 : i32
    %c0_i32_0 = arith.constant 0 : i32
    %c0_i32_1 = arith.constant 0 : i32
    return %c0_i32, %c0_i32_0 : i32, i32
  }
  func.func @transform_2(%arg0: i32) -> (i32, i32) {
    %c0_i32 = arith.constant 0 : i32
    %c0_i32_0 = arith.constant 0 : i32
    %c0_i32_1 = arith.constant 0 : i32
    return %c0_i32, %c0_i32_0 : i32, i32
  }
  func.func @transform_3(%arg0: i32) -> (i32, i32) {
    %c0_i32 = arith.constant 0 : i32
    %c0_i32_0 = arith.constant 0 : i32
    return %arg0, %c0_i32 : i32, i32
  }
}

module attributes {stable_mosaic.version = 11 : i64} {
  func.func @kernel(%arg0: i32, %arg1: memref<64x128xf32, #tpu.memory_space<vmem>>, %arg2: memref<32x128xf32, #tpu.memory_space<vmem>>, %arg3: memref<64x32xf32, #tpu.memory_space<vmem>>, %arg4: memref<8x32xf32, #tpu.memory_space<vmem>>, %arg5: memref<8x32xf32, #tpu.memory_space<vmem>>) attributes {dimension_semantics = [#tpu.dimension_semantics<arbitrary>], iteration_bounds = array<i64: 1>, scalar_prefetch = 0 : i64, scratch_operands = 2 : i64, tpu.core_type = #tpu.core_type<tc>, window_params = [{transform_indices = @transform_0, window_bounds = array<i64: 64, 128>}, {pipeline_mode = #tpu.pipeline_mode<synchronous>, transform_indices = @transform_1, window_bounds = array<i64: 32, 128>}, {transform_indices = @transform_2, window_bounds = array<i64: 64, 32>}]} {
    %c0_i32 = arith.constant 0 : i32
    %0 = arith.cmpi eq, %arg0, %c0_i32 : i32
    %1 = arith.extui %0 : i1 to i32
    %c0_i32_0 = arith.constant 0 : i32
    %2 = arith.cmpi ne, %1, %c0_i32_0 : i32
    scf.if %2 {
      %cst_50 = arith.constant 0.000000e+00 : f32
      %200 = vector.broadcast %cst_50 : f32 to vector<8x32xf32>
      %c0_51 = arith.constant 0 : index
      %c0_52 = arith.constant 0 : index
      %201 = vector.load %arg4[%c0_51, %c0_52] : memref<8x32xf32, #tpu.memory_space<vmem>>, vector<8x32xf32>
      tpu.vector_store %arg4[%c0_51, %c0_52], %200 {strides = array<i32>} : memref<8x32xf32, #tpu.memory_space<vmem>>, vector<8x32xf32>,
      %cst_53 = arith.constant 0.000000e+00 : f32
      %202 = vector.broadcast %cst_53 : f32 to vector<8x32xf32>
      %c0_54 = arith.constant 0 : index
      %c0_55 = arith.constant 0 : index
      %203 = vector.load %arg5[%c0_54, %c0_55] : memref<8x32xf32, #tpu.memory_space<vmem>>, vector<8x32xf32>
      tpu.vector_store %arg5[%c0_54, %c0_55], %202 {strides = array<i32>} : memref<8x32xf32, #tpu.memory_space<vmem>>, vector<8x32xf32>,
    } else {
    }
    %c0 = arith.constant 0 : index
    %c0_1 = arith.constant 0 : index
    %3 = vector.load %arg2[%c0, %c0_1] : memref<32x128xf32, #tpu.memory_space<vmem>>, vector<32x128xf32>
    %c0_2 = arith.constant 0 : index
    %c0_3 = arith.constant 0 : index
    %4 = vector.load %arg4[%c0_2, %c0_3] : memref<8x32xf32, #tpu.memory_space<vmem>>, vector<8x32xf32>
    %c0_4 = arith.constant 0 : index
    %c0_5 = arith.constant 0 : index
    %5 = vector.load %arg5[%c0_4, %c0_5] : memref<8x32xf32, #tpu.memory_space<vmem>>, vector<8x32xf32>
    %c0_i32_6 = arith.constant 0 : i32
    %c8_i32 = arith.constant 8 : i32
    %6 = arith.muli %c0_i32_6, %c8_i32 : i32
    %7 = tpu.assume_multiple %6, 8 : i32
    %8 = arith.index_cast %7 : i32 to index
    %c0_7 = arith.constant 0 : index
    %9 = vector.load %arg1[%8, %c0_7] : memref<64x128xf32, #tpu.memory_space<vmem>>, vector<8x128xf32>
    %cst = arith.constant dense<0.000000e+00> : vector<8x128xf32>
    %10 = tpu.matmul %4, %3, %cst {dimension_numbers = #tpu.dot_dimension_numbers<[1], [0], [0], [1], [0, 0, 1, 1], [], []>} : vector<8x32xf32>, vector<32x128xf32>, vector<8x128xf32> -> vector<8x128xf32>
    %11 = arith.addf %9, %10 : vector<8x128xf32>
    %12 = vector.extract_strided_slice %11 {offsets = [0, 0], sizes = [8, 96], strides = [1, 1]} : vector<8x128xf32> to vector<8x96xf32>
    %13 = arith.negf %12 : vector<8x96xf32>
    %14 = math.exp %13 : vector<8x96xf32>
    %cst_8 = arith.constant 1.000000e+00 : f32
    %15 = vector.broadcast %cst_8 : f32 to vector<8x96xf32>
    %16 = arith.addf %15, %14 : vector<8x96xf32>
    %17 = arith.divf %15, %16 : vector<8x96xf32>
    %18 = vector.extract_strided_slice %11 {offsets = [0, 96], sizes = [8, 32], strides = [1, 1]} : vector<8x128xf32> to vector<8x32xf32>
    %19 = math.tanh %18 : vector<8x32xf32>
    %20 = vector.extract_strided_slice %17 {offsets = [0, 32], sizes = [8, 32], strides = [1, 1]} : vector<8x96xf32> to vector<8x32xf32>
    %21 = arith.mulf %20, %5 : vector<8x32xf32>
    %22 = vector.extract_strided_slice %17 {offsets = [0, 0], sizes = [8, 32], strides = [1, 1]} : vector<8x96xf32> to vector<8x32xf32>
    %23 = arith.mulf %22, %19 : vector<8x32xf32>
    %24 = arith.addf %21, %23 : vector<8x32xf32>
    %25 = vector.extract_strided_slice %17 {offsets = [0, 64], sizes = [8, 32], strides = [1, 1]} : vector<8x96xf32> to vector<8x32xf32>
    %26 = math.tanh %24 : vector<8x32xf32>
    %27 = arith.mulf %25, %26 : vector<8x32xf32>
    %28 = arith.index_cast %7 : i32 to index
    %c0_9 = arith.constant 0 : index
    %29 = vector.load %arg3[%28, %c0_9] : memref<64x32xf32, #tpu.memory_space<vmem>>, vector<8x32xf32>
    tpu.vector_store %arg3[%28, %c0_9], %27 {strides = array<i32>} : memref<64x32xf32, #tpu.memory_space<vmem>>, vector<8x32xf32>,
    %c1_i32 = arith.constant 1 : i32
    %c8_i32_10 = arith.constant 8 : i32
    %30 = arith.muli %c1_i32, %c8_i32_10 : i32
    %31 = tpu.assume_multiple %30, 8 : i32
    %32 = arith.index_cast %31 : i32 to index
    %c0_11 = arith.constant 0 : index
    %33 = vector.load %arg1[%32, %c0_11] : memref<64x128xf32, #tpu.memory_space<vmem>>, vector<8x128xf32>
    %cst_12 = arith.constant dense<0.000000e+00> : vector<8x128xf32>
    %34 = tpu.matmul %27, %3, %cst_12 {dimension_numbers = #tpu.dot_dimension_numbers<[1], [0], [0], [1], [0, 0, 1, 1], [], []>} : vector<8x32xf32>, vector<32x128xf32>, vector<8x128xf32> -> vector<8x128xf32>
    %35 = arith.addf %33, %34 : vector<8x128xf32>
    %36 = vector.extract_strided_slice %35 {offsets = [0, 0], sizes = [8, 96], strides = [1, 1]} : vector<8x128xf32> to vector<8x96xf32>
    %37 = arith.negf %36 : vector<8x96xf32>
    %38 = math.exp %37 : vector<8x96xf32>
    %cst_13 = arith.constant 1.000000e+00 : f32
    %39 = vector.broadcast %cst_13 : f32 to vector<8x96xf32>
    %40 = arith.addf %39, %38 : vector<8x96xf32>
    %41 = arith.divf %39, %40 : vector<8x96xf32>
    %42 = vector.extract_strided_slice %35 {offsets = [0, 96], sizes = [8, 32], strides = [1, 1]} : vector<8x128xf32> to vector<8x32xf32>
    %43 = math.tanh %42 : vector<8x32xf32>
    %44 = vector.extract_strided_slice %41 {offsets = [0, 32], sizes = [8, 32], strides = [1, 1]} : vector<8x96xf32> to vector<8x32xf32>
    %45 = arith.mulf %44, %24 : vector<8x32xf32>
    %46 = vector.extract_strided_slice %41 {offsets = [0, 0], sizes = [8, 32], strides = [1, 1]} : vector<8x96xf32> to vector<8x32xf32>
    %47 = arith.mulf %46, %43 : vector<8x32xf32>
    %48 = arith.addf %45, %47 : vector<8x32xf32>
    %49 = vector.extract_strided_slice %41 {offsets = [0, 64], sizes = [8, 32], strides = [1, 1]} : vector<8x96xf32> to vector<8x32xf32>
    %50 = math.tanh %48 : vector<8x32xf32>
    %51 = arith.mulf %49, %50 : vector<8x32xf32>
    %52 = arith.index_cast %31 : i32 to index
    %c0_14 = arith.constant 0 : index
    %53 = vector.load %arg3[%52, %c0_14] : memref<64x32xf32, #tpu.memory_space<vmem>>, vector<8x32xf32>
    tpu.vector_store %arg3[%52, %c0_14], %51 {strides = array<i32>} : memref<64x32xf32, #tpu.memory_space<vmem>>, vector<8x32xf32>,
    %c2_i32 = arith.constant 2 : i32
    %c8_i32_15 = arith.constant 8 : i32
    %54 = arith.muli %c2_i32, %c8_i32_15 : i32
    %55 = tpu.assume_multiple %54, 8 : i32
    %56 = arith.index_cast %55 : i32 to index
    %c0_16 = arith.constant 0 : index
    %57 = vector.load %arg1[%56, %c0_16] : memref<64x128xf32, #tpu.memory_space<vmem>>, vector<8x128xf32>
    %cst_17 = arith.constant dense<0.000000e+00> : vector<8x128xf32>
    %58 = tpu.matmul %51, %3, %cst_17 {dimension_numbers = #tpu.dot_dimension_numbers<[1], [0], [0], [1], [0, 0, 1, 1], [], []>} : vector<8x32xf32>, vector<32x128xf32>, vector<8x128xf32> -> vector<8x128xf32>
    %59 = arith.addf %57, %58 : vector<8x128xf32>
    %60 = vector.extract_strided_slice %59 {offsets = [0, 0], sizes = [8, 96], strides = [1, 1]} : vector<8x128xf32> to vector<8x96xf32>
    %61 = arith.negf %60 : vector<8x96xf32>
    %62 = math.exp %61 : vector<8x96xf32>
    %cst_18 = arith.constant 1.000000e+00 : f32
    %63 = vector.broadcast %cst_18 : f32 to vector<8x96xf32>
    %64 = arith.addf %63, %62 : vector<8x96xf32>
    %65 = arith.divf %63, %64 : vector<8x96xf32>
    %66 = vector.extract_strided_slice %59 {offsets = [0, 96], sizes = [8, 32], strides = [1, 1]} : vector<8x128xf32> to vector<8x32xf32>
    %67 = math.tanh %66 : vector<8x32xf32>
    %68 = vector.extract_strided_slice %65 {offsets = [0, 32], sizes = [8, 32], strides = [1, 1]} : vector<8x96xf32> to vector<8x32xf32>
    %69 = arith.mulf %68, %48 : vector<8x32xf32>
    %70 = vector.extract_strided_slice %65 {offsets = [0, 0], sizes = [8, 32], strides = [1, 1]} : vector<8x96xf32> to vector<8x32xf32>
    %71 = arith.mulf %70, %67 : vector<8x32xf32>
    %72 = arith.addf %69, %71 : vector<8x32xf32>
    %73 = vector.extract_strided_slice %65 {offsets = [0, 64], sizes = [8, 32], strides = [1, 1]} : vector<8x96xf32> to vector<8x32xf32>
    %74 = math.tanh %72 : vector<8x32xf32>
    %75 = arith.mulf %73, %74 : vector<8x32xf32>
    %76 = arith.index_cast %55 : i32 to index
    %c0_19 = arith.constant 0 : index
    %77 = vector.load %arg3[%76, %c0_19] : memref<64x32xf32, #tpu.memory_space<vmem>>, vector<8x32xf32>
    tpu.vector_store %arg3[%76, %c0_19], %75 {strides = array<i32>} : memref<64x32xf32, #tpu.memory_space<vmem>>, vector<8x32xf32>,
    %c3_i32 = arith.constant 3 : i32
    %c8_i32_20 = arith.constant 8 : i32
    %78 = arith.muli %c3_i32, %c8_i32_20 : i32
    %79 = tpu.assume_multiple %78, 8 : i32
    %80 = arith.index_cast %79 : i32 to index
    %c0_21 = arith.constant 0 : index
    %81 = vector.load %arg1[%80, %c0_21] : memref<64x128xf32, #tpu.memory_space<vmem>>, vector<8x128xf32>
    %cst_22 = arith.constant dense<0.000000e+00> : vector<8x128xf32>
    %82 = tpu.matmul %75, %3, %cst_22 {dimension_numbers = #tpu.dot_dimension_numbers<[1], [0], [0], [1], [0, 0, 1, 1], [], []>} : vector<8x32xf32>, vector<32x128xf32>, vector<8x128xf32> -> vector<8x128xf32>
    %83 = arith.addf %81, %82 : vector<8x128xf32>
    %84 = vector.extract_strided_slice %83 {offsets = [0, 0], sizes = [8, 96], strides = [1, 1]} : vector<8x128xf32> to vector<8x96xf32>
    %85 = arith.negf %84 : vector<8x96xf32>
    %86 = math.exp %85 : vector<8x96xf32>
    %cst_23 = arith.constant 1.000000e+00 : f32
    %87 = vector.broadcast %cst_23 : f32 to vector<8x96xf32>
    %88 = arith.addf %87, %86 : vector<8x96xf32>
    %89 = arith.divf %87, %88 : vector<8x96xf32>
    %90 = vector.extract_strided_slice %83 {offsets = [0, 96], sizes = [8, 32], strides = [1, 1]} : vector<8x128xf32> to vector<8x32xf32>
    %91 = math.tanh %90 : vector<8x32xf32>
    %92 = vector.extract_strided_slice %89 {offsets = [0, 32], sizes = [8, 32], strides = [1, 1]} : vector<8x96xf32> to vector<8x32xf32>
    %93 = arith.mulf %92, %72 : vector<8x32xf32>
    %94 = vector.extract_strided_slice %89 {offsets = [0, 0], sizes = [8, 32], strides = [1, 1]} : vector<8x96xf32> to vector<8x32xf32>
    %95 = arith.mulf %94, %91 : vector<8x32xf32>
    %96 = arith.addf %93, %95 : vector<8x32xf32>
    %97 = vector.extract_strided_slice %89 {offsets = [0, 64], sizes = [8, 32], strides = [1, 1]} : vector<8x96xf32> to vector<8x32xf32>
    %98 = math.tanh %96 : vector<8x32xf32>
    %99 = arith.mulf %97, %98 : vector<8x32xf32>
    %100 = arith.index_cast %79 : i32 to index
    %c0_24 = arith.constant 0 : index
    %101 = vector.load %arg3[%100, %c0_24] : memref<64x32xf32, #tpu.memory_space<vmem>>, vector<8x32xf32>
    tpu.vector_store %arg3[%100, %c0_24], %99 {strides = array<i32>} : memref<64x32xf32, #tpu.memory_space<vmem>>, vector<8x32xf32>,
    %c4_i32 = arith.constant 4 : i32
    %c8_i32_25 = arith.constant 8 : i32
    %102 = arith.muli %c4_i32, %c8_i32_25 : i32
    %103 = tpu.assume_multiple %102, 8 : i32
    %104 = arith.index_cast %103 : i32 to index
    %c0_26 = arith.constant 0 : index
    %105 = vector.load %arg1[%104, %c0_26] : memref<64x128xf32, #tpu.memory_space<vmem>>, vector<8x128xf32>
    %cst_27 = arith.constant dense<0.000000e+00> : vector<8x128xf32>
    %106 = tpu.matmul %99, %3, %cst_27 {dimension_numbers = #tpu.dot_dimension_numbers<[1], [0], [0], [1], [0, 0, 1, 1], [], []>} : vector<8x32xf32>, vector<32x128xf32>, vector<8x128xf32> -> vector<8x128xf32>
    %107 = arith.addf %105, %106 : vector<8x128xf32>
    %108 = vector.extract_strided_slice %107 {offsets = [0, 0], sizes = [8, 96], strides = [1, 1]} : vector<8x128xf32> to vector<8x96xf32>
    %109 = arith.negf %108 : vector<8x96xf32>
    %110 = math.exp %109 : vector<8x96xf32>
    %cst_28 = arith.constant 1.000000e+00 : f32
    %111 = vector.broadcast %cst_28 : f32 to vector<8x96xf32>
    %112 = arith.addf %111, %110 : vector<8x96xf32>
    %113 = arith.divf %111, %112 : vector<8x96xf32>
    %114 = vector.extract_strided_slice %107 {offsets = [0, 96], sizes = [8, 32], strides = [1, 1]} : vector<8x128xf32> to vector<8x32xf32>
    %115 = math.tanh %114 : vector<8x32xf32>
    %116 = vector.extract_strided_slice %113 {offsets = [0, 32], sizes = [8, 32], strides = [1, 1]} : vector<8x96xf32> to vector<8x32xf32>
    %117 = arith.mulf %116, %96 : vector<8x32xf32>
    %118 = vector.extract_strided_slice %113 {offsets = [0, 0], sizes = [8, 32], strides = [1, 1]} : vector<8x96xf32> to vector<8x32xf32>
    %119 = arith.mulf %118, %115 : vector<8x32xf32>
    %120 = arith.addf %117, %119 : vector<8x32xf32>
    %121 = vector.extract_strided_slice %113 {offsets = [0, 64], sizes = [8, 32], strides = [1, 1]} : vector<8x96xf32> to vector<8x32xf32>
    %122 = math.tanh %120 : vector<8x32xf32>
    %123 = arith.mulf %121, %122 : vector<8x32xf32>
    %124 = arith.index_cast %103 : i32 to index
    %c0_29 = arith.constant 0 : index
    %125 = vector.load %arg3[%124, %c0_29] : memref<64x32xf32, #tpu.memory_space<vmem>>, vector<8x32xf32>
    tpu.vector_store %arg3[%124, %c0_29], %123 {strides = array<i32>} : memref<64x32xf32, #tpu.memory_space<vmem>>, vector<8x32xf32>,
    %c5_i32 = arith.constant 5 : i32
    %c8_i32_30 = arith.constant 8 : i32
    %126 = arith.muli %c5_i32, %c8_i32_30 : i32
    %127 = tpu.assume_multiple %126, 8 : i32
    %128 = arith.index_cast %127 : i32 to index
    %c0_31 = arith.constant 0 : index
    %129 = vector.load %arg1[%128, %c0_31] : memref<64x128xf32, #tpu.memory_space<vmem>>, vector<8x128xf32>
    %cst_32 = arith.constant dense<0.000000e+00> : vector<8x128xf32>
    %130 = tpu.matmul %123, %3, %cst_32 {dimension_numbers = #tpu.dot_dimension_numbers<[1], [0], [0], [1], [0, 0, 1, 1], [], []>} : vector<8x32xf32>, vector<32x128xf32>, vector<8x128xf32> -> vector<8x128xf32>
    %131 = arith.addf %129, %130 : vector<8x128xf32>
    %132 = vector.extract_strided_slice %131 {offsets = [0, 0], sizes = [8, 96], strides = [1, 1]} : vector<8x128xf32> to vector<8x96xf32>
    %133 = arith.negf %132 : vector<8x96xf32>
    %134 = math.exp %133 : vector<8x96xf32>
    %cst_33 = arith.constant 1.000000e+00 : f32
    %135 = vector.broadcast %cst_33 : f32 to vector<8x96xf32>
    %136 = arith.addf %135, %134 : vector<8x96xf32>
    %137 = arith.divf %135, %136 : vector<8x96xf32>
    %138 = vector.extract_strided_slice %131 {offsets = [0, 96], sizes = [8, 32], strides = [1, 1]} : vector<8x128xf32> to vector<8x32xf32>
    %139 = math.tanh %138 : vector<8x32xf32>
    %140 = vector.extract_strided_slice %137 {offsets = [0, 32], sizes = [8, 32], strides = [1, 1]} : vector<8x96xf32> to vector<8x32xf32>
    %141 = arith.mulf %140, %120 : vector<8x32xf32>
    %142 = vector.extract_strided_slice %137 {offsets = [0, 0], sizes = [8, 32], strides = [1, 1]} : vector<8x96xf32> to vector<8x32xf32>
    %143 = arith.mulf %142, %139 : vector<8x32xf32>
    %144 = arith.addf %141, %143 : vector<8x32xf32>
    %145 = vector.extract_strided_slice %137 {offsets = [0, 64], sizes = [8, 32], strides = [1, 1]} : vector<8x96xf32> to vector<8x32xf32>
    %146 = math.tanh %144 : vector<8x32xf32>
    %147 = arith.mulf %145, %146 : vector<8x32xf32>
    %148 = arith.index_cast %127 : i32 to index
    %c0_34 = arith.constant 0 : index
    %149 = vector.load %arg3[%148, %c0_34] : memref<64x32xf32, #tpu.memory_space<vmem>>, vector<8x32xf32>
    tpu.vector_store %arg3[%148, %c0_34], %147 {strides = array<i32>} : memref<64x32xf32, #tpu.memory_space<vmem>>, vector<8x32xf32>,
    %c6_i32 = arith.constant 6 : i32
    %c8_i32_35 = arith.constant 8 : i32
    %150 = arith.muli %c6_i32, %c8_i32_35 : i32
    %151 = tpu.assume_multiple %150, 8 : i32
    %152 = arith.index_cast %151 : i32 to index
    %c0_36 = arith.constant 0 : index
    %153 = vector.load %arg1[%152, %c0_36] : memref<64x128xf32, #tpu.memory_space<vmem>>, vector<8x128xf32>
    %cst_37 = arith.constant dense<0.000000e+00> : vector<8x128xf32>
    %154 = tpu.matmul %147, %3, %cst_37 {dimension_numbers = #tpu.dot_dimension_numbers<[1], [0], [0], [1], [0, 0, 1, 1], [], []>} : vector<8x32xf32>, vector<32x128xf32>, vector<8x128xf32> -> vector<8x128xf32>
    %155 = arith.addf %153, %154 : vector<8x128xf32>
    %156 = vector.extract_strided_slice %155 {offsets = [0, 0], sizes = [8, 96], strides = [1, 1]} : vector<8x128xf32> to vector<8x96xf32>
    %157 = arith.negf %156 : vector<8x96xf32>
    %158 = math.exp %157 : vector<8x96xf32>
    %cst_38 = arith.constant 1.000000e+00 : f32
    %159 = vector.broadcast %cst_38 : f32 to vector<8x96xf32>
    %160 = arith.addf %159, %158 : vector<8x96xf32>
    %161 = arith.divf %159, %160 : vector<8x96xf32>
    %162 = vector.extract_strided_slice %155 {offsets = [0, 96], sizes = [8, 32], strides = [1, 1]} : vector<8x128xf32> to vector<8x32xf32>
    %163 = math.tanh %162 : vector<8x32xf32>
    %164 = vector.extract_strided_slice %161 {offsets = [0, 32], sizes = [8, 32], strides = [1, 1]} : vector<8x96xf32> to vector<8x32xf32>
    %165 = arith.mulf %164, %144 : vector<8x32xf32>
    %166 = vector.extract_strided_slice %161 {offsets = [0, 0], sizes = [8, 32], strides = [1, 1]} : vector<8x96xf32> to vector<8x32xf32>
    %167 = arith.mulf %166, %163 : vector<8x32xf32>
    %168 = arith.addf %165, %167 : vector<8x32xf32>
    %169 = vector.extract_strided_slice %161 {offsets = [0, 64], sizes = [8, 32], strides = [1, 1]} : vector<8x96xf32> to vector<8x32xf32>
    %170 = math.tanh %168 : vector<8x32xf32>
    %171 = arith.mulf %169, %170 : vector<8x32xf32>
    %172 = arith.index_cast %151 : i32 to index
    %c0_39 = arith.constant 0 : index
    %173 = vector.load %arg3[%172, %c0_39] : memref<64x32xf32, #tpu.memory_space<vmem>>, vector<8x32xf32>
    tpu.vector_store %arg3[%172, %c0_39], %171 {strides = array<i32>} : memref<64x32xf32, #tpu.memory_space<vmem>>, vector<8x32xf32>,
    %c7_i32 = arith.constant 7 : i32
    %c8_i32_40 = arith.constant 8 : i32
    %174 = arith.muli %c7_i32, %c8_i32_40 : i32
    %175 = tpu.assume_multiple %174, 8 : i32
    %176 = arith.index_cast %175 : i32 to index
    %c0_41 = arith.constant 0 : index
    %177 = vector.load %arg1[%176, %c0_41] : memref<64x128xf32, #tpu.memory_space<vmem>>, vector<8x128xf32>
    %cst_42 = arith.constant dense<0.000000e+00> : vector<8x128xf32>
    %178 = tpu.matmul %171, %3, %cst_42 {dimension_numbers = #tpu.dot_dimension_numbers<[1], [0], [0], [1], [0, 0, 1, 1], [], []>} : vector<8x32xf32>, vector<32x128xf32>, vector<8x128xf32> -> vector<8x128xf32>
    %179 = arith.addf %177, %178 : vector<8x128xf32>
    %180 = vector.extract_strided_slice %179 {offsets = [0, 0], sizes = [8, 96], strides = [1, 1]} : vector<8x128xf32> to vector<8x96xf32>
    %181 = arith.negf %180 : vector<8x96xf32>
    %182 = math.exp %181 : vector<8x96xf32>
    %cst_43 = arith.constant 1.000000e+00 : f32
    %183 = vector.broadcast %cst_43 : f32 to vector<8x96xf32>
    %184 = arith.addf %183, %182 : vector<8x96xf32>
    %185 = arith.divf %183, %184 : vector<8x96xf32>
    %186 = vector.extract_strided_slice %179 {offsets = [0, 96], sizes = [8, 32], strides = [1, 1]} : vector<8x128xf32> to vector<8x32xf32>
    %187 = math.tanh %186 : vector<8x32xf32>
    %188 = vector.extract_strided_slice %185 {offsets = [0, 32], sizes = [8, 32], strides = [1, 1]} : vector<8x96xf32> to vector<8x32xf32>
    %189 = arith.mulf %188, %168 : vector<8x32xf32>
    %190 = vector.extract_strided_slice %185 {offsets = [0, 0], sizes = [8, 32], strides = [1, 1]} : vector<8x96xf32> to vector<8x32xf32>
    %191 = arith.mulf %190, %187 : vector<8x32xf32>
    %192 = arith.addf %189, %191 : vector<8x32xf32>
    %193 = vector.extract_strided_slice %185 {offsets = [0, 64], sizes = [8, 32], strides = [1, 1]} : vector<8x96xf32> to vector<8x32xf32>
    %194 = math.tanh %192 : vector<8x32xf32>
    %195 = arith.mulf %193, %194 : vector<8x32xf32>
    %196 = arith.index_cast %175 : i32 to index
    %c0_44 = arith.constant 0 : index
    %197 = vector.load %arg3[%196, %c0_44] : memref<64x32xf32, #tpu.memory_space<vmem>>, vector<8x32xf32>
    tpu.vector_store %arg3[%196, %c0_44], %195 {strides = array<i32>} : memref<64x32xf32, #tpu.memory_space<vmem>>, vector<8x32xf32>,
    %c8_i32_45 = arith.constant 8 : i32
    %c0_46 = arith.constant 0 : index
    %c0_47 = arith.constant 0 : index
    %198 = vector.load %arg4[%c0_46, %c0_47] : memref<8x32xf32, #tpu.memory_space<vmem>>, vector<8x32xf32>
    tpu.vector_store %arg4[%c0_46, %c0_47], %195 {strides = array<i32>} : memref<8x32xf32, #tpu.memory_space<vmem>>, vector<8x32xf32>,
    %c0_48 = arith.constant 0 : index
    %c0_49 = arith.constant 0 : index
    %199 = vector.load %arg5[%c0_48, %c0_49] : memref<8x32xf32, #tpu.memory_space<vmem>>, vector<8x32xf32>
    tpu.vector_store %arg5[%c0_48, %c0_49], %192 {strides = array<i32>} : memref<8x32xf32, #tpu.memory_space<vmem>>, vector<8x32xf32>,
    return
  }
  func.func @transform_0(%arg0: i32) -> (i32, i32) {
    %c0_i32 = arith.constant 0 : i32
    %c0_i32_0 = arith.constant 0 : i32
    return %arg0, %c0_i32 : i32, i32
  }
  func.func @transform_1(%arg0: i32) -> (i32, i32) {
    %c0_i32 = arith.constant 0 : i32
    %c0_i32_0 = arith.constant 0 : i32
    %c0_i32_1 = arith.constant 0 : i32
    return %c0_i32, %c0_i32_0 : i32, i32
  }
  func.func @transform_2(%arg0: i32) -> (i32, i32) {
    %c0_i32 = arith.constant 0 : i32
    %c0_i32_0 = arith.constant 0 : i32
    return %arg0, %c0_i32 : i32, i32
  }
}

module attributes {stable_mosaic.version = 11 : i64} {
  func.func @gates_x_kernel(%arg0: i32, %arg1: memref<64x32xf32, #tpu.memory_space<vmem>>, %arg2: memref<32x128xf32, #tpu.memory_space<vmem>>, %arg3: memref<1x128xf32, #tpu.memory_space<vmem>>, %arg4: memref<64x128xf32, #tpu.memory_space<vmem>>) attributes {dimension_semantics = [#tpu.dimension_semantics<parallel>], iteration_bounds = array<i64: 1>, scalar_prefetch = 0 : i64, scratch_operands = 0 : i64, tpu.core_type = #tpu.core_type<tc>, window_params = [{transform_indices = @transform_0, window_bounds = array<i64: 64, 32>}, {pipeline_mode = #tpu.pipeline_mode<synchronous>, transform_indices = @transform_1, window_bounds = array<i64: 32, 128>}, {pipeline_mode = #tpu.pipeline_mode<synchronous>, transform_indices = @transform_2, window_bounds = array<i64: 1, 128>}, {transform_indices = @transform_3, window_bounds = array<i64: 64, 128>}]} {
    %c0 = arith.constant 0 : index
    %c0_0 = arith.constant 0 : index
    %0 = vector.load %arg1[%c0, %c0_0] : memref<64x32xf32, #tpu.memory_space<vmem>>, vector<64x32xf32>
    %c0_1 = arith.constant 0 : index
    %c0_2 = arith.constant 0 : index
    %1 = vector.load %arg2[%c0_1, %c0_2] : memref<32x128xf32, #tpu.memory_space<vmem>>, vector<32x128xf32>
    %cst = arith.constant dense<0.000000e+00> : vector<64x128xf32>
    %2 = tpu.matmul %0, %1, %cst {dimension_numbers = #tpu.dot_dimension_numbers<[1], [0], [0], [1], [0, 0, 1, 1], [], []>} : vector<64x32xf32>, vector<32x128xf32>, vector<64x128xf32> -> vector<64x128xf32>
    %c0_3 = arith.constant 0 : index
    %c0_4 = arith.constant 0 : index
    %3 = vector.load %arg3[%c0_3, %c0_4] : memref<1x128xf32, #tpu.memory_space<vmem>>, vector<1x128xf32>
    %4 = vector.broadcast %3 : vector<1x128xf32> to vector<64x128xf32>
    %5 = arith.addf %2, %4 : vector<64x128xf32>
    %c0_5 = arith.constant 0 : index
    %c0_6 = arith.constant 0 : index
    %6 = vector.load %arg4[%c0_5, %c0_6] : memref<64x128xf32, #tpu.memory_space<vmem>>, vector<64x128xf32>
    tpu.vector_store %arg4[%c0_5, %c0_6], %5 {strides = array<i32>} : memref<64x128xf32, #tpu.memory_space<vmem>>, vector<64x128xf32>,
    return
  }
  func.func @transform_0(%arg0: i32) -> (i32, i32) {
    %c0_i32 = arith.constant 0 : i32
    %c0_i32_0 = arith.constant 0 : i32
    return %arg0, %c0_i32 : i32, i32
  }
  func.func @transform_1(%arg0: i32) -> (i32, i32) {
    %c0_i32 = arith.constant 0 : i32
    %c0_i32_0 = arith.constant 0 : i32
    %c0_i32_1 = arith.constant 0 : i32
    return %c0_i32, %c0_i32_0 : i32, i32
  }
  func.func @transform_2(%arg0: i32) -> (i32, i32) {
    %c0_i32 = arith.constant 0 : i32
    %c0_i32_0 = arith.constant 0 : i32
    %c0_i32_1 = arith.constant 0 : i32
    return %c0_i32, %c0_i32_0 : i32, i32
  }
  func.func @transform_3(%arg0: i32) -> (i32, i32) {
    %c0_i32 = arith.constant 0 : i32
    %c0_i32_0 = arith.constant 0 : i32
    return %arg0, %c0_i32 : i32, i32
  }
}

module attributes {stable_mosaic.version = 11 : i64} {
  func.func @kernel(%arg0: i32, %arg1: memref<64x128xf32, #tpu.memory_space<vmem>>, %arg2: memref<32x128xf32, #tpu.memory_space<vmem>>, %arg3: memref<32x128xf32, #tpu.memory_space<vmem>>, %arg4: memref<1x128xf32, #tpu.memory_space<vmem>>, %arg5: memref<64x128xf32, #tpu.memory_space<vmem>>, %arg6: memref<8x32xf32, #tpu.memory_space<vmem>>, %arg7: memref<8x32xf32, #tpu.memory_space<vmem>>, %arg8: memref<64x32xf32, #tpu.memory_space<vmem>>) attributes {dimension_semantics = [#tpu.dimension_semantics<arbitrary>], iteration_bounds = array<i64: 1>, scalar_prefetch = 0 : i64, scratch_operands = 3 : i64, tpu.core_type = #tpu.core_type<tc>, window_params = [{transform_indices = @transform_0, window_bounds = array<i64: 64, 128>}, {pipeline_mode = #tpu.pipeline_mode<synchronous>, transform_indices = @transform_1, window_bounds = array<i64: 32, 128>}, {pipeline_mode = #tpu.pipeline_mode<synchronous>, transform_indices = @transform_2, window_bounds = array<i64: 32, 128>}, {pipeline_mode = #tpu.pipeline_mode<synchronous>, transform_indices = @transform_3, window_bounds = array<i64: 1, 128>}, {transform_indices = @transform_4, window_bounds = array<i64: 64, 128>}]} {
    %c0_i32 = arith.constant 0 : i32
    %0 = arith.cmpi eq, %arg0, %c0_i32 : i32
    %1 = arith.extui %0 : i1 to i32
    %c0_i32_0 = arith.constant 0 : i32
    %2 = arith.cmpi ne, %1, %c0_i32_0 : i32
    scf.if %2 {
      %cst_59 = arith.constant 0.000000e+00 : f32
      %207 = vector.broadcast %cst_59 : f32 to vector<8x32xf32>
      %c0_60 = arith.constant 0 : index
      %c0_61 = arith.constant 0 : index
      %208 = vector.load %arg6[%c0_60, %c0_61] : memref<8x32xf32, #tpu.memory_space<vmem>>, vector<8x32xf32>
      tpu.vector_store %arg6[%c0_60, %c0_61], %207 {strides = array<i32>} : memref<8x32xf32, #tpu.memory_space<vmem>>, vector<8x32xf32>,
      %cst_62 = arith.constant 0.000000e+00 : f32
      %209 = vector.broadcast %cst_62 : f32 to vector<8x32xf32>
      %c0_63 = arith.constant 0 : index
      %c0_64 = arith.constant 0 : index
      %210 = vector.load %arg7[%c0_63, %c0_64] : memref<8x32xf32, #tpu.memory_space<vmem>>, vector<8x32xf32>
      tpu.vector_store %arg7[%c0_63, %c0_64], %209 {strides = array<i32>} : memref<8x32xf32, #tpu.memory_space<vmem>>, vector<8x32xf32>,
    } else {
    }
    %c0 = arith.constant 0 : index
    %c0_1 = arith.constant 0 : index
    %3 = vector.load %arg2[%c0, %c0_1] : memref<32x128xf32, #tpu.memory_space<vmem>>, vector<32x128xf32>
    %c0_2 = arith.constant 0 : index
    %c0_3 = arith.constant 0 : index
    %4 = vector.load %arg6[%c0_2, %c0_3] : memref<8x32xf32, #tpu.memory_space<vmem>>, vector<8x32xf32>
    %c0_4 = arith.constant 0 : index
    %c0_5 = arith.constant 0 : index
    %5 = vector.load %arg7[%c0_4, %c0_5] : memref<8x32xf32, #tpu.memory_space<vmem>>, vector<8x32xf32>
    %c0_i32_6 = arith.constant 0 : i32
    %c8_i32 = arith.constant 8 : i32
    %6 = arith.muli %c0_i32_6, %c8_i32 : i32
    %7 = tpu.assume_multiple %6, 8 : i32
    %8 = arith.index_cast %7 : i32 to index
    %c0_7 = arith.constant 0 : index
    %9 = vector.load %arg1[%8, %c0_7] : memref<64x128xf32, #tpu.memory_space<vmem>>, vector<8x128xf32>
    %cst = arith.constant dense<0.000000e+00> : vector<8x128xf32>
    %10 = tpu.matmul %4, %3, %cst {dimension_numbers = #tpu.dot_dimension_numbers<[1], [0], [0], [1], [0, 0, 1, 1], [], []>} : vector<8x32xf32>, vector<32x128xf32>, vector<8x128xf32> -> vector<8x128xf32>
    %11 = arith.addf %9, %10 : vector<8x128xf32>
    %12 = vector.extract_strided_slice %11 {offsets = [0, 0], sizes = [8, 96], strides = [1, 1]} : vector<8x128xf32> to vector<8x96xf32>
    %13 = arith.negf %12 : vector<8x96xf32>
    %14 = math.exp %13 : vector<8x96xf32>
    %cst_8 = arith.constant 1.000000e+00 : f32
    %15 = vector.broadcast %cst_8 : f32 to vector<8x96xf32>
    %16 = arith.addf %15, %14 : vector<8x96xf32>
    %17 = arith.divf %15, %16 : vector<8x96xf32>
    %18 = vector.extract_strided_slice %11 {offsets = [0, 96], sizes = [8, 32], strides = [1, 1]} : vector<8x128xf32> to vector<8x32xf32>
    %19 = math.tanh %18 : vector<8x32xf32>
    %20 = vector.extract_strided_slice %17 {offsets = [0, 32], sizes = [8, 32], strides = [1, 1]} : vector<8x96xf32> to vector<8x32xf32>
    %21 = arith.mulf %20, %5 : vector<8x32xf32>
    %22 = vector.extract_strided_slice %17 {offsets = [0, 0], sizes = [8, 32], strides = [1, 1]} : vector<8x96xf32> to vector<8x32xf32>
    %23 = arith.mulf %22, %19 : vector<8x32xf32>
    %24 = arith.addf %21, %23 : vector<8x32xf32>
    %25 = vector.extract_strided_slice %17 {offsets = [0, 64], sizes = [8, 32], strides = [1, 1]} : vector<8x96xf32> to vector<8x32xf32>
    %26 = math.tanh %24 : vector<8x32xf32>
    %27 = arith.mulf %25, %26 : vector<8x32xf32>
    %28 = arith.index_cast %7 : i32 to index
    %c0_9 = arith.constant 0 : index
    %29 = vector.load %arg8[%28, %c0_9] : memref<64x32xf32, #tpu.memory_space<vmem>>, vector<8x32xf32>
    tpu.vector_store %arg8[%28, %c0_9], %27 {strides = array<i32>} : memref<64x32xf32, #tpu.memory_space<vmem>>, vector<8x32xf32>,
    %c1_i32 = arith.constant 1 : i32
    %c8_i32_10 = arith.constant 8 : i32
    %30 = arith.muli %c1_i32, %c8_i32_10 : i32
    %31 = tpu.assume_multiple %30, 8 : i32
    %32 = arith.index_cast %31 : i32 to index
    %c0_11 = arith.constant 0 : index
    %33 = vector.load %arg1[%32, %c0_11] : memref<64x128xf32, #tpu.memory_space<vmem>>, vector<8x128xf32>
    %cst_12 = arith.constant dense<0.000000e+00> : vector<8x128xf32>
    %34 = tpu.matmul %27, %3, %cst_12 {dimension_numbers = #tpu.dot_dimension_numbers<[1], [0], [0], [1], [0, 0, 1, 1], [], []>} : vector<8x32xf32>, vector<32x128xf32>, vector<8x128xf32> -> vector<8x128xf32>
    %35 = arith.addf %33, %34 : vector<8x128xf32>
    %36 = vector.extract_strided_slice %35 {offsets = [0, 0], sizes = [8, 96], strides = [1, 1]} : vector<8x128xf32> to vector<8x96xf32>
    %37 = arith.negf %36 : vector<8x96xf32>
    %38 = math.exp %37 : vector<8x96xf32>
    %cst_13 = arith.constant 1.000000e+00 : f32
    %39 = vector.broadcast %cst_13 : f32 to vector<8x96xf32>
    %40 = arith.addf %39, %38 : vector<8x96xf32>
    %41 = arith.divf %39, %40 : vector<8x96xf32>
    %42 = vector.extract_strided_slice %35 {offsets = [0, 96], sizes = [8, 32], strides = [1, 1]} : vector<8x128xf32> to vector<8x32xf32>
    %43 = math.tanh %42 : vector<8x32xf32>
    %44 = vector.extract_strided_slice %41 {offsets = [0, 32], sizes = [8, 32], strides = [1, 1]} : vector<8x96xf32> to vector<8x32xf32>
    %45 = arith.mulf %44, %24 : vector<8x32xf32>
    %46 = vector.extract_strided_slice %41 {offsets = [0, 0], sizes = [8, 32], strides = [1, 1]} : vector<8x96xf32> to vector<8x32xf32>
    %47 = arith.mulf %46, %43 : vector<8x32xf32>
    %48 = arith.addf %45, %47 : vector<8x32xf32>
    %49 = vector.extract_strided_slice %41 {offsets = [0, 64], sizes = [8, 32], strides = [1, 1]} : vector<8x96xf32> to vector<8x32xf32>
    %50 = math.tanh %48 : vector<8x32xf32>
    %51 = arith.mulf %49, %50 : vector<8x32xf32>
    %52 = arith.index_cast %31 : i32 to index
    %c0_14 = arith.constant 0 : index
    %53 = vector.load %arg8[%52, %c0_14] : memref<64x32xf32, #tpu.memory_space<vmem>>, vector<8x32xf32>
    tpu.vector_store %arg8[%52, %c0_14], %51 {strides = array<i32>} : memref<64x32xf32, #tpu.memory_space<vmem>>, vector<8x32xf32>,
    %c2_i32 = arith.constant 2 : i32
    %c8_i32_15 = arith.constant 8 : i32
    %54 = arith.muli %c2_i32, %c8_i32_15 : i32
    %55 = tpu.assume_multiple %54, 8 : i32
    %56 = arith.index_cast %55 : i32 to index
    %c0_16 = arith.constant 0 : index
    %57 = vector.load %arg1[%56, %c0_16] : memref<64x128xf32, #tpu.memory_space<vmem>>, vector<8x128xf32>
    %cst_17 = arith.constant dense<0.000000e+00> : vector<8x128xf32>
    %58 = tpu.matmul %51, %3, %cst_17 {dimension_numbers = #tpu.dot_dimension_numbers<[1], [0], [0], [1], [0, 0, 1, 1], [], []>} : vector<8x32xf32>, vector<32x128xf32>, vector<8x128xf32> -> vector<8x128xf32>
    %59 = arith.addf %57, %58 : vector<8x128xf32>
    %60 = vector.extract_strided_slice %59 {offsets = [0, 0], sizes = [8, 96], strides = [1, 1]} : vector<8x128xf32> to vector<8x96xf32>
    %61 = arith.negf %60 : vector<8x96xf32>
    %62 = math.exp %61 : vector<8x96xf32>
    %cst_18 = arith.constant 1.000000e+00 : f32
    %63 = vector.broadcast %cst_18 : f32 to vector<8x96xf32>
    %64 = arith.addf %63, %62 : vector<8x96xf32>
    %65 = arith.divf %63, %64 : vector<8x96xf32>
    %66 = vector.extract_strided_slice %59 {offsets = [0, 96], sizes = [8, 32], strides = [1, 1]} : vector<8x128xf32> to vector<8x32xf32>
    %67 = math.tanh %66 : vector<8x32xf32>
    %68 = vector.extract_strided_slice %65 {offsets = [0, 32], sizes = [8, 32], strides = [1, 1]} : vector<8x96xf32> to vector<8x32xf32>
    %69 = arith.mulf %68, %48 : vector<8x32xf32>
    %70 = vector.extract_strided_slice %65 {offsets = [0, 0], sizes = [8, 32], strides = [1, 1]} : vector<8x96xf32> to vector<8x32xf32>
    %71 = arith.mulf %70, %67 : vector<8x32xf32>
    %72 = arith.addf %69, %71 : vector<8x32xf32>
    %73 = vector.extract_strided_slice %65 {offsets = [0, 64], sizes = [8, 32], strides = [1, 1]} : vector<8x96xf32> to vector<8x32xf32>
    %74 = math.tanh %72 : vector<8x32xf32>
    %75 = arith.mulf %73, %74 : vector<8x32xf32>
    %76 = arith.index_cast %55 : i32 to index
    %c0_19 = arith.constant 0 : index
    %77 = vector.load %arg8[%76, %c0_19] : memref<64x32xf32, #tpu.memory_space<vmem>>, vector<8x32xf32>
    tpu.vector_store %arg8[%76, %c0_19], %75 {strides = array<i32>} : memref<64x32xf32, #tpu.memory_space<vmem>>, vector<8x32xf32>,
    %c3_i32 = arith.constant 3 : i32
    %c8_i32_20 = arith.constant 8 : i32
    %78 = arith.muli %c3_i32, %c8_i32_20 : i32
    %79 = tpu.assume_multiple %78, 8 : i32
    %80 = arith.index_cast %79 : i32 to index
    %c0_21 = arith.constant 0 : index
    %81 = vector.load %arg1[%80, %c0_21] : memref<64x128xf32, #tpu.memory_space<vmem>>, vector<8x128xf32>
    %cst_22 = arith.constant dense<0.000000e+00> : vector<8x128xf32>
    %82 = tpu.matmul %75, %3, %cst_22 {dimension_numbers = #tpu.dot_dimension_numbers<[1], [0], [0], [1], [0, 0, 1, 1], [], []>} : vector<8x32xf32>, vector<32x128xf32>, vector<8x128xf32> -> vector<8x128xf32>
    %83 = arith.addf %81, %82 : vector<8x128xf32>
    %84 = vector.extract_strided_slice %83 {offsets = [0, 0], sizes = [8, 96], strides = [1, 1]} : vector<8x128xf32> to vector<8x96xf32>
    %85 = arith.negf %84 : vector<8x96xf32>
    %86 = math.exp %85 : vector<8x96xf32>
    %cst_23 = arith.constant 1.000000e+00 : f32
    %87 = vector.broadcast %cst_23 : f32 to vector<8x96xf32>
    %88 = arith.addf %87, %86 : vector<8x96xf32>
    %89 = arith.divf %87, %88 : vector<8x96xf32>
    %90 = vector.extract_strided_slice %83 {offsets = [0, 96], sizes = [8, 32], strides = [1, 1]} : vector<8x128xf32> to vector<8x32xf32>
    %91 = math.tanh %90 : vector<8x32xf32>
    %92 = vector.extract_strided_slice %89 {offsets = [0, 32], sizes = [8, 32], strides = [1, 1]} : vector<8x96xf32> to vector<8x32xf32>
    %93 = arith.mulf %92, %72 : vector<8x32xf32>
    %94 = vector.extract_strided_slice %89 {offsets = [0, 0], sizes = [8, 32], strides = [1, 1]} : vector<8x96xf32> to vector<8x32xf32>
    %95 = arith.mulf %94, %91 : vector<8x32xf32>
    %96 = arith.addf %93, %95 : vector<8x32xf32>
    %97 = vector.extract_strided_slice %89 {offsets = [0, 64], sizes = [8, 32], strides = [1, 1]} : vector<8x96xf32> to vector<8x32xf32>
    %98 = math.tanh %96 : vector<8x32xf32>
    %99 = arith.mulf %97, %98 : vector<8x32xf32>
    %100 = arith.index_cast %79 : i32 to index
    %c0_24 = arith.constant 0 : index
    %101 = vector.load %arg8[%100, %c0_24] : memref<64x32xf32, #tpu.memory_space<vmem>>, vector<8x32xf32>
    tpu.vector_store %arg8[%100, %c0_24], %99 {strides = array<i32>} : memref<64x32xf32, #tpu.memory_space<vmem>>, vector<8x32xf32>,
    %c4_i32 = arith.constant 4 : i32
    %c8_i32_25 = arith.constant 8 : i32
    %102 = arith.muli %c4_i32, %c8_i32_25 : i32
    %103 = tpu.assume_multiple %102, 8 : i32
    %104 = arith.index_cast %103 : i32 to index
    %c0_26 = arith.constant 0 : index
    %105 = vector.load %arg1[%104, %c0_26] : memref<64x128xf32, #tpu.memory_space<vmem>>, vector<8x128xf32>
    %cst_27 = arith.constant dense<0.000000e+00> : vector<8x128xf32>
    %106 = tpu.matmul %99, %3, %cst_27 {dimension_numbers = #tpu.dot_dimension_numbers<[1], [0], [0], [1], [0, 0, 1, 1], [], []>} : vector<8x32xf32>, vector<32x128xf32>, vector<8x128xf32> -> vector<8x128xf32>
    %107 = arith.addf %105, %106 : vector<8x128xf32>
    %108 = vector.extract_strided_slice %107 {offsets = [0, 0], sizes = [8, 96], strides = [1, 1]} : vector<8x128xf32> to vector<8x96xf32>
    %109 = arith.negf %108 : vector<8x96xf32>
    %110 = math.exp %109 : vector<8x96xf32>
    %cst_28 = arith.constant 1.000000e+00 : f32
    %111 = vector.broadcast %cst_28 : f32 to vector<8x96xf32>
    %112 = arith.addf %111, %110 : vector<8x96xf32>
    %113 = arith.divf %111, %112 : vector<8x96xf32>
    %114 = vector.extract_strided_slice %107 {offsets = [0, 96], sizes = [8, 32], strides = [1, 1]} : vector<8x128xf32> to vector<8x32xf32>
    %115 = math.tanh %114 : vector<8x32xf32>
    %116 = vector.extract_strided_slice %113 {offsets = [0, 32], sizes = [8, 32], strides = [1, 1]} : vector<8x96xf32> to vector<8x32xf32>
    %117 = arith.mulf %116, %96 : vector<8x32xf32>
    %118 = vector.extract_strided_slice %113 {offsets = [0, 0], sizes = [8, 32], strides = [1, 1]} : vector<8x96xf32> to vector<8x32xf32>
    %119 = arith.mulf %118, %115 : vector<8x32xf32>
    %120 = arith.addf %117, %119 : vector<8x32xf32>
    %121 = vector.extract_strided_slice %113 {offsets = [0, 64], sizes = [8, 32], strides = [1, 1]} : vector<8x96xf32> to vector<8x32xf32>
    %122 = math.tanh %120 : vector<8x32xf32>
    %123 = arith.mulf %121, %122 : vector<8x32xf32>
    %124 = arith.index_cast %103 : i32 to index
    %c0_29 = arith.constant 0 : index
    %125 = vector.load %arg8[%124, %c0_29] : memref<64x32xf32, #tpu.memory_space<vmem>>, vector<8x32xf32>
    tpu.vector_store %arg8[%124, %c0_29], %123 {strides = array<i32>} : memref<64x32xf32, #tpu.memory_space<vmem>>, vector<8x32xf32>,
    %c5_i32 = arith.constant 5 : i32
    %c8_i32_30 = arith.constant 8 : i32
    %126 = arith.muli %c5_i32, %c8_i32_30 : i32
    %127 = tpu.assume_multiple %126, 8 : i32
    %128 = arith.index_cast %127 : i32 to index
    %c0_31 = arith.constant 0 : index
    %129 = vector.load %arg1[%128, %c0_31] : memref<64x128xf32, #tpu.memory_space<vmem>>, vector<8x128xf32>
    %cst_32 = arith.constant dense<0.000000e+00> : vector<8x128xf32>
    %130 = tpu.matmul %123, %3, %cst_32 {dimension_numbers = #tpu.dot_dimension_numbers<[1], [0], [0], [1], [0, 0, 1, 1], [], []>} : vector<8x32xf32>, vector<32x128xf32>, vector<8x128xf32> -> vector<8x128xf32>
    %131 = arith.addf %129, %130 : vector<8x128xf32>
    %132 = vector.extract_strided_slice %131 {offsets = [0, 0], sizes = [8, 96], strides = [1, 1]} : vector<8x128xf32> to vector<8x96xf32>
    %133 = arith.negf %132 : vector<8x96xf32>
    %134 = math.exp %133 : vector<8x96xf32>
    %cst_33 = arith.constant 1.000000e+00 : f32
    %135 = vector.broadcast %cst_33 : f32 to vector<8x96xf32>
    %136 = arith.addf %135, %134 : vector<8x96xf32>
    %137 = arith.divf %135, %136 : vector<8x96xf32>
    %138 = vector.extract_strided_slice %131 {offsets = [0, 96], sizes = [8, 32], strides = [1, 1]} : vector<8x128xf32> to vector<8x32xf32>
    %139 = math.tanh %138 : vector<8x32xf32>
    %140 = vector.extract_strided_slice %137 {offsets = [0, 32], sizes = [8, 32], strides = [1, 1]} : vector<8x96xf32> to vector<8x32xf32>
    %141 = arith.mulf %140, %120 : vector<8x32xf32>
    %142 = vector.extract_strided_slice %137 {offsets = [0, 0], sizes = [8, 32], strides = [1, 1]} : vector<8x96xf32> to vector<8x32xf32>
    %143 = arith.mulf %142, %139 : vector<8x32xf32>
    %144 = arith.addf %141, %143 : vector<8x32xf32>
    %145 = vector.extract_strided_slice %137 {offsets = [0, 64], sizes = [8, 32], strides = [1, 1]} : vector<8x96xf32> to vector<8x32xf32>
    %146 = math.tanh %144 : vector<8x32xf32>
    %147 = arith.mulf %145, %146 : vector<8x32xf32>
    %148 = arith.index_cast %127 : i32 to index
    %c0_34 = arith.constant 0 : index
    %149 = vector.load %arg8[%148, %c0_34] : memref<64x32xf32, #tpu.memory_space<vmem>>, vector<8x32xf32>
    tpu.vector_store %arg8[%148, %c0_34], %147 {strides = array<i32>} : memref<64x32xf32, #tpu.memory_space<vmem>>, vector<8x32xf32>,
    %c6_i32 = arith.constant 6 : i32
    %c8_i32_35 = arith.constant 8 : i32
    %150 = arith.muli %c6_i32, %c8_i32_35 : i32
    %151 = tpu.assume_multiple %150, 8 : i32
    %152 = arith.index_cast %151 : i32 to index
    %c0_36 = arith.constant 0 : index
    %153 = vector.load %arg1[%152, %c0_36] : memref<64x128xf32, #tpu.memory_space<vmem>>, vector<8x128xf32>
    %cst_37 = arith.constant dense<0.000000e+00> : vector<8x128xf32>
    %154 = tpu.matmul %147, %3, %cst_37 {dimension_numbers = #tpu.dot_dimension_numbers<[1], [0], [0], [1], [0, 0, 1, 1], [], []>} : vector<8x32xf32>, vector<32x128xf32>, vector<8x128xf32> -> vector<8x128xf32>
    %155 = arith.addf %153, %154 : vector<8x128xf32>
    %156 = vector.extract_strided_slice %155 {offsets = [0, 0], sizes = [8, 96], strides = [1, 1]} : vector<8x128xf32> to vector<8x96xf32>
    %157 = arith.negf %156 : vector<8x96xf32>
    %158 = math.exp %157 : vector<8x96xf32>
    %cst_38 = arith.constant 1.000000e+00 : f32
    %159 = vector.broadcast %cst_38 : f32 to vector<8x96xf32>
    %160 = arith.addf %159, %158 : vector<8x96xf32>
    %161 = arith.divf %159, %160 : vector<8x96xf32>
    %162 = vector.extract_strided_slice %155 {offsets = [0, 96], sizes = [8, 32], strides = [1, 1]} : vector<8x128xf32> to vector<8x32xf32>
    %163 = math.tanh %162 : vector<8x32xf32>
    %164 = vector.extract_strided_slice %161 {offsets = [0, 32], sizes = [8, 32], strides = [1, 1]} : vector<8x96xf32> to vector<8x32xf32>
    %165 = arith.mulf %164, %144 : vector<8x32xf32>
    %166 = vector.extract_strided_slice %161 {offsets = [0, 0], sizes = [8, 32], strides = [1, 1]} : vector<8x96xf32> to vector<8x32xf32>
    %167 = arith.mulf %166, %163 : vector<8x32xf32>
    %168 = arith.addf %165, %167 : vector<8x32xf32>
    %169 = vector.extract_strided_slice %161 {offsets = [0, 64], sizes = [8, 32], strides = [1, 1]} : vector<8x96xf32> to vector<8x32xf32>
    %170 = math.tanh %168 : vector<8x32xf32>
    %171 = arith.mulf %169, %170 : vector<8x32xf32>
    %172 = arith.index_cast %151 : i32 to index
    %c0_39 = arith.constant 0 : index
    %173 = vector.load %arg8[%172, %c0_39] : memref<64x32xf32, #tpu.memory_space<vmem>>, vector<8x32xf32>
    tpu.vector_store %arg8[%172, %c0_39], %171 {strides = array<i32>} : memref<64x32xf32, #tpu.memory_space<vmem>>, vector<8x32xf32>,
    %c7_i32 = arith.constant 7 : i32
    %c8_i32_40 = arith.constant 8 : i32
    %174 = arith.muli %c7_i32, %c8_i32_40 : i32
    %175 = tpu.assume_multiple %174, 8 : i32
    %176 = arith.index_cast %175 : i32 to index
    %c0_41 = arith.constant 0 : index
    %177 = vector.load %arg1[%176, %c0_41] : memref<64x128xf32, #tpu.memory_space<vmem>>, vector<8x128xf32>
    %cst_42 = arith.constant dense<0.000000e+00> : vector<8x128xf32>
    %178 = tpu.matmul %171, %3, %cst_42 {dimension_numbers = #tpu.dot_dimension_numbers<[1], [0], [0], [1], [0, 0, 1, 1], [], []>} : vector<8x32xf32>, vector<32x128xf32>, vector<8x128xf32> -> vector<8x128xf32>
    %179 = arith.addf %177, %178 : vector<8x128xf32>
    %180 = vector.extract_strided_slice %179 {offsets = [0, 0], sizes = [8, 96], strides = [1, 1]} : vector<8x128xf32> to vector<8x96xf32>
    %181 = arith.negf %180 : vector<8x96xf32>
    %182 = math.exp %181 : vector<8x96xf32>
    %cst_43 = arith.constant 1.000000e+00 : f32
    %183 = vector.broadcast %cst_43 : f32 to vector<8x96xf32>
    %184 = arith.addf %183, %182 : vector<8x96xf32>
    %185 = arith.divf %183, %184 : vector<8x96xf32>
    %186 = vector.extract_strided_slice %179 {offsets = [0, 96], sizes = [8, 32], strides = [1, 1]} : vector<8x128xf32> to vector<8x32xf32>
    %187 = math.tanh %186 : vector<8x32xf32>
    %188 = vector.extract_strided_slice %185 {offsets = [0, 32], sizes = [8, 32], strides = [1, 1]} : vector<8x96xf32> to vector<8x32xf32>
    %189 = arith.mulf %188, %168 : vector<8x32xf32>
    %190 = vector.extract_strided_slice %185 {offsets = [0, 0], sizes = [8, 32], strides = [1, 1]} : vector<8x96xf32> to vector<8x32xf32>
    %191 = arith.mulf %190, %187 : vector<8x32xf32>
    %192 = arith.addf %189, %191 : vector<8x32xf32>
    %193 = vector.extract_strided_slice %185 {offsets = [0, 64], sizes = [8, 32], strides = [1, 1]} : vector<8x96xf32> to vector<8x32xf32>
    %194 = math.tanh %192 : vector<8x32xf32>
    %195 = arith.mulf %193, %194 : vector<8x32xf32>
    %196 = arith.index_cast %175 : i32 to index
    %c0_44 = arith.constant 0 : index
    %197 = vector.load %arg8[%196, %c0_44] : memref<64x32xf32, #tpu.memory_space<vmem>>, vector<8x32xf32>
    tpu.vector_store %arg8[%196, %c0_44], %195 {strides = array<i32>} : memref<64x32xf32, #tpu.memory_space<vmem>>, vector<8x32xf32>,
    %c8_i32_45 = arith.constant 8 : i32
    %c0_46 = arith.constant 0 : index
    %c0_47 = arith.constant 0 : index
    %198 = vector.load %arg6[%c0_46, %c0_47] : memref<8x32xf32, #tpu.memory_space<vmem>>, vector<8x32xf32>
    tpu.vector_store %arg6[%c0_46, %c0_47], %195 {strides = array<i32>} : memref<8x32xf32, #tpu.memory_space<vmem>>, vector<8x32xf32>,
    %c0_48 = arith.constant 0 : index
    %c0_49 = arith.constant 0 : index
    %199 = vector.load %arg7[%c0_48, %c0_49] : memref<8x32xf32, #tpu.memory_space<vmem>>, vector<8x32xf32>
    tpu.vector_store %arg7[%c0_48, %c0_49], %192 {strides = array<i32>} : memref<8x32xf32, #tpu.memory_space<vmem>>, vector<8x32xf32>,
    %c0_50 = arith.constant 0 : index
    %c0_51 = arith.constant 0 : index
    %200 = vector.load %arg8[%c0_50, %c0_51] : memref<64x32xf32, #tpu.memory_space<vmem>>, vector<64x32xf32>
    %c0_52 = arith.constant 0 : index
    %c0_53 = arith.constant 0 : index
    %201 = vector.load %arg3[%c0_52, %c0_53] : memref<32x128xf32, #tpu.memory_space<vmem>>, vector<32x128xf32>
    %cst_54 = arith.constant dense<0.000000e+00> : vector<64x128xf32>
    %202 = tpu.matmul %200, %201, %cst_54 {dimension_numbers = #tpu.dot_dimension_numbers<[1], [0], [0], [1], [0, 0, 1, 1], [], []>} : vector<64x32xf32>, vector<32x128xf32>, vector<64x128xf32> -> vector<64x128xf32>
    %c0_55 = arith.constant 0 : index
    %c0_56 = arith.constant 0 : index
    %203 = vector.load %arg4[%c0_55, %c0_56] : memref<1x128xf32, #tpu.memory_space<vmem>>, vector<1x128xf32>
    %204 = vector.broadcast %203 : vector<1x128xf32> to vector<64x128xf32>
    %205 = arith.addf %202, %204 : vector<64x128xf32>
    %c0_57 = arith.constant 0 : index
    %c0_58 = arith.constant 0 : index
    %206 = vector.load %arg5[%c0_57, %c0_58] : memref<64x128xf32, #tpu.memory_space<vmem>>, vector<64x128xf32>
    tpu.vector_store %arg5[%c0_57, %c0_58], %205 {strides = array<i32>} : memref<64x128xf32, #tpu.memory_space<vmem>>, vector<64x128xf32>,
    return
  }
  func.func @transform_0(%arg0: i32) -> (i32, i32) {
    %c0_i32 = arith.constant 0 : i32
    %c0_i32_0 = arith.constant 0 : i32
    return %arg0, %c0_i32 : i32, i32
  }
  func.func @transform_1(%arg0: i32) -> (i32, i32) {
    %c0_i32 = arith.constant 0 : i32
    %c0_i32_0 = arith.constant 0 : i32
    %c0_i32_1 = arith.constant 0 : i32
    return %c0_i32, %c0_i32_0 : i32, i32
  }
  func.func @transform_2(%arg0: i32) -> (i32, i32) {
    %c0_i32 = arith.constant 0 : i32
    %c0_i32_0 = arith.constant 0 : i32
    %c0_i32_1 = arith.constant 0 : i32
    return %c0_i32, %c0_i32_0 : i32, i32
  }
  func.func @transform_3(%arg0: i32) -> (i32, i32) {
    %c0_i32 = arith.constant 0 : i32
    %c0_i32_0 = arith.constant 0 : i32
    %c0_i32_1 = arith.constant 0 : i32
    return %c0_i32, %c0_i32_0 : i32, i32
  }
  func.func @transform_4(%arg0: i32) -> (i32, i32) {
    %c0_i32 = arith.constant 0 : i32
    %c0_i32_0 = arith.constant 0 : i32
    return %arg0, %c0_i32 : i32, i32
  }
}

</mosaic_0001>

<llo_original>
// kernel: forward.4
$region0: #{forward.4}
  #allocation0 [shape = 'u32[]', space=smem, size = 0x4, offset = 0x4, fixed_abs, tag = 'smem constant byte address 0x4 - core index']
  #allocation1 [shape = 'u32[144,128]{1,0:T(1,128)}', space=vmem, size = 0x12000, scoped, tag = 'internal scratch']
  %s0 = inlined_call_operand.vmem [shape: f32[64,16], index: 0, kind: input, shape index: {}]
  %s1 = inlined_call_operand.vmem [shape: f32[16,128], index: 1, kind: input, shape index: {}]
  %s2 = inlined_call_operand.vmem [shape: f32[1,128], index: 2, kind: input, shape index: {}]
  %s3 = inlined_call_operand.vmem [shape: f32[64,128], index: 3, kind: output, shape index: {}]
  %s4 = sld [smem:[#allocation0]]
  $region22: #{forward.4} parent=0
    _
  %s6 = ssub.s32 1, %s4
  %s7 = scalar_select 0, %s6, %s4
  // Predicated region
  $region2: #{forward.4} parent=0 // pred_check
    _
  $region3: #{forward.4} parent=0 // pred_check_branch
    %9 = sbr.rel (0) target = $region5
  $region4: #{forward.4} parent=0 // pred_region
    _
  $region5: #{forward.4} parent=0 // pred_fallthru
    _
  // Predicated region
  $region6: #{forward.4} parent=0 // pred_check
    _
  $region7: #{forward.4} parent=0 // pred_check_branch
    %11 = sbr.rel (0) target = $region9
  $region8: #{forward.4} parent=0 // pred_region
    _
  $region9: #{forward.4} parent=0 // pred_fallthru
    _
  // Predicated region
  $region10: #{forward.4} parent=0 // pred_check
    _
  $region11: #{forward.4} parent=0 // pred_check_branch
    %13 = sbr.rel (0) target = $region13
  $region12: #{forward.4} parent=0 // pred_region
    _
  $region13: #{forward.4} parent=0 // pred_fallthru
    _
  %v14 = vld [vmem:[%s0] sm:$0xff]
  %v15 = vld [vmem:[%s0 + $0x8] sm:$0xff]
  %v16 = vld [vmem:[%s0 + $0x10] sm:$0xff]
  %v17 = vld [vmem:[%s0 + $0x18] sm:$0xff]
  %v18 = vld [vmem:[%s0 + $0x20] sm:$0xff]
  %v19 = vld [vmem:[%s0 + $0x28] sm:$0xff]
  %v20 = vld [vmem:[%s0 + $0x30] sm:$0xff]
  %v21 = vld [vmem:[%s0 + $0x38] sm:$0xff]
  %v22 = vld [vmem:[%s1] sm:$0xff]
  %v23 = vld [vmem:[%s1 + $0x8] sm:$0xff]
  %v24 = vld [vmem:[%s2] sm:$0x1]
  %v26 = vlaneseq
  %v27 = vshrl.u32 %v26, 7
  %v28 = vsub.s32 0, %v27
  %v29 = vrot.slane %v24, %v28
  %vm31 = vcmask 130048
  %v33 = vsel %vm31, %v14, 0
  %v36 = vsel %vm31, %v15, 0
  %v39 = vsel %vm31, %v16, 0
  %v42 = vsel %vm31, %v17, 0
  %v45 = vsel %vm31, %v18, 0
  %v48 = vsel %vm31, %v19, 0
  %v51 = vsel %vm31, %v20, 0
  %v54 = vsel %vm31, %v21, 0
  %56 = vmatprep.subr.mxu0 0.0
  %57 = vmatpush1.msra.mxu0 0.0
  %58 = vmatprep.subr.mxu0 0.0
  %59 = vmatpush1.msra.mxu0 0.0
  %60 = vmatprep.subr.mxu0 0.0
  %61 = vmatpush1.msra.mxu0 0.0
  %62 = vmatprep.subr.mxu0 0.0
  %63 = vmatpush1.msra.mxu0 0.0
  %64 = vmatprep.subr.mxu0 0.0
  %65 = vmatpush1.msra.mxu0 0.0
  %66 = vmatprep.subr.mxu0 0.0
  %67 = vmatpush1.msra.mxu0 0.0
  %68 = vmatprep.subr.mxu0 0.0
  %69 = vmatpush1.msra.mxu0 0.0
  %70 = vmatprep.subr.mxu0 0.0
  %71 = vmatpush1.msra.mxu0 0.0
  %72 = vmatprep.subr.mxu0 0.0
  %73 = vmatpush1.msra.mxu0 0.0
  %74 = vmatprep.subr.mxu0 0.0
  %75 = vmatpush1.msra.mxu0 0.0
  %76 = vmatprep.subr.mxu0 0.0
  %77 = vmatpush1.msra.mxu0 0.0
  %78 = vmatprep.subr.mxu0 0.0
  %79 = vmatpush1.msra.mxu0 0.0
  %80 = vmatprep.subr.mxu0 0.0
  %81 = vmatpush1.msra.mxu0 0.0
  %82 = vmatprep.subr.mxu0 0.0
  %83 = vmatpush1.msra.mxu0 0.0
  %84 = vmatprep.subr.mxu0 0.0
  %85 = vmatpush1.msra.mxu0 %v23
  %86 = vmatprep.subr.mxu0 0.0
  %87 = vmatpush1.msra.mxu0 %v22
  %88 = vmatprep.subr.mxu0 0.0
  %89 = vmatpush2.msra.mxu0 0.0
  %90 = vmatprep.subr.mxu0 0.0
  %91 = vmatpush2.msra.mxu0 0.0
  %92 = vmatprep.subr.mxu0 0.0
  %93 = vmatpush2.msra.mxu0 0.0
  %94 = vmatprep.subr.mxu0 0.0
  %95 = vmatpush2.msra.mxu0 0.0
  %96 = vmatprep.subr.mxu0 0.0
  %97 = vmatpush2.msra.mxu0 0.0
  %98 = vmatprep.subr.mxu0 0.0
  %99 = vmatpush2.msra.mxu0 0.0
  %100 = vmatprep.subr.mxu0 0.0
  %101 = vmatpush2.msra.mxu0 0.0
  %102 = vmatprep.subr.mxu0 0.0
  %103 = vmatpush2.msra.mxu0 0.0
  %104 = vmatprep.subr.mxu0 0.0
  %105 = vmatpush2.msra.mxu0 0.0
  %106 = vmatprep.subr.mxu0 0.0
  %107 = vmatpush2.msra.mxu0 0.0
  %108 = vmatprep.subr.mxu0 0.0
  %109 = vmatpush2.msra.mxu0 0.0
  %110 = vmatprep.subr.mxu0 0.0
  %111 = vmatpush2.msra.mxu0 0.0
  %112 = vmatprep.subr.mxu0 0.0
  %113 = vmatpush2.msra.mxu0 0.0
  %114 = vmatprep.subr.mxu0 0.0
  %115 = vmatpush2.msra.mxu0 0.0
  %116 = vmatprep.subr.mxu0 0.0
  %117 = vmatpush2.msra.mxu0 0.0
  %118 = vmatprep.subr.mxu0 0.0
  %119 = vmatpush2.msra.mxu0 0.0
  %120 = vmatprep.mubr.f32.mxu0 0.0
  %121 = vmatmul.mubr.f32.gmra.mxu0 %v33
  %v122 = vpop.f32.mrf.mxu0
  %v123 = vadd.f32 %v29, %v122
  %v124 = vpop.f32.mrf.mxu0
  %125 = vmatprep.mubr.f32.mxu0 0.0
  %126 = vmatmul.mubr.f32.gmra.mxu0 %v36
  %v127 = vpop.f32.mrf.mxu0
  %v128 = vadd.f32 %v29, %v127
  %v129 = vpop.f32.mrf.mxu0
  %130 = vmatprep.mubr.f32.mxu0 0.0
  %131 = vmatmul.mubr.f32.gmra.mxu0 %v39
  %v132 = vpop.f32.mrf.mxu0
  %v133 = vadd.f32 %v29, %v132
  %v134 = vpop.f32.mrf.mxu0
  %135 = vmatprep.mubr.f32.mxu0 0.0
  %136 = vmatmul.mubr.f32.gmra.mxu0 %v42
  %v137 = vpop.f32.mrf.mxu0
  %v138 = vadd.f32 %v29, %v137
  %v139 = vpop.f32.mrf.mxu0
  %140 = vmatprep.mubr.f32.mxu0 0.0
  %141 = vmatmul.mubr.f32.gmra.mxu0 %v45
  %v142 = vpop.f32.mrf.mxu0
  %v143 = vadd.f32 %v29, %v142
  %v144 = vpop.f32.mrf.mxu0
  %145 = vmatprep.mubr.f32.mxu0 0.0
  %146 = vmatmul.mubr.f32.gmra.mxu0 %v48
  %v147 = vpop.f32.mrf.mxu0
  %v148 = vadd.f32 %v29, %v147
  %v149 = vpop.f32.mrf.mxu0
  %150 = vmatprep.mubr.f32.mxu0 0.0
  %151 = vmatmul.mubr.f32.gmra.mxu0 %v51
  %v152 = vpop.f32.mrf.mxu0
  %v153 = vadd.f32 %v29, %v152
  %v154 = vpop.f32.mrf.mxu0
  %155 = vmatprep.mubr.f32.mxu0 0.0
  %156 = vmatmul.mubr.f32.gmra.mxu0 %v54
  %v157 = vpop.f32.mrf.mxu0
  %v158 = vadd.f32 %v29, %v157
  %v159 = vpop.f32.mrf.mxu0
  %160 = vdwg.mxu0
  %161 = vst [vmem:[%s3] sm:$0xff] %v123
  %162 = vst [vmem:[%s3 + $0x8] sm:$0xff] %v128
  %163 = vst [vmem:[%s3 + $0x10] sm:$0xff] %v133
  %164 = vst [vmem:[%s3 + $0x18] sm:$0xff] %v138
  %165 = vst [vmem:[%s3 + $0x20] sm:$0xff] %v143
  %166 = vst [vmem:[%s3 + $0x28] sm:$0xff] %v148
  %167 = vst [vmem:[%s3 + $0x30] sm:$0xff] %v153
  %168 = vst [vmem:[%s3 + $0x38] sm:$0xff] %v158
  // Predicated region
  $region14: #{forward.4} parent=0 // pred_check
    _
  $region15: #{forward.4} parent=0 // pred_check_branch
    %170 = sbr.rel (0) target = $region17
  $region16: #{forward.4} parent=0 // pred_region
    _
  $region17: #{forward.4} parent=0 // pred_fallthru
    _
  // Predicated region
  $region18: #{forward.4} parent=0 // pred_check
    _
  $region19: #{forward.4} parent=0 // pred_check_branch
    %172 = sbr.rel (0) target = $region21
  $region20: #{forward.4} parent=0 // pred_region
    _
  $region21: #{forward.4} parent=0 // pred_fallthru
    _

// kernel: forward.6
$region0: #{forward.6}
  #allocation0 [shape = 'u32[]', space=smem, size = 0x4, offset = 0x4, fixed_abs, tag = 'smem constant byte address 0x4 - core index']
  #allocation1 [shape = 'u32[144,128]{1,0:T(1,128)}', space=vmem, size = 0x12000, scoped, tag = 'internal scratch']
  %s0 = inlined_call_operand.vmem [shape: f32[64,32], index: 0, kind: input, shape index: {}]
  %s1 = inlined_call_operand.vmem [shape: f32[32,128], index: 1, kind: input, shape index: {}]
  %s2 = inlined_call_operand.vmem [shape: f32[1,128], index: 2, kind: input, shape index: {}]
  %s3 = inlined_call_operand.vmem [shape: f32[64,128], index: 3, kind: output, shape index: {}]
  %s4 = sld [smem:[#allocation0]]
  $region22: #{forward.6} parent=0
    _
  %s6 = ssub.s32 1, %s4
  %s7 = scalar_select 0, %s6, %s4
  // Predicated region
  $region2: #{forward.6} parent=0 // pred_check
    _
  $region3: #{forward.6} parent=0 // pred_check_branch
    %9 = sbr.rel (0) target = $region5
  $region4: #{forward.6} parent=0 // pred_region
    _
  $region5: #{forward.6} parent=0 // pred_fallthru
    _
  // Predicated region
  $region6: #{forward.6} parent=0 // pred_check
    _
  $region7: #{forward.6} parent=0 // pred_check_branch
    %11 = sbr.rel (0) target = $region9
  $region8: #{forward.6} parent=0 // pred_region
    _
  $region9: #{forward.6} parent=0 // pred_fallthru
    _
  // Predicated region
  $region10: #{forward.6} parent=0 // pred_check
    _
  $region11: #{forward.6} parent=0 // pred_check_branch
    %13 = sbr.rel (0) target = $region13
  $region12: #{forward.6} parent=0 // pred_region
    _
  $region13: #{forward.6} parent=0 // pred_fallthru
    _
  %v14 = vld [vmem:[%s0] sm:$0xff]
  %v15 = vld [vmem:[%s0 + $0x8] sm:$0xff]
  %v16 = vld [vmem:[%s0 + $0x10] sm:$0xff]
  %v17 = vld [vmem:[%s0 + $0x18] sm:$0xff]
  %v18 = vld [vmem:[%s0 + $0x20] sm:$0xff]
  %v19 = vld [vmem:[%s0 + $0x28] sm:$0xff]
  %v20 = vld [vmem:[%s0 + $0x30] sm:$0xff]
  %v21 = vld [vmem:[%s0 + $0x38] sm:$0xff]
  %v22 = vld [vmem:[%s1] sm:$0xff]
  %v23 = vld [vmem:[%s1 + $0x8] sm:$0xff]
  %v24 = vld [vmem:[%s1 + $0x10] sm:$0xff]
  %v25 = vld [vmem:[%s1 + $0x18] sm:$0xff]
  %v26 = vld [vmem:[%s2] sm:$0x1]
  %v28 = vlaneseq
  %v29 = vshrl.u32 %v28, 7
  %v30 = vsub.s32 0, %v29
  %v31 = vrot.slane %v26, %v30
  %vm33 = vcmask 261120
  %v35 = vsel %vm33, %v14, 0
  %v38 = vsel %vm33, %v15, 0
  %v41 = vsel %vm33, %v16, 0
  %v44 = vsel %vm33, %v17, 0
  %v47 = vsel %vm33, %v18, 0
  %v50 = vsel %vm33, %v19, 0
  %v53 = vsel %vm33, %v20, 0
  %v56 = vsel %vm33, %v21, 0
  %58 = vmatprep.subr.mxu0 0.0
  %59 = vmatpush1.msra.mxu0 0.0
  %60 = vmatprep.subr.mxu0 0.0
  %61 = vmatpush1.msra.mxu0 0.0
  %62 = vmatprep.subr.mxu0 0.0
  %63 = vmatpush1.msra.mxu0 0.0
  %64 = vmatprep.subr.mxu0 0.0
  %65 = vmatpush1.msra.mxu0 0.0
  %66 = vmatprep.subr.mxu0 0.0
  %67 = vmatpush1.msra.mxu0 0.0
  %68 = vmatprep.subr.mxu0 0.0
  %69 = vmatpush1.msra.mxu0 0.0
  %70 = vmatprep.subr.mxu0 0.0
  %71 = vmatpush1.msra.mxu0 0.0
  %72 = vmatprep.subr.mxu0 0.0
  %73 = vmatpush1.msra.mxu0 0.0
  %74 = vmatprep.subr.mxu0 0.0
  %75 = vmatpush1.msra.mxu0 0.0
  %76 = vmatprep.subr.mxu0 0.0
  %77 = vmatpush1.msra.mxu0 0.0
  %78 = vmatprep.subr.mxu0 0.0
  %79 = vmatpush1.msra.mxu0 0.0
  %80 = vmatprep.subr.mxu0 0.0
  %81 = vmatpush1.msra.mxu0 0.0
  %82 = vmatprep.subr.mxu0 0.0
  %83 = vmatpush1.msra.mxu0 %v25
  %84 = vmatprep.subr.mxu0 0.0
  %85 = vmatpush1.msra.mxu0 %v24
  %86 = vmatprep.subr.mxu0 0.0
  %87 = vmatpush1.msra.mxu0 %v23
  %88 = vmatprep.subr.mxu0 0.0
  %89 = vmatpush1.msra.mxu0 %v22
  %90 = vmatprep.subr.mxu0 0.0
  %91 = vmatpush2.msra.mxu0 0.0
  %92 = vmatprep.subr.mxu0 0.0
  %93 = vmatpush2.msra.mxu0 0.0
  %94 = vmatprep.subr.mxu0 0.0
  %95 = vmatpush2.msra.mxu0 0.0
  %96 = vmatprep.subr.mxu0 0.0
  %97 = vmatpush2.msra.mxu0 0.0
  %98 = vmatprep.subr.mxu0 0.0
  %99 = vmatpush2.msra.mxu0 0.0
  %100 = vmatprep.subr.mxu0 0.0
  %101 = vmatpush2.msra.mxu0 0.0
  %102 = vmatprep.subr.mxu0 0.0
  %103 = vmatpush2.msra.mxu0 0.0
  %104 = vmatprep.subr.mxu0 0.0
  %105 = vmatpush2.msra.mxu0 0.0
  %106 = vmatprep.subr.mxu0 0.0
  %107 = vmatpush2.msra.mxu0 0.0
  %108 = vmatprep.subr.mxu0 0.0
  %109 = vmatpush2.msra.mxu0 0.0
  %110 = vmatprep.subr.mxu0 0.0
  %111 = vmatpush2.msra.mxu0 0.0
  %112 = vmatprep.subr.mxu0 0.0
  %113 = vmatpush2.msra.mxu0 0.0
  %114 = vmatprep.subr.mxu0 0.0
  %115 = vmatpush2.msra.mxu0 0.0
  %116 = vmatprep.subr.mxu0 0.0
  %117 = vmatpush2.msra.mxu0 0.0
  %118 = vmatprep.subr.mxu0 0.0
  %119 = vmatpush2.msra.mxu0 0.0
  %120 = vmatprep.subr.mxu0 0.0
  %121 = vmatpush2.msra.mxu0 0.0
  %122 = vmatprep.mubr.f32.mxu0 0.0
  %123 = vmatmul.mubr.f32.gmra.mxu0 %v35
  %v124 = vpop.f32.mrf.mxu0
  %v125 = vadd.f32 %v31, %v124
  %v126 = vpop.f32.mrf.mxu0
  %127 = vmatprep.mubr.f32.mxu0 0.0
  %128 = vmatmul.mubr.f32.gmra.mxu0 %v38
  %v129 = vpop.f32.mrf.mxu0
  %v130 = vadd.f32 %v31, %v129
  %v131 = vpop.f32.mrf.mxu0
  %132 = vmatprep.mubr.f32.mxu0 0.0
  %133 = vmatmul.mubr.f32.gmra.mxu0 %v41
  %v134 = vpop.f32.mrf.mxu0
  %v135 = vadd.f32 %v31, %v134
  %v136 = vpop.f32.mrf.mxu0
  %137 = vmatprep.mubr.f32.mxu0 0.0
  %138 = vmatmul.mubr.f32.gmra.mxu0 %v44
  %v139 = vpop.f32.mrf.mxu0
  %v140 = vadd.f32 %v31, %v139
  %v141 = vpop.f32.mrf.mxu0
  %142 = vmatprep.mubr.f32.mxu0 0.0
  %143 = vmatmul.mubr.f32.gmra.mxu0 %v47
  %v144 = vpop.f32.mrf.mxu0
  %v145 = vadd.f32 %v31, %v144
  %v146 = vpop.f32.mrf.mxu0
  %147 = vmatprep.mubr.f32.mxu0 0.0
  %148 = vmatmul.mubr.f32.gmra.mxu0 %v50
  %v149 = vpop.f32.mrf.mxu0
  %v150 = vadd.f32 %v31, %v149
  %v151 = vpop.f32.mrf.mxu0
  %152 = vmatprep.mubr.f32.mxu0 0.0
  %153 = vmatmul.mubr.f32.gmra.mxu0 %v53
  %v154 = vpop.f32.mrf.mxu0
  %v155 = vadd.f32 %v31, %v154
  %v156 = vpop.f32.mrf.mxu0
  %157 = vmatprep.mubr.f32.mxu0 0.0
  %158 = vmatmul.mubr.f32.gmra.mxu0 %v56
  %v159 = vpop.f32.mrf.mxu0
  %v160 = vadd.f32 %v31, %v159
  %v161 = vpop.f32.mrf.mxu0
  %162 = vdwg.mxu0
  %163 = vst [vmem:[%s3] sm:$0xff] %v125
  %164 = vst [vmem:[%s3 + $0x8] sm:$0xff] %v130
  %165 = vst [vmem:[%s3 + $0x10] sm:$0xff] %v135
  %166 = vst [vmem:[%s3 + $0x18] sm:$0xff] %v140
  %167 = vst [vmem:[%s3 + $0x20] sm:$0xff] %v145
  %168 = vst [vmem:[%s3 + $0x28] sm:$0xff] %v150
  %169 = vst [vmem:[%s3 + $0x30] sm:$0xff] %v155
  %170 = vst [vmem:[%s3 + $0x38] sm:$0xff] %v160
  // Predicated region
  $region14: #{forward.6} parent=0 // pred_check
    _
  $region15: #{forward.6} parent=0 // pred_check_branch
    %172 = sbr.rel (0) target = $region17
  $region16: #{forward.6} parent=0 // pred_region
    _
  $region17: #{forward.6} parent=0 // pred_fallthru
    _
  // Predicated region
  $region18: #{forward.6} parent=0 // pred_check
    _
  $region19: #{forward.6} parent=0 // pred_check_branch
    %174 = sbr.rel (0) target = $region21
  $region20: #{forward.6} parent=0 // pred_region
    _
  $region21: #{forward.6} parent=0 // pred_fallthru
    _

// kernel: forward.5
$region0: #{forward.5}
  #allocation0 [shape = 'u32[]', space=smem, size = 0x4, offset = 0x4, fixed_abs, tag = 'smem constant byte address 0x4 - core index']
  #allocation1 [shape = 'u32[144,128]{1,0:T(1,128)}', space=vmem, size = 0x12000, scoped, tag = 'internal scratch']
  #allocation2 [shape = 'f32[8,32]{1,0:T(8,128)}', space=vmem, size = 0x1000, scoped, tag = 'scratch operand']
  #allocation3 [shape = 'f32[8,32]{1,0:T(8,128)}', space=vmem, size = 0x1000, scoped, tag = 'scratch operand']
  %s0 = inlined_call_operand.vmem [shape: f32[64,128], index: 0, kind: input, shape index: {}]
  %s1 = inlined_call_operand.vmem [shape: f32[32,128], index: 1, kind: input, shape index: {}]
  %s2 = inlined_call_operand.vmem [shape: f32[64,32], index: 2, kind: output, shape index: {}]
  %s3 = sld [smem:[#allocation0]]
  $region22: #{forward.5} parent=0
    _
  %s5 = ssub.s32 1, %s3
  %s6 = scalar_select 0, %s5, %s3
  // Predicated region
  $region2: #{forward.5} parent=0 // pred_check
    _
  $region3: #{forward.5} parent=0 // pred_check_branch
    %8 = sbr.rel (0) target = $region5
  $region4: #{forward.5} parent=0 // pred_region
    _
  $region5: #{forward.5} parent=0 // pred_fallthru
    _
  // Predicated region
  $region6: #{forward.5} parent=0 // pred_check
    _
  $region7: #{forward.5} parent=0 // pred_check_branch
    %10 = sbr.rel (0) target = $region9
  $region8: #{forward.5} parent=0 // pred_region
    _
  $region9: #{forward.5} parent=0 // pred_fallthru
    _
  %p11 = scmp.eq.s32.totalorder 0, 0
  // Predicated region
  $region10: #{forward.5} parent=0 // pred_check
    %p12 = pneg %p11
  $region11: #{forward.5} parent=0 // pred_check_branch
    %14 = sbr.rel (%p12) target = $region13
  $region12: #{forward.5} parent=0 // pred_region
    %vm15 = vcmask 261120
    %16 = vst.msk [vmem:[#allocation2] sm:$0xff] %vm15, 0.0
    %17 = vst.msk [vmem:[#allocation3] sm:$0xff] %vm15, 0.0
  $region13: #{forward.5} parent=0 // pred_fallthru
    _
  %v18 = vld [vmem:[%s1] sm:$0xff]
  %v19 = vld [vmem:[%s1 + $0x8] sm:$0xff]
  %v20 = vld [vmem:[%s1 + $0x10] sm:$0xff]
  %v21 = vld [vmem:[%s1 + $0x18] sm:$0xff]
  %v22 = vld [vmem:[#allocation2] sm:$0xff]
  %v23 = vld [vmem:[#allocation3] sm:$0xff]
  %v24 = vld [vmem:[%s0] sm:$0xff]
  %vm25 = vcmask 261120
  %v27 = vsel %vm25, %v22, 0
  %29 = vmatprep.subr.mxu0 0.0
  %30 = vmatpush1.msra.mxu0 0.0
  %31 = vmatprep.subr.mxu0 0.0
  %32 = vmatpush1.msra.mxu0 0.0
  %33 = vmatprep.subr.mxu0 0.0
  %34 = vmatpush1.msra.mxu0 0.0
  %35 = vmatprep.subr.mxu0 0.0
  %36 = vmatpush1.msra.mxu0 0.0
  %37 = vmatprep.subr.mxu0 0.0
  %38 = vmatpush1.msra.mxu0 0.0
  %39 = vmatprep.subr.mxu0 0.0
  %40 = vmatpush1.msra.mxu0 0.0
  %41 = vmatprep.subr.mxu0 0.0
  %42 = vmatpush1.msra.mxu0 0.0
  %43 = vmatprep.subr.mxu0 0.0
  %44 = vmatpush1.msra.mxu0 0.0
  %45 = vmatprep.subr.mxu0 0.0
  %46 = vmatpush1.msra.mxu0 0.0
  %47 = vmatprep.subr.mxu0 0.0
  %48 = vmatpush1.msra.mxu0 0.0
  %49 = vmatprep.subr.mxu0 0.0
  %50 = vmatpush1.msra.mxu0 0.0
  %51 = vmatprep.subr.mxu0 0.0
  %52 = vmatpush1.msra.mxu0 0.0
  %53 = vmatprep.subr.mxu0 0.0
  %54 = vmatpush1.msra.mxu0 %v21
  %55 = vmatprep.subr.mxu0 0.0
  %56 = vmatpush1.msra.mxu0 %v20
  %57 = vmatprep.subr.mxu0 0.0
  %58 = vmatpush1.msra.mxu0 %v19
  %59 = vmatprep.subr.mxu0 0.0
  %60 = vmatpush1.msra.mxu0 %v18
  %61 = vmatprep.subr.mxu0 0.0
  %62 = vmatpush2.msra.mxu0 0.0
  %63 = vmatprep.subr.mxu0 0.0
  %64 = vmatpush2.msra.mxu0 0.0
  %65 = vmatprep.subr.mxu0 0.0
  %66 = vmatpush2.msra.mxu0 0.0
  %67 = vmatprep.subr.mxu0 0.0
  %68 = vmatpush2.msra.mxu0 0.0
  %69 = vmatprep.subr.mxu0 0.0
  %70 = vmatpush2.msra.mxu0 0.0
  %71 = vmatprep.subr.mxu0 0.0
  %72 = vmatpush2.msra.mxu0 0.0
  %73 = vmatprep.subr.mxu0 0.0
  %74 = vmatpush2.msra.mxu0 0.0
  %75 = vmatprep.subr.mxu0 0.0
  %76 = vmatpush2.msra.mxu0 0.0
  %77 = vmatprep.subr.mxu0 0.0
  %78 = vmatpush2.msra.mxu0 0.0
  %79 = vmatprep.subr.mxu0 0.0
  %80 = vmatpush2.msra.mxu0 0.0
  %81 = vmatprep.subr.mxu0 0.0
  %82 = vmatpush2.msra.mxu0 0.0
  %83 = vmatprep.subr.mxu0 0.0
  %84 = vmatpush2.msra.mxu0 0.0
  %85 = vmatprep.subr.mxu0 0.0
  %86 = vmatpush2.msra.mxu0 0.0
  %87 = vmatprep.subr.mxu0 0.0
  %88 = vmatpush2.msra.mxu0 0.0
  %89 = vmatprep.subr.mxu0 0.0
  %90 = vmatpush2.msra.mxu0 0.0
  %91 = vmatprep.subr.mxu0 0.0
  %92 = vmatpush2.msra.mxu0 0.0
  %93 = vmatprep.mubr.f32.mxu0 0.0
  %94 = vmatmul.mubr.f32.gmra.mxu0 %v27
  %v95 = vpop.f32.mrf.mxu0
  %v96 = vadd.f32 0.0, %v95
  %v97 = vpop.f32.mrf.mxu0
  %98 = vdwg.mxu0
  %v99 = vadd.f32 %v24, %v96
  %v100 = vxor.u32 %v99, 2147483648
  %v101 = vmul.f32 %v100, 1.442695
  %v102 = vpow.pop %v101
  %v103 = vadd.f32 %v102, 1.0
  %v104 = vrcp.pop %v103
  %v105 = vmul.f32 1.0, %v104
  %v106 = vtanh.pop %v99
  %108 = vrot.lane.b32.xlu0 %v23, 32
  %v109 = vpop.permute.xlu0 %108
  %v111 = vmul.f32 %v105, %v109
  %113 = vrot.lane.b32.xlu0 %v106, 32
  %v114 = vpop.permute.xlu0 %113
  %v116 = vmul.f32 %v105, %v114
  %118 = vrot.lane.b32.xlu0 %v116, 32
  %v119 = vpop.permute.xlu0 %118
  %v121 = vadd.f32 %v111, %v119
  %v122 = vtanh.pop %v121
  %124 = vrot.lane.b32.xlu0 %v122, 32
  %v125 = vpop.permute.xlu0 %124
  %v127 = vmul.f32 %v105, %v125
  %129 = vrot.lane.b32.xlu0 %v127, 64
  %v130 = vpop.permute.xlu0 %129
  %132 = vst.msk [vmem:[%s2] sm:$0xff] %vm25, %v130
  %s133 = scalar_lea.vmem %s0, 8
  %v134 = vld [vmem:[%s133] sm:$0xff]
  %v135 = vsel %vm25, %v130, 0
  %137 = vmatprep.subr.mxu0 0.0
  %138 = vmatpush1.msra.mxu0 0.0
  %139 = vmatprep.subr.mxu0 0.0
  %140 = vmatpush1.msra.mxu0 0.0
  %141 = vmatprep.subr.mxu0 0.0
  %142 = vmatpush1.msra.mxu0 0.0
  %143 = vmatprep.subr.mxu0 0.0
  %144 = vmatpush1.msra.mxu0 0.0
  %145 = vmatprep.subr.mxu0 0.0
  %146 = vmatpush1.msra.mxu0 0.0
  %147 = vmatprep.subr.mxu0 0.0
  %148 = vmatpush1.msra.mxu0 0.0
  %149 = vmatprep.subr.mxu0 0.0
  %150 = vmatpush1.msra.mxu0 0.0
  %151 = vmatprep.subr.mxu0 0.0
  %152 = vmatpush1.msra.mxu0 0.0
  %153 = vmatprep.subr.mxu0 0.0
  %154 = vmatpush1.msra.mxu0 0.0
  %155 = vmatprep.subr.mxu0 0.0
  %156 = vmatpush1.msra.mxu0 0.0
  %157 = vmatprep.subr.mxu0 0.0
  %158 = vmatpush1.msra.mxu0 0.0
  %159 = vmatprep.subr.mxu0 0.0
  %160 = vmatpush1.msra.mxu0 0.0
  %161 = vmatprep.subr.mxu0 0.0
  %162 = vmatpush1.msra.mxu0 %v21
  %163 = vmatprep.subr.mxu0 0.0
  %164 = vmatpush1.msra.mxu0 %v20
  %165 = vmatprep.subr.mxu0 0.0
  %166 = vmatpush1.msra.mxu0 %v19
  %167 = vmatprep.subr.mxu0 0.0
  %168 = vmatpush1.msra.mxu0 %v18
  %169 = vmatprep.subr.mxu0 0.0
  %170 = vmatpush2.msra.mxu0 0.0
  %171 = vmatprep.subr.mxu0 0.0
  %172 = vmatpush2.msra.mxu0 0.0
  %173 = vmatprep.subr.mxu0 0.0
  %174 = vmatpush2.msra.mxu0 0.0
  %175 = vmatprep.subr.mxu0 0.0
  %176 = vmatpush2.msra.mxu0 0.0
  %177 = vmatprep.subr.mxu0 0.0
  %178 = vmatpush2.msra.mxu0 0.0
  %179 = vmatprep.subr.mxu0 0.0
  %180 = vmatpush2.msra.mxu0 0.0
  %181 = vmatprep.subr.mxu0 0.0
  %182 = vmatpush2.msra.mxu0 0.0
  %183 = vmatprep.subr.mxu0 0.0
  %184 = vmatpush2.msra.mxu0 0.0
  %185 = vmatprep.subr.mxu0 0.0
  %186 = vmatpush2.msra.mxu0 0.0
  %187 = vmatprep.subr.mxu0 0.0
  %188 = vmatpush2.msra.mxu0 0.0
  %189 = vmatprep.subr.mxu0 0.0
  %190 = vmatpush2.msra.mxu0 0.0
  %191 = vmatprep.subr.mxu0 0.0
  %192 = vmatpush2.msra.mxu0 0.0
  %193 = vmatprep.subr.mxu0 0.0
  %194 = vmatpush2.msra.mxu0 0.0
  %195 = vmatprep.subr.mxu0 0.0
  %196 = vmatpush2.msra.mxu0 0.0
  %197 = vmatprep.subr.mxu0 0.0
  %198 = vmatpush2.msra.mxu0 0.0
  %199 = vmatprep.subr.mxu0 0.0
  %200 = vmatpush2.msra.mxu0 0.0
  %201 = vmatprep.mubr.f32.mxu0 0.0
  %202 = vmatmul.mubr.f32.gmra.mxu0 %v135
  %v203 = vpop.f32.mrf.mxu0
  %v204 = vadd.f32 0.0, %v203
  %v205 = vpop.f32.mrf.mxu0
  %206 = vdwg.mxu0
  %v207 = vadd.f32 %v134, %v204
  %v208 = vxor.u32 %v207, 2147483648
  %v209 = vmul.f32 %v208, 1.442695
  %v210 = vpow.pop %v209
  %v211 = vadd.f32 %v210, 1.0
  %v212 = vrcp.pop %v211
  %v213 = vmul.f32 1.0, %v212
  %v214 = vtanh.pop %v207
  %v215 = vmul.f32 %v213, %v121
  %217 = vrot.lane.b32.xlu0 %v214, 32
  %v218 = vpop.permute.xlu0 %217
  %v220 = vmul.f32 %v213, %v218
  %222 = vrot.lane.b32.xlu0 %v220, 32
  %v223 = vpop.permute.xlu0 %222
  %v225 = vadd.f32 %v215, %v223
  %v226 = vtanh.pop %v225
  %228 = vrot.lane.b32.xlu0 %v226, 32
  %v229 = vpop.permute.xlu0 %228
  %v231 = vmul.f32 %v213, %v229
  %233 = vrot.lane.b32.xlu0 %v231, 64
  %v234 = vpop.permute.xlu0 %233
  %s236 = scalar_lea.vmem %s2, 8
  %237 = vst.msk [vmem:[%s236] sm:$0xff] %vm25, %v234
  %s238 = scalar_lea.vmem %s0, 16
  %v239 = vld [vmem:[%s238] sm:$0xff]
  %v240 = vsel %vm25, %v234, 0
  %242 = vmatprep.subr.mxu0 0.0
  %243 = vmatpush1.msra.mxu0 0.0
  %244 = vmatprep.subr.mxu0 0.0
  %245 = vmatpush1.msra.mxu0 0.0
  %246 = vmatprep.subr.mxu0 0.0
  %247 = vmatpush1.msra.mxu0 0.0
  %248 = vmatprep.subr.mxu0 0.0
  %249 = vmatpush1.msra.mxu0 0.0
  %250 = vmatprep.subr.mxu0 0.0
  %251 = vmatpush1.msra.mxu0 0.0
  %252 = vmatprep.subr.mxu0 0.0
  %253 = vmatpush1.msra.mxu0 0.0
  %254 = vmatprep.subr.mxu0 0.0
  %255 = vmatpush1.msra.mxu0 0.0
  %256 = vmatprep.subr.mxu0 0.0
  %257 = vmatpush1.msra.mxu0 0.0
  %258 = vmatprep.subr.mxu0 0.0
  %259 = vmatpush1.msra.mxu0 0.0
  %260 = vmatprep.subr.mxu0 0.0
  %261 = vmatpush1.msra.mxu0 0.0
  %262 = vmatprep.subr.mxu0 0.0
  %263 = vmatpush1.msra.mxu0 0.0
  %264 = vmatprep.subr.mxu0 0.0
  %265 = vmatpush1.msra.mxu0 0.0
  %266 = vmatprep.subr.mxu0 0.0
  %267 = vmatpush1.msra.mxu0 %v21
  %268 = vmatprep.subr.mxu0 0.0
  %269 = vmatpush1.msra.mxu0 %v20
  %270 = vmatprep.subr.mxu0 0.0
  %271 = vmatpush1.msra.mxu0 %v19
  %272 = vmatprep.subr.mxu0 0.0
  %273 = vmatpush1.msra.mxu0 %v18
  %274 = vmatprep.subr.mxu0 0.0
  %275 = vmatpush2.msra.mxu0 0.0
  %276 = vmatprep.subr.mxu0 0.0
  %277 = vmatpush2.msra.mxu0 0.0
  %278 = vmatprep.subr.mxu0 0.0
  %279 = vmatpush2.msra.mxu0 0.0
  %280 = vmatprep.subr.mxu0 0.0
  %281 = vmatpush2.msra.mxu0 0.0
  %282 = vmatprep.subr.mxu0 0.0
  %283 = vmatpush2.msra.mxu0 0.0
  %284 = vmatprep.subr.mxu0 0.0
  %285 = vmatpush2.msra.mxu0 0.0
  %286 = vmatprep.subr.mxu0 0.0
  %287 = vmatpush2.msra.mxu0 0.0
  %288 = vmatprep.subr.mxu0 0.0
  %289 = vmatpush2.msra.mxu0 0.0
  %290 = vmatprep.subr.mxu0 0.0
  %291 = vmatpush2.msra.mxu0 0.0
  %292 = vmatprep.subr.mxu0 0.0
  %293 = vmatpush2.msra.mxu0 0.0
  %294 = vmatprep.subr.mxu0 0.0
  %295 = vmatpush2.msra.mxu0 0.0
  %296 = vmatprep.subr.mxu0 0.0
  %297 = vmatpush2.msra.mxu0 0.0
  %298 = vmatprep.subr.mxu0 0.0
  %299 = vmatpush2.msra.mxu0 0.0
  %300 = vmatprep.subr.mxu0 0.0
  %301 = vmatpush2.msra.mxu0 0.0
  %302 = vmatprep.subr.mxu0 0.0
  %303 = vmatpush2.msra.mxu0 0.0
  %304 = vmatprep.subr.mxu0 0.0
  %305 = vmatpush2.msra.mxu0 0.0
  %306 = vmatprep.mubr.f32.mxu0 0.0
  %307 = vmatmul.mubr.f32.gmra.mxu0 %v240
  %v308 = vpop.f32.mrf.mxu0
  %v309 = vadd.f32 0.0, %v308
  %v310 = vpop.f32.mrf.mxu0
  %311 = vdwg.mxu0
  %v312 = vadd.f32 %v239, %v309
  %v313 = vxor.u32 %v312, 2147483648
  %v314 = vmul.f32 %v313, 1.442695
  %v315 = vpow.pop %v314
  %v316 = vadd.f32 %v315, 1.0
  %v317 = vrcp.pop %v316
  %v318 = vmul.f32 1.0, %v317
  %v319 = vtanh.pop %v312
  %v320 = vmul.f32 %v318, %v225
  %322 = vrot.lane.b32.xlu0 %v319, 32
  %v323 = vpop.permute.xlu0 %322
  %v325 = vmul.f32 %v318, %v323
  %327 = vrot.lane.b32.xlu0 %v325, 32
  %v328 = vpop.permute.xlu0 %327
  %v330 = vadd.f32 %v320, %v328
  %v331 = vtanh.pop %v330
  %333 = vrot.lane.b32.xlu0 %v331, 32
  %v334 = vpop.permute.xlu0 %333
  %v336 = vmul.f32 %v318, %v334
  %338 = vrot.lane.b32.xlu0 %v336, 64
  %v339 = vpop.permute.xlu0 %338
  %s341 = scalar_lea.vmem %s2, 16
  %342 = vst.msk [vmem:[%s341] sm:$0xff] %vm25, %v339
  %s343 = scalar_lea.vmem %s0, 24
  %v344 = vld [vmem:[%s343] sm:$0xff]
  %v345 = vsel %vm25, %v339, 0
  %347 = vmatprep.subr.mxu0 0.0
  %348 = vmatpush1.msra.mxu0 0.0
  %349 = vmatprep.subr.mxu0 0.0
  %350 = vmatpush1.msra.mxu0 0.0
  %351 = vmatprep.subr.mxu0 0.0
  %352 = vmatpush1.msra.mxu0 0.0
  %353 = vmatprep.subr.mxu0 0.0
  %354 = vmatpush1.msra.mxu0 0.0
  %355 = vmatprep.subr.mxu0 0.0
  %356 = vmatpush1.msra.mxu0 0.0
  %357 = vmatprep.subr.mxu0 0.0
  %358 = vmatpush1.msra.mxu0 0.0
  %359 = vmatprep.subr.mxu0 0.0
  %360 = vmatpush1.msra.mxu0 0.0
  %361 = vmatprep.subr.mxu0 0.0
  %362 = vmatpush1.msra.mxu0 0.0
  %363 = vmatprep.subr.mxu0 0.0
  %364 = vmatpush1.msra.mxu0 0.0
  %365 = vmatprep.subr.mxu0 0.0
  %366 = vmatpush1.msra.mxu0 0.0
  %367 = vmatprep.subr.mxu0 0.0
  %368 = vmatpush1.msra.mxu0 0.0
  %369 = vmatprep.subr.mxu0 0.0
  %370 = vmatpush1.msra.mxu0 0.0
  %371 = vmatprep.subr.mxu0 0.0
  %372 = vmatpush1.msra.mxu0 %v21
  %373 = vmatprep.subr.mxu0 0.0
  %374 = vmatpush1.msra.mxu0 %v20
  %375 = vmatprep.subr.mxu0 0.0
  %376 = vmatpush1.msra.mxu0 %v19
  %377 = vmatprep.subr.mxu0 0.0
  %378 = vmatpush1.msra.mxu0 %v18
  %379 = vmatprep.subr.mxu0 0.0
  %380 = vmatpush2.msra.mxu0 0.0
  %381 = vmatprep.subr.mxu0 0.0
  %382 = vmatpush2.msra.mxu0 0.0
  %383 = vmatprep.subr.mxu0 0.0
  %384 = vmatpush2.msra.mxu0 0.0
  %385 = vmatprep.subr.mxu0 0.0
  %386 = vmatpush2.msra.mxu0 0.0
  %387 = vmatprep.subr.mxu0 0.0
  %388 = vmatpush2.msra.mxu0 0.0
  %389 = vmatprep.subr.mxu0 0.0
  %390 = vmatpush2.msra.mxu0 0.0
  %391 = vmatprep.subr.mxu0 0.0
  %392 = vmatpush2.msra.mxu0 0.0
  %393 = vmatprep.subr.mxu0 0.0
  %394 = vmatpush2.msra.mxu0 0.0
  %395 = vmatprep.subr.mxu0 0.0
  %396 = vmatpush2.msra.mxu0 0.0
  %397 = vmatprep.subr.mxu0 0.0
  %398 = vmatpush2.msra.mxu0 0.0
  %399 = vmatprep.subr.mxu0 0.0
  %400 = vmatpush2.msra.mxu0 0.0
  %401 = vmatprep.subr.mxu0 0.0
  %402 = vmatpush2.msra.mxu0 0.0
  %403 = vmatprep.subr.mxu0 0.0
  %404 = vmatpush2.msra.mxu0 0.0
  %405 = vmatprep.subr.mxu0 0.0
  %406 = vmatpush2.msra.mxu0 0.0
  %407 = vmatprep.subr.mxu0 0.0
  %408 = vmatpush2.msra.mxu0 0.0
  %409 = vmatprep.subr.mxu0 0.0
  %410 = vmatpush2.msra.mxu0 0.0
  %411 = vmatprep.mubr.f32.mxu0 0.0
  %412 = vmatmul.mubr.f32.gmra.mxu0 %v345
  %v413 = vpop.f32.mrf.mxu0
  %v414 = vadd.f32 0.0, %v413
  %v415 = vpop.f32.mrf.mxu0
  %416 = vdwg.mxu0
  %v417 = vadd.f32 %v344, %v414
  %v418 = vxor.u32 %v417, 2147483648
  %v419 = vmul.f32 %v418, 1.442695
  %v420 = vpow.pop %v419
  %v421 = vadd.f32 %v420, 1.0
  %v422 = vrcp.pop %v421
  %v423 = vmul.f32 1.0, %v422
  %v424 = vtanh.pop %v417
  %v425 = vmul.f32 %v423, %v330
  %427 = vrot.lane.b32.xlu0 %v424, 32
  %v428 = vpop.permute.xlu0 %427
  %v430 = vmul.f32 %v423, %v428
  %432 = vrot.lane.b32.xlu0 %v430, 32
  %v433 = vpop.permute.xlu0 %432
  %v435 = vadd.f32 %v425, %v433
  %v436 = vtanh.pop %v435
  %438 = vrot.lane.b32.xlu0 %v436, 32
  %v439 = vpop.permute.xlu0 %438
  %v441 = vmul.f32 %v423, %v439
  %443 = vrot.lane.b32.xlu0 %v441, 64
  %v444 = vpop.permute.xlu0 %443
  %s446 = scalar_lea.vmem %s2, 24
  %447 = vst.msk [vmem:[%s446] sm:$0xff] %vm25, %v444
  %s448 = scalar_lea.vmem %s0, 32
  %v449 = vld [vmem:[%s448] sm:$0xff]
  %v450 = vsel %vm25, %v444, 0
  %452 = vmatprep.subr.mxu0 0.0
  %453 = vmatpush1.msra.mxu0 0.0
  %454 = vmatprep.subr.mxu0 0.0
  %455 = vmatpush1.msra.mxu0 0.0
  %456 = vmatprep.subr.mxu0 0.0
  %457 = vmatpush1.msra.mxu0 0.0
  %458 = vmatprep.subr.mxu0 0.0
  %459 = vmatpush1.msra.mxu0 0.0
  %460 = vmatprep.subr.mxu0 0.0
  %461 = vmatpush1.msra.mxu0 0.0
  %462 = vmatprep.subr.mxu0 0.0
  %463 = vmatpush1.msra.mxu0 0.0
  %464 = vmatprep.subr.mxu0 0.0
  %465 = vmatpush1.msra.mxu0 0.0
  %466 = vmatprep.subr.mxu0 0.0
  %467 = vmatpush1.msra.mxu0 0.0
  %468 = vmatprep.subr.mxu0 0.0
  %469 = vmatpush1.msra.mxu0 0.0
  %470 = vmatprep.subr.mxu0 0.0
  %471 = vmatpush1.msra.mxu0 0.0
  %472 = vmatprep.subr.mxu0 0.0
  %473 = vmatpush1.msra.mxu0 0.0
  %474 = vmatprep.subr.mxu0 0.0
  %475 = vmatpush1.msra.mxu0 0.0
  %476 = vmatprep.subr.mxu0 0.0
  %477 = vmatpush1.msra.mxu0 %v21
  %478 = vmatprep.subr.mxu0 0.0
  %479 = vmatpush1.msra.mxu0 %v20
  %480 = vmatprep.subr.mxu0 0.0
  %481 = vmatpush1.msra.mxu0 %v19
  %482 = vmatprep.subr.mxu0 0.0
  %483 = vmatpush1.msra.mxu0 %v18
  %484 = vmatprep.subr.mxu0 0.0
  %485 = vmatpush2.msra.mxu0 0.0
  %486 = vmatprep.subr.mxu0 0.0
  %487 = vmatpush2.msra.mxu0 0.0
  %488 = vmatprep.subr.mxu0 0.0
  %489 = vmatpush2.msra.mxu0 0.0
  %490 = vmatprep.subr.mxu0 0.0
  %491 = vmatpush2.msra.mxu0 0.0
  %492 = vmatprep.subr.mxu0 0.0
  %493 = vmatpush2.msra.mxu0 0.0
  %494 = vmatprep.subr.mxu0 0.0
  %495 = vmatpush2.msra.mxu0 0.0
  %496 = vmatprep.subr.mxu0 0.0
  %497 = vmatpush2.msra.mxu0 0.0
  %498 = vmatprep.subr.mxu0 0.0
  %499 = vmatpush2.msra.mxu0 0.0
  %500 = vmatprep.subr.mxu0 0.0
  %501 = vmatpush2.msra.mxu0 0.0
  %502 = vmatprep.subr.mxu0 0.0
  %503 = vmatpush2.msra.mxu0 0.0
  %504 = vmatprep.subr.mxu0 0.0
  %505 = vmatpush2.msra.mxu0 0.0
  %506 = vmatprep.subr.mxu0 0.0
  %507 = vmatpush2.msra.mxu0 0.0
  %508 = vmatprep.subr.mxu0 0.0
  %509 = vmatpush2.msra.mxu0 0.0
  %510 = vmatprep.subr.mxu0 0.0
  %511 = vmatpush2.msra.mxu0 0.0
  %512 = vmatprep.subr.mxu0 0.0
  %513 = vmatpush2.msra.mxu0 0.0
  %514 = vmatprep.subr.mxu0 0.0
  %515 = vmatpush2.msra.mxu0 0.0
  %516 = vmatprep.mubr.f32.mxu0 0.0
  %517 = vmatmul.mubr.f32.gmra.mxu0 %v450
  %v518 = vpop.f32.mrf.mxu0
  %v519 = vadd.f32 0.0, %v518
  %v520 = vpop.f32.mrf.mxu0
  %521 = vdwg.mxu0
  %v522 = vadd.f32 %v449, %v519
  %v523 = vxor.u32 %v522, 2147483648
  %v524 = vmul.f32 %v523, 1.442695
  %v525 = vpow.pop %v524
  %v526 = vadd.f32 %v525, 1.0
  %v527 = vrcp.pop %v526
  %v528 = vmul.f32 1.0, %v527
  %v529 = vtanh.pop %v522
  %v530 = vmul.f32 %v528, %v435
  %532 = vrot.lane.b32.xlu0 %v529, 32
  %v533 = vpop.permute.xlu0 %532
  %v535 = vmul.f32 %v528, %v533
  %537 = vrot.lane.b32.xlu0 %v535, 32
  %v538 = vpop.permute.xlu0 %537
  %v540 = vadd.f32 %v530, %v538
  %v541 = vtanh.pop %v540
  %543 = vrot.lane.b32.xlu0 %v541, 32
  %v544 = vpop.permute.xlu0 %543
  %v546 = vmul.f32 %v528, %v544
  %548 = vrot.lane.b32.xlu0 %v546, 64
  %v549 = vpop.permute.xlu0 %548
  %s551 = scalar_lea.vmem %s2, 32
  %552 = vst.msk [vmem:[%s551] sm:$0xff] %vm25, %v549
  %s553 = scalar_lea.vmem %s0, 40
  %v554 = vld [vmem:[%s553] sm:$0xff]
  %v555 = vsel %vm25, %v549, 0
  %557 = vmatprep.subr.mxu0 0.0
  %558 = vmatpush1.msra.mxu0 0.0
  %559 = vmatprep.subr.mxu0 0.0
  %560 = vmatpush1.msra.mxu0 0.0
  %561 = vmatprep.subr.mxu0 0.0
  %562 = vmatpush1.msra.mxu0 0.0
  %563 = vmatprep.subr.mxu0 0.0
  %564 = vmatpush1.msra.mxu0 0.0
  %565 = vmatprep.subr.mxu0 0.0
  %566 = vmatpush1.msra.mxu0 0.0
  %567 = vmatprep.subr.mxu0 0.0
  %568 = vmatpush1.msra.mxu0 0.0
  %569 = vmatprep.subr.mxu0 0.0
  %570 = vmatpush1.msra.mxu0 0.0
  %571 = vmatprep.subr.mxu0 0.0
  %572 = vmatpush1.msra.mxu0 0.0
  %573 = vmatprep.subr.mxu0 0.0
  %574 = vmatpush1.msra.mxu0 0.0
  %575 = vmatprep.subr.mxu0 0.0
  %576 = vmatpush1.msra.mxu0 0.0
  %577 = vmatprep.subr.mxu0 0.0
  %578 = vmatpush1.msra.mxu0 0.0
  %579 = vmatprep.subr.mxu0 0.0
  %580 = vmatpush1.msra.mxu0 0.0
  %581 = vmatprep.subr.mxu0 0.0
  %582 = vmatpush1.msra.mxu0 %v21
  %583 = vmatprep.subr.mxu0 0.0
  %584 = vmatpush1.msra.mxu0 %v20
  %585 = vmatprep.subr.mxu0 0.0
  %586 = vmatpush1.msra.mxu0 %v19
  %587 = vmatprep.subr.mxu0 0.0
  %588 = vmatpush1.msra.mxu0 %v18
  %589 = vmatprep.subr.mxu0 0.0
  %590 = vmatpush2.msra.mxu0 0.0
  %591 = vmatprep.subr.mxu0 0.0
  %592 = vmatpush2.msra.mxu0 0.0
  %593 = vmatprep.subr.mxu0 0.0
  %594 = vmatpush2.msra.mxu0 0.0
  %595 = vmatprep.subr.mxu0 0.0
  %596 = vmatpush2.msra.mxu0 0.0
  %597 = vmatprep.subr.mxu0 0.0
  %598 = vmatpush2.msra.mxu0 0.0
  %599 = vmatprep.subr.mxu0 0.0
  %600 = vmatpush2.msra.mxu0 0.0
  %601 = vmatprep.subr.mxu0 0.0
  %602 = vmatpush2.msra.mxu0 0.0
  %603 = vmatprep.subr.mxu0 0.0
  %604 = vmatpush2.msra.mxu0 0.0
  %605 = vmatprep.subr.mxu0 0.0
  %606 = vmatpush2.msra.mxu0 0.0
  %607 = vmatprep.subr.mxu0 0.0
  %608 = vmatpush2.msra.mxu0 0.0
  %609 = vmatprep.subr.mxu0 0.0
  %610 = vmatpush2.msra.mxu0 0.0
  %611 = vmatprep.subr.mxu0 0.0
  %612 = vmatpush2.msra.mxu0 0.0
  %613 = vmatprep.subr.mxu0 0.0
  %614 = vmatpush2.msra.mxu0 0.0
  %615 = vmatprep.subr.mxu0 0.0
  %616 = vmatpush2.msra.mxu0 0.0
  %617 = vmatprep.subr.mxu0 0.0
  %618 = vmatpush2.msra.mxu0 0.0
  %619 = vmatprep.subr.mxu0 0.0
  %620 = vmatpush2.msra.mxu0 0.0
  %621 = vmatprep.mubr.f32.mxu0 0.0
  %622 = vmatmul.mubr.f32.gmra.mxu0 %v555
  %v623 = vpop.f32.mrf.mxu0
  %v624 = vadd.f32 0.0, %v623
  %v625 = vpop.f32.mrf.mxu0
  %626 = vdwg.mxu0
  %v627 = vadd.f32 %v554, %v624
  %v628 = vxor.u32 %v627, 2147483648
  %v629 = vmul.f32 %v628, 1.442695
  %v630 = vpow.pop %v629
  %v631 = vadd.f32 %v630, 1.0
  %v632 = vrcp.pop %v631
  %v633 = vmul.f32 1.0, %v632
  %v634 = vtanh.pop %v627
  %v635 = vmul.f32 %v633, %v540
  %637 = vrot.lane.b32.xlu0 %v634, 32
  %v638 = vpop.permute.xlu0 %637
  %v640 = vmul.f32 %v633, %v638
  %642 = vrot.lane.b32.xlu0 %v640, 32
  %v643 = vpop.permute.xlu0 %642
  %v645 = vadd.f32 %v635, %v643
  %v646 = vtanh.pop %v645
  %648 = vrot.lane.b32.xlu0 %v646, 32
  %v649 = vpop.permute.xlu0 %648
  %v651 = vmul.f32 %v633, %v649
  %653 = vrot.lane.b32.xlu0 %v651, 64
  %v654 = vpop.permute.xlu0 %653
  %s656 = scalar_lea.vmem %s2, 40
  %657 = vst.msk [vmem:[%s656] sm:$0xff] %vm25, %v654
  %s658 = scalar_lea.vmem %s0, 48
  %v659 = vld [vmem:[%s658] sm:$0xff]
  %v660 = vsel %vm25, %v654, 0
  %662 = vmatprep.subr.mxu0 0.0
  %663 = vmatpush1.msra.mxu0 0.0
  %664 = vmatprep.subr.mxu0 0.0
  %665 = vmatpush1.msra.mxu0 0.0
  %666 = vmatprep.subr.mxu0 0.0
  %667 = vmatpush1.msra.mxu0 0.0
  %668 = vmatprep.subr.mxu0 0.0
  %669 = vmatpush1.msra.mxu0 0.0
  %670 = vmatprep.subr.mxu0 0.0
  %671 = vmatpush1.msra.mxu0 0.0
  %672 = vmatprep.subr.mxu0 0.0
  %673 = vmatpush1.msra.mxu0 0.0
  %674 = vmatprep.subr.mxu0 0.0
  %675 = vmatpush1.msra.mxu0 0.0
  %676 = vmatprep.subr.mxu0 0.0
  %677 = vmatpush1.msra.mxu0 0.0
  %678 = vmatprep.subr.mxu0 0.0
  %679 = vmatpush1.msra.mxu0 0.0
  %680 = vmatprep.subr.mxu0 0.0
  %681 = vmatpush1.msra.mxu0 0.0
  %682 = vmatprep.subr.mxu0 0.0
  %683 = vmatpush1.msra.mxu0 0.0
  %684 = vmatprep.subr.mxu0 0.0
  %685 = vmatpush1.msra.mxu0 0.0
  %686 = vmatprep.subr.mxu0 0.0
  %687 = vmatpush1.msra.mxu0 %v21
  %688 = vmatprep.subr.mxu0 0.0
  %689 = vmatpush1.msra.mxu0 %v20
  %690 = vmatprep.subr.mxu0 0.0
  %691 = vmatpush1.msra.mxu0 %v19
  %692 = vmatprep.subr.mxu0 0.0
  %693 = vmatpush1.msra.mxu0 %v18
  %694 = vmatprep.subr.mxu0 0.0
  %695 = vmatpush2.msra.mxu0 0.0
  %696 = vmatprep.subr.mxu0 0.0
  %697 = vmatpush2.msra.mxu0 0.0
  %698 = vmatprep.subr.mxu0 0.0
  %699 = vmatpush2.msra.mxu0 0.0
  %700 = vmatprep.subr.mxu0 0.0
  %701 = vmatpush2.msra.mxu0 0.0
  %702 = vmatprep.subr.mxu0 0.0
  %703 = vmatpush2.msra.mxu0 0.0
  %704 = vmatprep.subr.mxu0 0.0
  %705 = vmatpush2.msra.mxu0 0.0
  %706 = vmatprep.subr.mxu0 0.0
  %707 = vmatpush2.msra.mxu0 0.0
  %708 = vmatprep.subr.mxu0 0.0
  %709 = vmatpush2.msra.mxu0 0.0
  %710 = vmatprep.subr.mxu0 0.0
  %711 = vmatpush2.msra.mxu0 0.0
  %712 = vmatprep.subr.mxu0 0.0
  %713 = vmatpush2.msra.mxu0 0.0
  %714 = vmatprep.subr.mxu0 0.0
  %715 = vmatpush2.msra.mxu0 0.0
  %716 = vmatprep.subr.mxu0 0.0
  %717 = vmatpush2.msra.mxu0 0.0
  %718 = vmatprep.subr.mxu0 0.0
  %719 = vmatpush2.msra.mxu0 0.0
  %720 = vmatprep.subr.mxu0 0.0
  %721 = vmatpush2.msra.mxu0 0.0
  %722 = vmatprep.subr.mxu0 0.0
  %723 = vmatpush2.msra.mxu0 0.0
  %724 = vmatprep.subr.mxu0 0.0
  %725 = vmatpush2.msra.mxu0 0.0
  %726 = vmatprep.mubr.f32.mxu0 0.0
  %727 = vmatmul.mubr.f32.gmra.mxu0 %v660
  %v728 = vpop.f32.mrf.mxu0
  %v729 = vadd.f32 0.0, %v728
  %v730 = vpop.f32.mrf.mxu0
  %731 = vdwg.mxu0
  %v732 = vadd.f32 %v659, %v729
  %v733 = vxor.u32 %v732, 2147483648
  %v734 = vmul.f32 %v733, 1.442695
  %v735 = vpow.pop %v734
  %v736 = vadd.f32 %v735, 1.0
  %v737 = vrcp.pop %v736
  %v738 = vmul.f32 1.0, %v737
  %v739 = vtanh.pop %v732
  %v740 = vmul.f32 %v738, %v645
  %742 = vrot.lane.b32.xlu0 %v739, 32
  %v743 = vpop.permute.xlu0 %742
  %v745 = vmul.f32 %v738, %v743
  %747 = vrot.lane.b32.xlu0 %v745, 32
  %v748 = vpop.permute.xlu0 %747
  %v750 = vadd.f32 %v740, %v748
  %v751 = vtanh.pop %v750
  %753 = vrot.lane.b32.xlu0 %v751, 32
  %v754 = vpop.permute.xlu0 %753
  %v756 = vmul.f32 %v738, %v754
  %758 = vrot.lane.b32.xlu0 %v756, 64
  %v759 = vpop.permute.xlu0 %758
  %s761 = scalar_lea.vmem %s2, 48
  %762 = vst.msk [vmem:[%s761] sm:$0xff] %vm25, %v759
  %s763 = scalar_lea.vmem %s0, 56
  %v764 = vld [vmem:[%s763] sm:$0xff]
  %v765 = vsel %vm25, %v759, 0
  %767 = vmatprep.subr.mxu0 0.0
  %768 = vmatpush1.msra.mxu0 0.0
  %769 = vmatprep.subr.mxu0 0.0
  %770 = vmatpush1.msra.mxu0 0.0
  %771 = vmatprep.subr.mxu0 0.0
  %772 = vmatpush1.msra.mxu0 0.0
  %773 = vmatprep.subr.mxu0 0.0
  %774 = vmatpush1.msra.mxu0 0.0
  %775 = vmatprep.subr.mxu0 0.0
  %776 = vmatpush1.msra.mxu0 0.0
  %777 = vmatprep.subr.mxu0 0.0
  %778 = vmatpush1.msra.mxu0 0.0
  %779 = vmatprep.subr.mxu0 0.0
  %780 = vmatpush1.msra.mxu0 0.0
  %781 = vmatprep.subr.mxu0 0.0
  %782 = vmatpush1.msra.mxu0 0.0
  %783 = vmatprep.subr.mxu0 0.0
  %784 = vmatpush1.msra.mxu0 0.0
  %785 = vmatprep.subr.mxu0 0.0
  %786 = vmatpush1.msra.mxu0 0.0
  %787 = vmatprep.subr.mxu0 0.0
  %788 = vmatpush1.msra.mxu0 0.0
  %789 = vmatprep.subr.mxu0 0.0
  %790 = vmatpush1.msra.mxu0 0.0
  %791 = vmatprep.subr.mxu0 0.0
  %792 = vmatpush1.msra.mxu0 %v21
  %793 = vmatprep.subr.mxu0 0.0
  %794 = vmatpush1.msra.mxu0 %v20
  %795 = vmatprep.subr.mxu0 0.0
  %796 = vmatpush1.msra.mxu0 %v19
  %797 = vmatprep.subr.mxu0 0.0
  %798 = vmatpush1.msra.mxu0 %v18
  %799 = vmatprep.subr.mxu0 0.0
  %800 = vmatpush2.msra.mxu0 0.0
  %801 = vmatprep.subr.mxu0 0.0
  %802 = vmatpush2.msra.mxu0 0.0
  %803 = vmatprep.subr.mxu0 0.0
  %804 = vmatpush2.msra.mxu0 0.0
  %805 = vmatprep.subr.mxu0 0.0
  %806 = vmatpush2.msra.mxu0 0.0
  %807 = vmatprep.subr.mxu0 0.0
  %808 = vmatpush2.msra.mxu0 0.0
  %809 = vmatprep.subr.mxu0 0.0
  %810 = vmatpush2.msra.mxu0 0.0
  %811 = vmatprep.subr.mxu0 0.0
  %812 = vmatpush2.msra.mxu0 0.0
  %813 = vmatprep.subr.mxu0 0.0
  %814 = vmatpush2.msra.mxu0 0.0
  %815 = vmatprep.subr.mxu0 0.0
  %816 = vmatpush2.msra.mxu0 0.0
  %817 = vmatprep.subr.mxu0 0.0
  %818 = vmatpush2.msra.mxu0 0.0
  %819 = vmatprep.subr.mxu0 0.0
  %820 = vmatpush2.msra.mxu0 0.0
  %821 = vmatprep.subr.mxu0 0.0
  %822 = vmatpush2.msra.mxu0 0.0
  %823 = vmatprep.subr.mxu0 0.0
  %824 = vmatpush2.msra.mxu0 0.0
  %825 = vmatprep.subr.mxu0 0.0
  %826 = vmatpush2.msra.mxu0 0.0
  %827 = vmatprep.subr.mxu0 0.0
  %828 = vmatpush2.msra.mxu0 0.0
  %829 = vmatprep.subr.mxu0 0.0
  %830 = vmatpush2.msra.mxu0 0.0
  %831 = vmatprep.mubr.f32.mxu0 0.0
  %832 = vmatmul.mubr.f32.gmra.mxu0 %v765
  %v833 = vpop.f32.mrf.mxu0
  %v834 = vadd.f32 0.0, %v833
  %v835 = vpop.f32.mrf.mxu0
  %836 = vdwg.mxu0
  %v837 = vadd.f32 %v764, %v834
  %v838 = vxor.u32 %v837, 2147483648
  %v839 = vmul.f32 %v838, 1.442695
  %v840 = vpow.pop %v839
  %v841 = vadd.f32 %v840, 1.0
  %v842 = vrcp.pop %v841
  %v843 = vmul.f32 1.0, %v842
  %v844 = vtanh.pop %v837
  %v845 = vmul.f32 %v843, %v750
  %847 = vrot.lane.b32.xlu0 %v844, 32
  %v848 = vpop.permute.xlu0 %847
  %v850 = vmul.f32 %v843, %v848
  %852 = vrot.lane.b32.xlu0 %v850, 32
  %v853 = vpop.permute.xlu0 %852
  %v855 = vadd.f32 %v845, %v853
  %v856 = vtanh.pop %v855
  %858 = vrot.lane.b32.xlu0 %v856, 32
  %v859 = vpop.permute.xlu0 %858
  %v861 = vmul.f32 %v843, %v859
  %863 = vrot.lane.b32.xlu0 %v861, 64
  %v864 = vpop.permute.xlu0 %863
  %s866 = scalar_lea.vmem %s2, 56
  %867 = vst.msk [vmem:[%s866] sm:$0xff] %vm25, %v864
  %868 = vst.msk [vmem:[#allocation2] sm:$0xff] %vm25, %v864
  %870 = vrot.lane.b32.xlu0 %v855, 96
  %v871 = vpop.permute.xlu0 %870
  %873 = vst.msk [vmem:[#allocation3] sm:$0xff] %vm25, %v871
  // Predicated region
  $region14: #{forward.5} parent=0 // pred_check
    _
  $region15: #{forward.5} parent=0 // pred_check_branch
    %875 = sbr.rel (0) target = $region17
  $region16: #{forward.5} parent=0 // pred_region
    _
  $region17: #{forward.5} parent=0 // pred_fallthru
    _
  // Predicated region
  $region18: #{forward.5} parent=0 // pred_check
    _
  $region19: #{forward.5} parent=0 // pred_check_branch
    %877 = sbr.rel (0) target = $region21
  $region20: #{forward.5} parent=0 // pred_region
    _
  $region21: #{forward.5} parent=0 // pred_fallthru
    _

// kernel: forward.7
$region0: #{forward.7}
  #allocation0 [shape = 'u32[]', space=smem, size = 0x4, offset = 0x4, fixed_abs, tag = 'smem constant byte address 0x4 - core index']
  #allocation1 [shape = 'u32[144,128]{1,0:T(1,128)}', space=vmem, size = 0x12000, scoped, tag = 'internal scratch']
  #allocation2 [shape = 'f32[8,32]{1,0:T(8,128)}', space=vmem, size = 0x1000, scoped, tag = 'scratch operand']
  #allocation3 [shape = 'f32[8,32]{1,0:T(8,128)}', space=vmem, size = 0x1000, scoped, tag = 'scratch operand']
  #allocation4 [shape = 'f32[64,32]{1,0:T(8,128)}', space=vmem, size = 0x8000, scoped, tag = 'scratch operand']
  %s0 = inlined_call_operand.vmem [shape: f32[64,128], index: 0, kind: input, shape index: {}]
  %s1 = inlined_call_operand.vmem [shape: f32[32,128], index: 1, kind: input, shape index: {}]
  %s2 = inlined_call_operand.vmem [shape: f32[32,128], index: 2, kind: input, shape index: {}]
  %s3 = inlined_call_operand.vmem [shape: f32[1,128], index: 3, kind: input, shape index: {}]
  %s4 = inlined_call_operand.vmem [shape: f32[64,128], index: 4, kind: output, shape index: {}]
  %s5 = sld [smem:[#allocation0]]
  $region30: #{forward.7} parent=0
    _
  %s7 = ssub.s32 1, %s5
  %s8 = scalar_select 0, %s7, %s5
  // Predicated region
  $region2: #{forward.7} parent=0 // pred_check
    _
  $region3: #{forward.7} parent=0 // pred_check_branch
    %10 = sbr.rel (0) target = $region5
  $region4: #{forward.7} parent=0 // pred_region
    _
  $region5: #{forward.7} parent=0 // pred_fallthru
    _
  // Predicated region
  $region6: #{forward.7} parent=0 // pred_check
    _
  $region7: #{forward.7} parent=0 // pred_check_branch
    %12 = sbr.rel (0) target = $region9
  $region8: #{forward.7} parent=0 // pred_region
    _
  $region9: #{forward.7} parent=0 // pred_fallthru
    _
  // Predicated region
  $region10: #{forward.7} parent=0 // pred_check
    _
  $region11: #{forward.7} parent=0 // pred_check_branch
    %14 = sbr.rel (0) target = $region13
  $region12: #{forward.7} parent=0 // pred_region
    _
  $region13: #{forward.7} parent=0 // pred_fallthru
    _
  // Predicated region
  $region14: #{forward.7} parent=0 // pred_check
    _
  $region15: #{forward.7} parent=0 // pred_check_branch
    %16 = sbr.rel (0) target = $region17
  $region16: #{forward.7} parent=0 // pred_region
    _
  $region17: #{forward.7} parent=0 // pred_fallthru
    _
  %p17 = scmp.eq.s32.totalorder 0, 0
  // Predicated region
  $region18: #{forward.7} parent=0 // pred_check
    %p18 = pneg %p17
  $region19: #{forward.7} parent=0 // pred_check_branch
    %20 = sbr.rel (%p18) target = $region21
  $region20: #{forward.7} parent=0 // pred_region
    %vm21 = vcmask 261120
    %22 = vst.msk [vmem:[#allocation2] sm:$0xff] %vm21, 0.0
    %23 = vst.msk [vmem:[#allocation3] sm:$0xff] %vm21, 0.0
  $region21: #{forward.7} parent=0 // pred_fallthru
    _
  %v24 = vld [vmem:[%s1] sm:$0xff]
  %v25 = vld [vmem:[%s1 + $0x8] sm:$0xff]
  %v26 = vld [vmem:[%s1 + $0x10] sm:$0xff]
  %v27 = vld [vmem:[%s1 + $0x18] sm:$0xff]
  %v28 = vld [vmem:[#allocation2] sm:$0xff]
  %v29 = vld [vmem:[#allocation3] sm:$0xff]
  %v30 = vld [vmem:[%s0] sm:$0xff]
  %vm31 = vcmask 261120
  %v33 = vsel %vm31, %v28, 0
  %35 = vmatprep.subr.mxu0 0.0
  %36 = vmatpush1.msra.mxu0 0.0
  %37 = vmatprep.subr.mxu0 0.0
  %38 = vmatpush1.msra.mxu0 0.0
  %39 = vmatprep.subr.mxu0 0.0
  %40 = vmatpush1.msra.mxu0 0.0
  %41 = vmatprep.subr.mxu0 0.0
  %42 = vmatpush1.msra.mxu0 0.0
  %43 = vmatprep.subr.mxu0 0.0
  %44 = vmatpush1.msra.mxu0 0.0
  %45 = vmatprep.subr.mxu0 0.0
  %46 = vmatpush1.msra.mxu0 0.0
  %47 = vmatprep.subr.mxu0 0.0
  %48 = vmatpush1.msra.mxu0 0.0
  %49 = vmatprep.subr.mxu0 0.0
  %50 = vmatpush1.msra.mxu0 0.0
  %51 = vmatprep.subr.mxu0 0.0
  %52 = vmatpush1.msra.mxu0 0.0
  %53 = vmatprep.subr.mxu0 0.0
  %54 = vmatpush1.msra.mxu0 0.0
  %55 = vmatprep.subr.mxu0 0.0
  %56 = vmatpush1.msra.mxu0 0.0
  %57 = vmatprep.subr.mxu0 0.0
  %58 = vmatpush1.msra.mxu0 0.0
  %59 = vmatprep.subr.mxu0 0.0
  %60 = vmatpush1.msra.mxu0 %v27
  %61 = vmatprep.subr.mxu0 0.0
  %62 = vmatpush1.msra.mxu0 %v26
  %63 = vmatprep.subr.mxu0 0.0
  %64 = vmatpush1.msra.mxu0 %v25
  %65 = vmatprep.subr.mxu0 0.0
  %66 = vmatpush1.msra.mxu0 %v24
  %67 = vmatprep.subr.mxu0 0.0
  %68 = vmatpush2.msra.mxu0 0.0
  %69 = vmatprep.subr.mxu0 0.0
  %70 = vmatpush2.msra.mxu0 0.0
  %71 = vmatprep.subr.mxu0 0.0
  %72 = vmatpush2.msra.mxu0 0.0
  %73 = vmatprep.subr.mxu0 0.0
  %74 = vmatpush2.msra.mxu0 0.0
  %75 = vmatprep.subr.mxu0 0.0
  %76 = vmatpush2.msra.mxu0 0.0
  %77 = vmatprep.subr.mxu0 0.0
  %78 = vmatpush2.msra.mxu0 0.0
  %79 = vmatprep.subr.mxu0 0.0
  %80 = vmatpush2.msra.mxu0 0.0
  %81 = vmatprep.subr.mxu0 0.0
  %82 = vmatpush2.msra.mxu0 0.0
  %83 = vmatprep.subr.mxu0 0.0
  %84 = vmatpush2.msra.mxu0 0.0
  %85 = vmatprep.subr.mxu0 0.0
  %86 = vmatpush2.msra.mxu0 0.0
  %87 = vmatprep.subr.mxu0 0.0
  %88 = vmatpush2.msra.mxu0 0.0
  %89 = vmatprep.subr.mxu0 0.0
  %90 = vmatpush2.msra.mxu0 0.0
  %91 = vmatprep.subr.mxu0 0.0
  %92 = vmatpush2.msra.mxu0 0.0
  %93 = vmatprep.subr.mxu0 0.0
  %94 = vmatpush2.msra.mxu0 0.0
  %95 = vmatprep.subr.mxu0 0.0
  %96 = vmatpush2.msra.mxu0 0.0
  %97 = vmatprep.subr.mxu0 0.0
  %98 = vmatpush2.msra.mxu0 0.0
  %99 = vmatprep.mubr.f32.mxu0 0.0
  %100 = vmatmul.mubr.f32.gmra.mxu0 %v33
  %v101 = vpop.f32.mrf.mxu0
  %v102 = vadd.f32 0.0, %v101
  %v103 = vpop.f32.mrf.mxu0
  %104 = vdwg.mxu0
  %v105 = vadd.f32 %v30, %v102
  %v106 = vxor.u32 %v105, 2147483648
  %v107 = vmul.f32 %v106, 1.442695
  %v108 = vpow.pop %v107
  %v109 = vadd.f32 %v108, 1.0
  %v110 = vrcp.pop %v109
  %v111 = vmul.f32 1.0, %v110
  %v112 = vtanh.pop %v105
  %114 = vrot.lane.b32.xlu0 %v29, 32
  %v115 = vpop.permute.xlu0 %114
  %v117 = vmul.f32 %v111, %v115
  %119 = vrot.lane.b32.xlu0 %v112, 32
  %v120 = vpop.permute.xlu0 %119
  %v122 = vmul.f32 %v111, %v120
  %124 = vrot.lane.b32.xlu0 %v122, 32
  %v125 = vpop.permute.xlu0 %124
  %v127 = vadd.f32 %v117, %v125
  %v128 = vtanh.pop %v127
  %130 = vrot.lane.b32.xlu0 %v128, 32
  %v131 = vpop.permute.xlu0 %130
  %v133 = vmul.f32 %v111, %v131
  %135 = vrot.lane.b32.xlu0 %v133, 64
  %v136 = vpop.permute.xlu0 %135
  %138 = vst.msk [vmem:[#allocation4] sm:$0xff] %vm31, %v136
  %s139 = scalar_lea.vmem %s0, 8
  %v140 = vld [vmem:[%s139] sm:$0xff]
  %v141 = vsel %vm31, %v136, 0
  %143 = vmatprep.subr.mxu0 0.0
  %144 = vmatpush1.msra.mxu0 0.0
  %145 = vmatprep.subr.mxu0 0.0
  %146 = vmatpush1.msra.mxu0 0.0
  %147 = vmatprep.subr.mxu0 0.0
  %148 = vmatpush1.msra.mxu0 0.0
  %149 = vmatprep.subr.mxu0 0.0
  %150 = vmatpush1.msra.mxu0 0.0
  %151 = vmatprep.subr.mxu0 0.0
  %152 = vmatpush1.msra.mxu0 0.0
  %153 = vmatprep.subr.mxu0 0.0
  %154 = vmatpush1.msra.mxu0 0.0
  %155 = vmatprep.subr.mxu0 0.0
  %156 = vmatpush1.msra.mxu0 0.0
  %157 = vmatprep.subr.mxu0 0.0
  %158 = vmatpush1.msra.mxu0 0.0
  %159 = vmatprep.subr.mxu0 0.0
  %160 = vmatpush1.msra.mxu0 0.0
  %161 = vmatprep.subr.mxu0 0.0
  %162 = vmatpush1.msra.mxu0 0.0
  %163 = vmatprep.subr.mxu0 0.0
  %164 = vmatpush1.msra.mxu0 0.0
  %165 = vmatprep.subr.mxu0 0.0
  %166 = vmatpush1.msra.mxu0 0.0
  %167 = vmatprep.subr.mxu0 0.0
  %168 = vmatpush1.msra.mxu0 %v27
  %169 = vmatprep.subr.mxu0 0.0
  %170 = vmatpush1.msra.mxu0 %v26
  %171 = vmatprep.subr.mxu0 0.0
  %172 = vmatpush1.msra.mxu0 %v25
  %173 = vmatprep.subr.mxu0 0.0
  %174 = vmatpush1.msra.mxu0 %v24
  %175 = vmatprep.subr.mxu0 0.0
  %176 = vmatpush2.msra.mxu0 0.0
  %177 = vmatprep.subr.mxu0 0.0
  %178 = vmatpush2.msra.mxu0 0.0
  %179 = vmatprep.subr.mxu0 0.0
  %180 = vmatpush2.msra.mxu0 0.0
  %181 = vmatprep.subr.mxu0 0.0
  %182 = vmatpush2.msra.mxu0 0.0
  %183 = vmatprep.subr.mxu0 0.0
  %184 = vmatpush2.msra.mxu0 0.0
  %185 = vmatprep.subr.mxu0 0.0
  %186 = vmatpush2.msra.mxu0 0.0
  %187 = vmatprep.subr.mxu0 0.0
  %188 = vmatpush2.msra.mxu0 0.0
  %189 = vmatprep.subr.mxu0 0.0
  %190 = vmatpush2.msra.mxu0 0.0
  %191 = vmatprep.subr.mxu0 0.0
  %192 = vmatpush2.msra.mxu0 0.0
  %193 = vmatprep.subr.mxu0 0.0
  %194 = vmatpush2.msra.mxu0 0.0
  %195 = vmatprep.subr.mxu0 0.0
  %196 = vmatpush2.msra.mxu0 0.0
  %197 = vmatprep.subr.mxu0 0.0
  %198 = vmatpush2.msra.mxu0 0.0
  %199 = vmatprep.subr.mxu0 0.0
  %200 = vmatpush2.msra.mxu0 0.0
  %201 = vmatprep.subr.mxu0 0.0
  %202 = vmatpush2.msra.mxu0 0.0
  %203 = vmatprep.subr.mxu0 0.0
  %204 = vmatpush2.msra.mxu0 0.0
  %205 = vmatprep.subr.mxu0 0.0
  %206 = vmatpush2.msra.mxu0 0.0
  %207 = vmatprep.mubr.f32.mxu0 0.0
  %208 = vmatmul.mubr.f32.gmra.mxu0 %v141
  %v209 = vpop.f32.mrf.mxu0
  %v210 = vadd.f32 0.0, %v209
  %v211 = vpop.f32.mrf.mxu0
  %212 = vdwg.mxu0
  %v213 = vadd.f32 %v140, %v210
  %v214 = vxor.u32 %v213, 2147483648
  %v215 = vmul.f32 %v214, 1.442695
  %v216 = vpow.pop %v215
  %v217 = vadd.f32 %v216, 1.0
  %v218 = vrcp.pop %v217
  %v219 = vmul.f32 1.0, %v218
  %v220 = vtanh.pop %v213
  %v221 = vmul.f32 %v219, %v127
  %223 = vrot.lane.b32.xlu0 %v220, 32
  %v224 = vpop.permute.xlu0 %223
  %v226 = vmul.f32 %v219, %v224
  %228 = vrot.lane.b32.xlu0 %v226, 32
  %v229 = vpop.permute.xlu0 %228
  %v231 = vadd.f32 %v221, %v229
  %v232 = vtanh.pop %v231
  %234 = vrot.lane.b32.xlu0 %v232, 32
  %v235 = vpop.permute.xlu0 %234
  %v237 = vmul.f32 %v219, %v235
  %239 = vrot.lane.b32.xlu0 %v237, 64
  %v240 = vpop.permute.xlu0 %239
  %s242 = scalar_lea.vmem [#allocation4], 8
  %243 = vst.msk [vmem:[%s242] sm:$0xff] %vm31, %v240
  %s244 = scalar_lea.vmem %s0, 16
  %v245 = vld [vmem:[%s244] sm:$0xff]
  %v246 = vsel %vm31, %v240, 0
  %248 = vmatprep.subr.mxu0 0.0
  %249 = vmatpush1.msra.mxu0 0.0
  %250 = vmatprep.subr.mxu0 0.0
  %251 = vmatpush1.msra.mxu0 0.0
  %252 = vmatprep.subr.mxu0 0.0
  %253 = vmatpush1.msra.mxu0 0.0
  %254 = vmatprep.subr.mxu0 0.0
  %255 = vmatpush1.msra.mxu0 0.0
  %256 = vmatprep.subr.mxu0 0.0
  %257 = vmatpush1.msra.mxu0 0.0
  %258 = vmatprep.subr.mxu0 0.0
  %259 = vmatpush1.msra.mxu0 0.0
  %260 = vmatprep.subr.mxu0 0.0
  %261 = vmatpush1.msra.mxu0 0.0
  %262 = vmatprep.subr.mxu0 0.0
  %263 = vmatpush1.msra.mxu0 0.0
  %264 = vmatprep.subr.mxu0 0.0
  %265 = vmatpush1.msra.mxu0 0.0
  %266 = vmatprep.subr.mxu0 0.0
  %267 = vmatpush1.msra.mxu0 0.0
  %268 = vmatprep.subr.mxu0 0.0
  %269 = vmatpush1.msra.mxu0 0.0
  %270 = vmatprep.subr.mxu0 0.0
  %271 = vmatpush1.msra.mxu0 0.0
  %272 = vmatprep.subr.mxu0 0.0
  %273 = vmatpush1.msra.mxu0 %v27
  %274 = vmatprep.subr.mxu0 0.0
  %275 = vmatpush1.msra.mxu0 %v26
  %276 = vmatprep.subr.mxu0 0.0
  %277 = vmatpush1.msra.mxu0 %v25
  %278 = vmatprep.subr.mxu0 0.0
  %279 = vmatpush1.msra.mxu0 %v24
  %280 = vmatprep.subr.mxu0 0.0
  %281 = vmatpush2.msra.mxu0 0.0
  %282 = vmatprep.subr.mxu0 0.0
  %283 = vmatpush2.msra.mxu0 0.0
  %284 = vmatprep.subr.mxu0 0.0
  %285 = vmatpush2.msra.mxu0 0.0
  %286 = vmatprep.subr.mxu0 0.0
  %287 = vmatpush2.msra.mxu0 0.0
  %288 = vmatprep.subr.mxu0 0.0
  %289 = vmatpush2.msra.mxu0 0.0
  %290 = vmatprep.subr.mxu0 0.0
  %291 = vmatpush2.msra.mxu0 0.0
  %292 = vmatprep.subr.mxu0 0.0
  %293 = vmatpush2.msra.mxu0 0.0
  %294 = vmatprep.subr.mxu0 0.0
  %295 = vmatpush2.msra.mxu0 0.0
  %296 = vmatprep.subr.mxu0 0.0
  %297 = vmatpush2.msra.mxu0 0.0
  %298 = vmatprep.subr.mxu0 0.0
  %299 = vmatpush2.msra.mxu0 0.0
  %300 = vmatprep.subr.mxu0 0.0
  %301 = vmatpush2.msra.mxu0 0.0
  %302 = vmatprep.subr.mxu0 0.0
  %303 = vmatpush2.msra.mxu0 0.0
  %304 = vmatprep.subr.mxu0 0.0
  %305 = vmatpush2.msra.mxu0 0.0
  %306 = vmatprep.subr.mxu0 0.0
  %307 = vmatpush2.msra.mxu0 0.0
  %308 = vmatprep.subr.mxu0 0.0
  %309 = vmatpush2.msra.mxu0 0.0
  %310 = vmatprep.subr.mxu0 0.0
  %311 = vmatpush2.msra.mxu0 0.0
  %312 = vmatprep.mubr.f32.mxu0 0.0
  %313 = vmatmul.mubr.f32.gmra.mxu0 %v246
  %v314 = vpop.f32.mrf.mxu0
  %v315 = vadd.f32 0.0, %v314
  %v316 = vpop.f32.mrf.mxu0
  %317 = vdwg.mxu0
  %v318 = vadd.f32 %v245, %v315
  %v319 = vxor.u32 %v318, 2147483648
  %v320 = vmul.f32 %v319, 1.442695
  %v321 = vpow.pop %v320
  %v322 = vadd.f32 %v321, 1.0
  %v323 = vrcp.pop %v322
  %v324 = vmul.f32 1.0, %v323
  %v325 = vtanh.pop %v318
  %v326 = vmul.f32 %v324, %v231
  %328 = vrot.lane.b32.xlu0 %v325, 32
  %v329 = vpop.permute.xlu0 %328
  %v331 = vmul.f32 %v324, %v329
  %333 = vrot.lane.b32.xlu0 %v331, 32
  %v334 = vpop.permute.xlu0 %333
  %v336 = vadd.f32 %v326, %v334
  %v337 = vtanh.pop %v336
  %339 = vrot.lane.b32.xlu0 %v337, 32
  %v340 = vpop.permute.xlu0 %339
  %v342 = vmul.f32 %v324, %v340
  %344 = vrot.lane.b32.xlu0 %v342, 64
  %v345 = vpop.permute.xlu0 %344
  %s347 = scalar_lea.vmem [#allocation4], 16
  %348 = vst.msk [vmem:[%s347] sm:$0xff] %vm31, %v345
  %s349 = scalar_lea.vmem %s0, 24
  %v350 = vld [vmem:[%s349] sm:$0xff]
  %v351 = vsel %vm31, %v345, 0
  %353 = vmatprep.subr.mxu0 0.0
  %354 = vmatpush1.msra.mxu0 0.0
  %355 = vmatprep.subr.mxu0 0.0
  %356 = vmatpush1.msra.mxu0 0.0
  %357 = vmatprep.subr.mxu0 0.0
  %358 = vmatpush1.msra.mxu0 0.0
  %359 = vmatprep.subr.mxu0 0.0
  %360 = vmatpush1.msra.mxu0 0.0
  %361 = vmatprep.subr.mxu0 0.0
  %362 = vmatpush1.msra.mxu0 0.0
  %363 = vmatprep.subr.mxu0 0.0
  %364 = vmatpush1.msra.mxu0 0.0
  %365 = vmatprep.subr.mxu0 0.0
  %366 = vmatpush1.msra.mxu0 0.0
  %367 = vmatprep.subr.mxu0 0.0
  %368 = vmatpush1.msra.mxu0 0.0
  %369 = vmatprep.subr.mxu0 0.0
  %370 = vmatpush1.msra.mxu0 0.0
  %371 = vmatprep.subr.mxu0 0.0
  %372 = vmatpush1.msra.mxu0 0.0
  %373 = vmatprep.subr.mxu0 0.0
  %374 = vmatpush1.msra.mxu0 0.0
  %375 = vmatprep.subr.mxu0 0.0
  %376 = vmatpush1.msra.mxu0 0.0
  %377 = vmatprep.subr.mxu0 0.0
  %378 = vmatpush1.msra.mxu0 %v27
  %379 = vmatprep.subr.mxu0 0.0
  %380 = vmatpush1.msra.mxu0 %v26
  %381 = vmatprep.subr.mxu0 0.0
  %382 = vmatpush1.msra.mxu0 %v25
  %383 = vmatprep.subr.mxu0 0.0
  %384 = vmatpush1.msra.mxu0 %v24
  %385 = vmatprep.subr.mxu0 0.0
  %386 = vmatpush2.msra.mxu0 0.0
  %387 = vmatprep.subr.mxu0 0.0
  %388 = vmatpush2.msra.mxu0 0.0
  %389 = vmatprep.subr.mxu0 0.0
  %390 = vmatpush2.msra.mxu0 0.0
  %391 = vmatprep.subr.mxu0 0.0
  %392 = vmatpush2.msra.mxu0 0.0
  %393 = vmatprep.subr.mxu0 0.0
  %394 = vmatpush2.msra.mxu0 0.0
  %395 = vmatprep.subr.mxu0 0.0
  %396 = vmatpush2.msra.mxu0 0.0
  %397 = vmatprep.subr.mxu0 0.0
  %398 = vmatpush2.msra.mxu0 0.0
  %399 = vmatprep.subr.mxu0 0.0
  %400 = vmatpush2.msra.mxu0 0.0
  %401 = vmatprep.subr.mxu0 0.0
  %402 = vmatpush2.msra.mxu0 0.0
  %403 = vmatprep.subr.mxu0 0.0
  %404 = vmatpush2.msra.mxu0 0.0
  %405 = vmatprep.subr.mxu0 0.0
  %406 = vmatpush2.msra.mxu0 0.0
  %407 = vmatprep.subr.mxu0 0.0
  %408 = vmatpush2.msra.mxu0 0.0
  %409 = vmatprep.subr.mxu0 0.0
  %410 = vmatpush2.msra.mxu0 0.0
  %411 = vmatprep.subr.mxu0 0.0
  %412 = vmatpush2.msra.mxu0 0.0
  %413 = vmatprep.subr.mxu0 0.0
  %414 = vmatpush2.msra.mxu0 0.0
  %415 = vmatprep.subr.mxu0 0.0
  %416 = vmatpush2.msra.mxu0 0.0
  %417 = vmatprep.mubr.f32.mxu0 0.0
  %418 = vmatmul.mubr.f32.gmra.mxu0 %v351
  %v419 = vpop.f32.mrf.mxu0
  %v420 = vadd.f32 0.0, %v419
  %v421 = vpop.f32.mrf.mxu0
  %422 = vdwg.mxu0
  %v423 = vadd.f32 %v350, %v420
  %v424 = vxor.u32 %v423, 2147483648
  %v425 = vmul.f32 %v424, 1.442695
  %v426 = vpow.pop %v425
  %v427 = vadd.f32 %v426, 1.0
  %v428 = vrcp.pop %v427
  %v429 = vmul.f32 1.0, %v428
  %v430 = vtanh.pop %v423
  %v431 = vmul.f32 %v429, %v336
  %433 = vrot.lane.b32.xlu0 %v430, 32
  %v434 = vpop.permute.xlu0 %433
  %v436 = vmul.f32 %v429, %v434
  %438 = vrot.lane.b32.xlu0 %v436, 32
  %v439 = vpop.permute.xlu0 %438
  %v441 = vadd.f32 %v431, %v439
  %v442 = vtanh.pop %v441
  %444 = vrot.lane.b32.xlu0 %v442, 32
  %v445 = vpop.permute.xlu0 %444
  %v447 = vmul.f32 %v429, %v445
  %449 = vrot.lane.b32.xlu0 %v447, 64
  %v450 = vpop.permute.xlu0 %449
  %s452 = scalar_lea.vmem [#allocation4], 24
  %453 = vst.msk [vmem:[%s452] sm:$0xff] %vm31, %v450
  %s454 = scalar_lea.vmem %s0, 32
  %v455 = vld [vmem:[%s454] sm:$0xff]
  %v456 = vsel %vm31, %v450, 0
  %458 = vmatprep.subr.mxu0 0.0
  %459 = vmatpush1.msra.mxu0 0.0
  %460 = vmatprep.subr.mxu0 0.0
  %461 = vmatpush1.msra.mxu0 0.0
  %462 = vmatprep.subr.mxu0 0.0
  %463 = vmatpush1.msra.mxu0 0.0
  %464 = vmatprep.subr.mxu0 0.0
  %465 = vmatpush1.msra.mxu0 0.0
  %466 = vmatprep.subr.mxu0 0.0
  %467 = vmatpush1.msra.mxu0 0.0
  %468 = vmatprep.subr.mxu0 0.0
  %469 = vmatpush1.msra.mxu0 0.0
  %470 = vmatprep.subr.mxu0 0.0
  %471 = vmatpush1.msra.mxu0 0.0
  %472 = vmatprep.subr.mxu0 0.0
  %473 = vmatpush1.msra.mxu0 0.0
  %474 = vmatprep.subr.mxu0 0.0
  %475 = vmatpush1.msra.mxu0 0.0
  %476 = vmatprep.subr.mxu0 0.0
  %477 = vmatpush1.msra.mxu0 0.0
  %478 = vmatprep.subr.mxu0 0.0
  %479 = vmatpush1.msra.mxu0 0.0
  %480 = vmatprep.subr.mxu0 0.0
  %481 = vmatpush1.msra.mxu0 0.0
  %482 = vmatprep.subr.mxu0 0.0
  %483 = vmatpush1.msra.mxu0 %v27
  %484 = vmatprep.subr.mxu0 0.0
  %485 = vmatpush1.msra.mxu0 %v26
  %486 = vmatprep.subr.mxu0 0.0
  %487 = vmatpush1.msra.mxu0 %v25
  %488 = vmatprep.subr.mxu0 0.0
  %489 = vmatpush1.msra.mxu0 %v24
  %490 = vmatprep.subr.mxu0 0.0
  %491 = vmatpush2.msra.mxu0 0.0
  %492 = vmatprep.subr.mxu0 0.0
  %493 = vmatpush2.msra.mxu0 0.0
  %494 = vmatprep.subr.mxu0 0.0
  %495 = vmatpush2.msra.mxu0 0.0
  %496 = vmatprep.subr.mxu0 0.0
  %497 = vmatpush2.msra.mxu0 0.0
  %498 = vmatprep.subr.mxu0 0.0
  %499 = vmatpush2.msra.mxu0 0.0
  %500 = vmatprep.subr.mxu0 0.0
  %501 = vmatpush2.msra.mxu0 0.0
  %502 = vmatprep.subr.mxu0 0.0
  %503 = vmatpush2.msra.mxu0 0.0
  %504 = vmatprep.subr.mxu0 0.0
  %505 = vmatpush2.msra.mxu0 0.0
  %506 = vmatprep.subr.mxu0 0.0
  %507 = vmatpush2.msra.mxu0 0.0
  %508 = vmatprep.subr.mxu0 0.0
  %509 = vmatpush2.msra.mxu0 0.0
  %510 = vmatprep.subr.mxu0 0.0
  %511 = vmatpush2.msra.mxu0 0.0
  %512 = vmatprep.subr.mxu0 0.0
  %513 = vmatpush2.msra.mxu0 0.0
  %514 = vmatprep.subr.mxu0 0.0
  %515 = vmatpush2.msra.mxu0 0.0
  %516 = vmatprep.subr.mxu0 0.0
  %517 = vmatpush2.msra.mxu0 0.0
  %518 = vmatprep.subr.mxu0 0.0
  %519 = vmatpush2.msra.mxu0 0.0
  %520 = vmatprep.subr.mxu0 0.0
  %521 = vmatpush2.msra.mxu0 0.0
  %522 = vmatprep.mubr.f32.mxu0 0.0
  %523 = vmatmul.mubr.f32.gmra.mxu0 %v456
  %v524 = vpop.f32.mrf.mxu0
  %v525 = vadd.f32 0.0, %v524
  %v526 = vpop.f32.mrf.mxu0
  %527 = vdwg.mxu0
  %v528 = vadd.f32 %v455, %v525
  %v529 = vxor.u32 %v528, 2147483648
  %v530 = vmul.f32 %v529, 1.442695
  %v531 = vpow.pop %v530
  %v532 = vadd.f32 %v531, 1.0
  %v533 = vrcp.pop %v532
  %v534 = vmul.f32 1.0, %v533
  %v535 = vtanh.pop %v528
  %v536 = vmul.f32 %v534, %v441
  %538 = vrot.lane.b32.xlu0 %v535, 32
  %v539 = vpop.permute.xlu0 %538
  %v541 = vmul.f32 %v534, %v539
  %543 = vrot.lane.b32.xlu0 %v541, 32
  %v544 = vpop.permute.xlu0 %543
  %v546 = vadd.f32 %v536, %v544
  %v547 = vtanh.pop %v546
  %549 = vrot.lane.b32.xlu0 %v547, 32
  %v550 = vpop.permute.xlu0 %549
  %v552 = vmul.f32 %v534, %v550
  %554 = vrot.lane.b32.xlu0 %v552, 64
  %v555 = vpop.permute.xlu0 %554
  %s557 = scalar_lea.vmem [#allocation4], 32
  %558 = vst.msk [vmem:[%s557] sm:$0xff] %vm31, %v555
  %s559 = scalar_lea.vmem %s0, 40
  %v560 = vld [vmem:[%s559] sm:$0xff]
  %v561 = vsel %vm31, %v555, 0
  %563 = vmatprep.subr.mxu0 0.0
  %564 = vmatpush1.msra.mxu0 0.0
  %565 = vmatprep.subr.mxu0 0.0
  %566 = vmatpush1.msra.mxu0 0.0
  %567 = vmatprep.subr.mxu0 0.0
  %568 = vmatpush1.msra.mxu0 0.0
  %569 = vmatprep.subr.mxu0 0.0
  %570 = vmatpush1.msra.mxu0 0.0
  %571 = vmatprep.subr.mxu0 0.0
  %572 = vmatpush1.msra.mxu0 0.0
  %573 = vmatprep.subr.mxu0 0.0
  %574 = vmatpush1.msra.mxu0 0.0
  %575 = vmatprep.subr.mxu0 0.0
  %576 = vmatpush1.msra.mxu0 0.0
  %577 = vmatprep.subr.mxu0 0.0
  %578 = vmatpush1.msra.mxu0 0.0
  %579 = vmatprep.subr.mxu0 0.0
  %580 = vmatpush1.msra.mxu0 0.0
  %581 = vmatprep.subr.mxu0 0.0
  %582 = vmatpush1.msra.mxu0 0.0
  %583 = vmatprep.subr.mxu0 0.0
  %584 = vmatpush1.msra.mxu0 0.0
  %585 = vmatprep.subr.mxu0 0.0
  %586 = vmatpush1.msra.mxu0 0.0
  %587 = vmatprep.subr.mxu0 0.0
  %588 = vmatpush1.msra.mxu0 %v27
  %589 = vmatprep.subr.mxu0 0.0
  %590 = vmatpush1.msra.mxu0 %v26
  %591 = vmatprep.subr.mxu0 0.0
  %592 = vmatpush1.msra.mxu0 %v25
  %593 = vmatprep.subr.mxu0 0.0
  %594 = vmatpush1.msra.mxu0 %v24
  %595 = vmatprep.subr.mxu0 0.0
  %596 = vmatpush2.msra.mxu0 0.0
  %597 = vmatprep.subr.mxu0 0.0
  %598 = vmatpush2.msra.mxu0 0.0
  %599 = vmatprep.subr.mxu0 0.0
  %600 = vmatpush2.msra.mxu0 0.0
  %601 = vmatprep.subr.mxu0 0.0
  %602 = vmatpush2.msra.mxu0 0.0
  %603 = vmatprep.subr.mxu0 0.0
  %604 = vmatpush2.msra.mxu0 0.0
  %605 = vmatprep.subr.mxu0 0.0
  %606 = vmatpush2.msra.mxu0 0.0
  %607 = vmatprep.subr.mxu0 0.0
  %608 = vmatpush2.msra.mxu0 0.0
  %609 = vmatprep.subr.mxu0 0.0
  %610 = vmatpush2.msra.mxu0 0.0
  %611 = vmatprep.subr.mxu0 0.0
  %612 = vmatpush2.msra.mxu0 0.0
  %613 = vmatprep.subr.mxu0 0.0
  %614 = vmatpush2.msra.mxu0 0.0
  %615 = vmatprep.subr.mxu0 0.0
  %616 = vmatpush2.msra.mxu0 0.0
  %617 = vmatprep.subr.mxu0 0.0
  %618 = vmatpush2.msra.mxu0 0.0
  %619 = vmatprep.subr.mxu0 0.0
  %620 = vmatpush2.msra.mxu0 0.0
  %621 = vmatprep.subr.mxu0 0.0
  %622 = vmatpush2.msra.mxu0 0.0
  %623 = vmatprep.subr.mxu0 0.0
  %624 = vmatpush2.msra.mxu0 0.0
  %625 = vmatprep.subr.mxu0 0.0
  %626 = vmatpush2.msra.mxu0 0.0
  %627 = vmatprep.mubr.f32.mxu0 0.0
  %628 = vmatmul.mubr.f32.gmra.mxu0 %v561
  %v629 = vpop.f32.mrf.mxu0
  %v630 = vadd.f32 0.0, %v629
  %v631 = vpop.f32.mrf.mxu0
  %632 = vdwg.mxu0
  %v633 = vadd.f32 %v560, %v630
  %v634 = vxor.u32 %v633, 2147483648
  %v635 = vmul.f32 %v634, 1.442695
  %v636 = vpow.pop %v635
  %v637 = vadd.f32 %v636, 1.0
  %v638 = vrcp.pop %v637
  %v639 = vmul.f32 1.0, %v638
  %v640 = vtanh.pop %v633
  %v641 = vmul.f32 %v639, %v546
  %643 = vrot.lane.b32.xlu0 %v640, 32
  %v644 = vpop.permute.xlu0 %643
  %v646 = vmul.f32 %v639, %v644
  %648 = vrot.lane.b32.xlu0 %v646, 32
  %v649 = vpop.permute.xlu0 %648
  %v651 = vadd.f32 %v641, %v649
  %v652 = vtanh.pop %v651
  %654 = vrot.lane.b32.xlu0 %v652, 32
  %v655 = vpop.permute.xlu0 %654
  %v657 = vmul.f32 %v639, %v655
  %659 = vrot.lane.b32.xlu0 %v657, 64
  %v660 = vpop.permute.xlu0 %659
  %s662 = scalar_lea.vmem [#allocation4], 40
  %663 = vst.msk [vmem:[%s662] sm:$0xff] %vm31, %v660
  %s664 = scalar_lea.vmem %s0, 48
  %v665 = vld [vmem:[%s664] sm:$0xff]
  %v666 = vsel %vm31, %v660, 0
  %668 = vmatprep.subr.mxu0 0.0
  %669 = vmatpush1.msra.mxu0 0.0
  %670 = vmatprep.subr.mxu0 0.0
  %671 = vmatpush1.msra.mxu0 0.0
  %672 = vmatprep.subr.mxu0 0.0
  %673 = vmatpush1.msra.mxu0 0.0
  %674 = vmatprep.subr.mxu0 0.0
  %675 = vmatpush1.msra.mxu0 0.0
  %676 = vmatprep.subr.mxu0 0.0
  %677 = vmatpush1.msra.mxu0 0.0
  %678 = vmatprep.subr.mxu0 0.0
  %679 = vmatpush1.msra.mxu0 0.0
  %680 = vmatprep.subr.mxu0 0.0
  %681 = vmatpush1.msra.mxu0 0.0
  %682 = vmatprep.subr.mxu0 0.0
  %683 = vmatpush1.msra.mxu0 0.0
  %684 = vmatprep.subr.mxu0 0.0
  %685 = vmatpush1.msra.mxu0 0.0
  %686 = vmatprep.subr.mxu0 0.0
  %687 = vmatpush1.msra.mxu0 0.0
  %688 = vmatprep.subr.mxu0 0.0
  %689 = vmatpush1.msra.mxu0 0.0
  %690 = vmatprep.subr.mxu0 0.0
  %691 = vmatpush1.msra.mxu0 0.0
  %692 = vmatprep.subr.mxu0 0.0
  %693 = vmatpush1.msra.mxu0 %v27
  %694 = vmatprep.subr.mxu0 0.0
  %695 = vmatpush1.msra.mxu0 %v26
  %696 = vmatprep.subr.mxu0 0.0
  %697 = vmatpush1.msra.mxu0 %v25
  %698 = vmatprep.subr.mxu0 0.0
  %699 = vmatpush1.msra.mxu0 %v24
  %700 = vmatprep.subr.mxu0 0.0
  %701 = vmatpush2.msra.mxu0 0.0
  %702 = vmatprep.subr.mxu0 0.0
  %703 = vmatpush2.msra.mxu0 0.0
  %704 = vmatprep.subr.mxu0 0.0
  %705 = vmatpush2.msra.mxu0 0.0
  %706 = vmatprep.subr.mxu0 0.0
  %707 = vmatpush2.msra.mxu0 0.0
  %708 = vmatprep.subr.mxu0 0.0
  %709 = vmatpush2.msra.mxu0 0.0
  %710 = vmatprep.subr.mxu0 0.0
  %711 = vmatpush2.msra.mxu0 0.0
  %712 = vmatprep.subr.mxu0 0.0
  %713 = vmatpush2.msra.mxu0 0.0
  %714 = vmatprep.subr.mxu0 0.0
  %715 = vmatpush2.msra.mxu0 0.0
  %716 = vmatprep.subr.mxu0 0.0
  %717 = vmatpush2.msra.mxu0 0.0
  %718 = vmatprep.subr.mxu0 0.0
  %719 = vmatpush2.msra.mxu0 0.0
  %720 = vmatprep.subr.mxu0 0.0
  %721 = vmatpush2.msra.mxu0 0.0
  %722 = vmatprep.subr.mxu0 0.0
  %723 = vmatpush2.msra.mxu0 0.0
  %724 = vmatprep.subr.mxu0 0.0
  %725 = vmatpush2.msra.mxu0 0.0
  %726 = vmatprep.subr.mxu0 0.0
  %727 = vmatpush2.msra.mxu0 0.0
  %728 = vmatprep.subr.mxu0 0.0
  %729 = vmatpush2.msra.mxu0 0.0
  %730 = vmatprep.subr.mxu0 0.0
  %731 = vmatpush2.msra.mxu0 0.0
  %732 = vmatprep.mubr.f32.mxu0 0.0
  %733 = vmatmul.mubr.f32.gmra.mxu0 %v666
  %v734 = vpop.f32.mrf.mxu0
  %v735 = vadd.f32 0.0, %v734
  %v736 = vpop.f32.mrf.mxu0
  %737 = vdwg.mxu0
  %v738 = vadd.f32 %v665, %v735
  %v739 = vxor.u32 %v738, 2147483648
  %v740 = vmul.f32 %v739, 1.442695
  %v741 = vpow.pop %v740
  %v742 = vadd.f32 %v741, 1.0
  %v743 = vrcp.pop %v742
  %v744 = vmul.f32 1.0, %v743
  %v745 = vtanh.pop %v738
  %v746 = vmul.f32 %v744, %v651
  %748 = vrot.lane.b32.xlu0 %v745, 32
  %v749 = vpop.permute.xlu0 %748
  %v751 = vmul.f32 %v744, %v749
  %753 = vrot.lane.b32.xlu0 %v751, 32
  %v754 = vpop.permute.xlu0 %753
  %v756 = vadd.f32 %v746, %v754
  %v757 = vtanh.pop %v756
  %759 = vrot.lane.b32.xlu0 %v757, 32
  %v760 = vpop.permute.xlu0 %759
  %v762 = vmul.f32 %v744, %v760
  %764 = vrot.lane.b32.xlu0 %v762, 64
  %v765 = vpop.permute.xlu0 %764
  %s767 = scalar_lea.vmem [#allocation4], 48
  %768 = vst.msk [vmem:[%s767] sm:$0xff] %vm31, %v765
  %s769 = scalar_lea.vmem %s0, 56
  %v770 = vld [vmem:[%s769] sm:$0xff]
  %v771 = vsel %vm31, %v765, 0
  %773 = vmatprep.subr.mxu0 0.0
  %774 = vmatpush1.msra.mxu0 0.0
  %775 = vmatprep.subr.mxu0 0.0
  %776 = vmatpush1.msra.mxu0 0.0
  %777 = vmatprep.subr.mxu0 0.0
  %778 = vmatpush1.msra.mxu0 0.0
  %779 = vmatprep.subr.mxu0 0.0
  %780 = vmatpush1.msra.mxu0 0.0
  %781 = vmatprep.subr.mxu0 0.0
  %782 = vmatpush1.msra.mxu0 0.0
  %783 = vmatprep.subr.mxu0 0.0
  %784 = vmatpush1.msra.mxu0 0.0
  %785 = vmatprep.subr.mxu0 0.0
  %786 = vmatpush1.msra.mxu0 0.0
  %787 = vmatprep.subr.mxu0 0.0
  %788 = vmatpush1.msra.mxu0 0.0
  %789 = vmatprep.subr.mxu0 0.0
  %790 = vmatpush1.msra.mxu0 0.0
  %791 = vmatprep.subr.mxu0 0.0
  %792 = vmatpush1.msra.mxu0 0.0
  %793 = vmatprep.subr.mxu0 0.0
  %794 = vmatpush1.msra.mxu0 0.0
  %795 = vmatprep.subr.mxu0 0.0
  %796 = vmatpush1.msra.mxu0 0.0
  %797 = vmatprep.subr.mxu0 0.0
  %798 = vmatpush1.msra.mxu0 %v27
  %799 = vmatprep.subr.mxu0 0.0
  %800 = vmatpush1.msra.mxu0 %v26
  %801 = vmatprep.subr.mxu0 0.0
  %802 = vmatpush1.msra.mxu0 %v25
  %803 = vmatprep.subr.mxu0 0.0
  %804 = vmatpush1.msra.mxu0 %v24
  %805 = vmatprep.subr.mxu0 0.0
  %806 = vmatpush2.msra.mxu0 0.0
  %807 = vmatprep.subr.mxu0 0.0
  %808 = vmatpush2.msra.mxu0 0.0
  %809 = vmatprep.subr.mxu0 0.0
  %810 = vmatpush2.msra.mxu0 0.0
  %811 = vmatprep.subr.mxu0 0.0
  %812 = vmatpush2.msra.mxu0 0.0
  %813 = vmatprep.subr.mxu0 0.0
  %814 = vmatpush2.msra.mxu0 0.0
  %815 = vmatprep.subr.mxu0 0.0
  %816 = vmatpush2.msra.mxu0 0.0
  %817 = vmatprep.subr.mxu0 0.0
  %818 = vmatpush2.msra.mxu0 0.0
  %819 = vmatprep.subr.mxu0 0.0
  %820 = vmatpush2.msra.mxu0 0.0
  %821 = vmatprep.subr.mxu0 0.0
  %822 = vmatpush2.msra.mxu0 0.0
  %823 = vmatprep.subr.mxu0 0.0
  %824 = vmatpush2.msra.mxu0 0.0
  %825 = vmatprep.subr.mxu0 0.0
  %826 = vmatpush2.msra.mxu0 0.0
  %827 = vmatprep.subr.mxu0 0.0
  %828 = vmatpush2.msra.mxu0 0.0
  %829 = vmatprep.subr.mxu0 0.0
  %830 = vmatpush2.msra.mxu0 0.0
  %831 = vmatprep.subr.mxu0 0.0
  %832 = vmatpush2.msra.mxu0 0.0
  %833 = vmatprep.subr.mxu0 0.0
  %834 = vmatpush2.msra.mxu0 0.0
  %835 = vmatprep.subr.mxu0 0.0
  %836 = vmatpush2.msra.mxu0 0.0
  %837 = vmatprep.mubr.f32.mxu0 0.0
  %838 = vmatmul.mubr.f32.gmra.mxu0 %v771
  %v839 = vpop.f32.mrf.mxu0
  %v840 = vadd.f32 0.0, %v839
  %v841 = vpop.f32.mrf.mxu0
  %842 = vdwg.mxu0
  %v843 = vadd.f32 %v770, %v840
  %v844 = vxor.u32 %v843, 2147483648
  %v845 = vmul.f32 %v844, 1.442695
  %v846 = vpow.pop %v845
  %v847 = vadd.f32 %v846, 1.0
  %v848 = vrcp.pop %v847
  %v849 = vmul.f32 1.0, %v848
  %v850 = vtanh.pop %v843
  %v851 = vmul.f32 %v849, %v756
  %853 = vrot.lane.b32.xlu0 %v850, 32
  %v854 = vpop.permute.xlu0 %853
  %v856 = vmul.f32 %v849, %v854
  %858 = vrot.lane.b32.xlu0 %v856, 32
  %v859 = vpop.permute.xlu0 %858
  %v861 = vadd.f32 %v851, %v859
  %v862 = vtanh.pop %v861
  %864 = vrot.lane.b32.xlu0 %v862, 32
  %v865 = vpop.permute.xlu0 %864
  %v867 = vmul.f32 %v849, %v865
  %869 = vrot.lane.b32.xlu0 %v867, 64
  %v870 = vpop.permute.xlu0 %869
  %s872 = scalar_lea.vmem [#allocation4], 56
  %873 = vst.msk [vmem:[%s872] sm:$0xff] %vm31, %v870
  %874 = vst.msk [vmem:[#allocation2] sm:$0xff] %vm31, %v870
  %876 = vrot.lane.b32.xlu0 %v861, 96
  %v877 = vpop.permute.xlu0 %876
  %879 = vst.msk [vmem:[#allocation3] sm:$0xff] %vm31, %v877
  %v880 = vld [vmem:[#allocation4] sm:$0xff]
  %v881 = vld [vmem:[#allocation4 + $0x8] sm:$0xff]
  %v882 = vld [vmem:[#allocation4 + $0x10] sm:$0xff]
  %v883 = vld [vmem:[#allocation4 + $0x18] sm:$0xff]
  %v884 = vld [vmem:[#allocation4 + $0x20] sm:$0xff]
  %v885 = vld [vmem:[#allocation4 + $0x28] sm:$0xff]
  %v886 = vld [vmem:[#allocation4 + $0x30] sm:$0xff]
  %v887 = vld [vmem:[#allocation4 + $0x38] sm:$0xff]
  %v888 = vld [vmem:[%s2] sm:$0xff]
  %v889 = vld [vmem:[%s2 + $0x8] sm:$0xff]
  %v890 = vld [vmem:[%s2 + $0x10] sm:$0xff]
  %v891 = vld [vmem:[%s2 + $0x18] sm:$0xff]
  %v892 = vld [vmem:[%s3] sm:$0x1]
  %v894 = vlaneseq
  %v895 = vshrl.u32 %v894, 7
  %v896 = vsub.s32 0, %v895
  %v897 = vrot.slane %v892, %v896
  %v900 = vsel %vm31, %v880, 0
  %v903 = vsel %vm31, %v881, 0
  %v906 = vsel %vm31, %v882, 0
  %v909 = vsel %vm31, %v883, 0
  %v912 = vsel %vm31, %v884, 0
  %v915 = vsel %vm31, %v885, 0
  %v918 = vsel %vm31, %v886, 0
  %v921 = vsel %vm31, %v887, 0
  %923 = vmatprep.subr.mxu0 0.0
  %924 = vmatpush1.msra.mxu0 0.0
  %925 = vmatprep.subr.mxu0 0.0
  %926 = vmatpush1.msra.mxu0 0.0
  %927 = vmatprep.subr.mxu0 0.0
  %928 = vmatpush1.msra.mxu0 0.0
  %929 = vmatprep.subr.mxu0 0.0
  %930 = vmatpush1.msra.mxu0 0.0
  %931 = vmatprep.subr.mxu0 0.0
  %932 = vmatpush1.msra.mxu0 0.0
  %933 = vmatprep.subr.mxu0 0.0
  %934 = vmatpush1.msra.mxu0 0.0
  %935 = vmatprep.subr.mxu0 0.0
  %936 = vmatpush1.msra.mxu0 0.0
  %937 = vmatprep.subr.mxu0 0.0
  %938 = vmatpush1.msra.mxu0 0.0
  %939 = vmatprep.subr.mxu0 0.0
  %940 = vmatpush1.msra.mxu0 0.0
  %941 = vmatprep.subr.mxu0 0.0
  %942 = vmatpush1.msra.mxu0 0.0
  %943 = vmatprep.subr.mxu0 0.0
  %944 = vmatpush1.msra.mxu0 0.0
  %945 = vmatprep.subr.mxu0 0.0
  %946 = vmatpush1.msra.mxu0 0.0
  %947 = vmatprep.subr.mxu0 0.0
  %948 = vmatpush1.msra.mxu0 %v891
  %949 = vmatprep.subr.mxu0 0.0
  %950 = vmatpush1.msra.mxu0 %v890
  %951 = vmatprep.subr.mxu0 0.0
  %952 = vmatpush1.msra.mxu0 %v889
  %953 = vmatprep.subr.mxu0 0.0
  %954 = vmatpush1.msra.mxu0 %v888
  %955 = vmatprep.subr.mxu0 0.0
  %956 = vmatpush2.msra.mxu0 0.0
  %957 = vmatprep.subr.mxu0 0.0
  %958 = vmatpush2.msra.mxu0 0.0
  %959 = vmatprep.subr.mxu0 0.0
  %960 = vmatpush2.msra.mxu0 0.0
  %961 = vmatprep.subr.mxu0 0.0
  %962 = vmatpush2.msra.mxu0 0.0
  %963 = vmatprep.subr.mxu0 0.0
  %964 = vmatpush2.msra.mxu0 0.0
  %965 = vmatprep.subr.mxu0 0.0
  %966 = vmatpush2.msra.mxu0 0.0
  %967 = vmatprep.subr.mxu0 0.0
  %968 = vmatpush2.msra.mxu0 0.0
  %969 = vmatprep.subr.mxu0 0.0
  %970 = vmatpush2.msra.mxu0 0.0
  %971 = vmatprep.subr.mxu0 0.0
  %972 = vmatpush2.msra.mxu0 0.0
  %973 = vmatprep.subr.mxu0 0.0
  %974 = vmatpush2.msra.mxu0 0.0
  %975 = vmatprep.subr.mxu0 0.0
  %976 = vmatpush2.msra.mxu0 0.0
  %977 = vmatprep.subr.mxu0 0.0
  %978 = vmatpush2.msra.mxu0 0.0
  %979 = vmatprep.subr.mxu0 0.0
  %980 = vmatpush2.msra.mxu0 0.0
  %981 = vmatprep.subr.mxu0 0.0
  %982 = vmatpush2.msra.mxu0 0.0
  %983 = vmatprep.subr.mxu0 0.0
  %984 = vmatpush2.msra.mxu0 0.0
  %985 = vmatprep.subr.mxu0 0.0
  %986 = vmatpush2.msra.mxu0 0.0
  %987 = vmatprep.mubr.f32.mxu0 0.0
  %988 = vmatmul.mubr.f32.gmra.mxu0 %v900
  %v989 = vpop.f32.mrf.mxu0
  %v990 = vadd.f32 %v897, %v989
  %v991 = vpop.f32.mrf.mxu0
  %992 = vmatprep.mubr.f32.mxu0 0.0
  %993 = vmatmul.mubr.f32.gmra.mxu0 %v903
  %v994 = vpop.f32.mrf.mxu0
  %v995 = vadd.f32 %v897, %v994
  %v996 = vpop.f32.mrf.mxu0
  %997 = vmatprep.mubr.f32.mxu0 0.0
  %998 = vmatmul.mubr.f32.gmra.mxu0 %v906
  %v999 = vpop.f32.mrf.mxu0
  %v1000 = vadd.f32 %v897, %v999
  %v1001 = vpop.f32.mrf.mxu0
  %1002 = vmatprep.mubr.f32.mxu0 0.0
  %1003 = vmatmul.mubr.f32.gmra.mxu0 %v909
  %v1004 = vpop.f32.mrf.mxu0
  %v1005 = vadd.f32 %v897, %v1004
  %v1006 = vpop.f32.mrf.mxu0
  %1007 = vmatprep.mubr.f32.mxu0 0.0
  %1008 = vmatmul.mubr.f32.gmra.mxu0 %v912
  %v1009 = vpop.f32.mrf.mxu0
  %v1010 = vadd.f32 %v897, %v1009
  %v1011 = vpop.f32.mrf.mxu0
  %1012 = vmatprep.mubr.f32.mxu0 0.0
  %1013 = vmatmul.mubr.f32.gmra.mxu0 %v915
  %v1014 = vpop.f32.mrf.mxu0
  %v1015 = vadd.f32 %v897, %v1014
  %v1016 = vpop.f32.mrf.mxu0
  %1017 = vmatprep.mubr.f32.mxu0 0.0
  %1018 = vmatmul.mubr.f32.gmra.mxu0 %v918
  %v1019 = vpop.f32.mrf.mxu0
  %v1020 = vadd.f32 %v897, %v1019
  %v1021 = vpop.f32.mrf.mxu0
  %1022 = vmatprep.mubr.f32.mxu0 0.0
  %1023 = vmatmul.mubr.f32.gmra.mxu0 %v921
  %v1024 = vpop.f32.mrf.mxu0
  %v1025 = vadd.f32 %v897, %v1024
  %v1026 = vpop.f32.mrf.mxu0
  %1027 = vdwg.mxu0
  %1028 = vst [vmem:[%s4] sm:$0xff] %v990
  %1029 = vst [vmem:[%s4 + $0x8] sm:$0xff] %v995
  %1030 = vst [vmem:[%s4 + $0x10] sm:$0xff] %v1000
  %1031 = vst [vmem:[%s4 + $0x18] sm:$0xff] %v1005
  %1032 = vst [vmem:[%s4 + $0x20] sm:$0xff] %v1010
  %1033 = vst [vmem:[%s4 + $0x28] sm:$0xff] %v1015
  %1034 = vst [vmem:[%s4 + $0x30] sm:$0xff] %v1020
  %1035 = vst [vmem:[%s4 + $0x38] sm:$0xff] %v1025
  // Predicated region
  $region22: #{forward.7} parent=0 // pred_check
    _
  $region23: #{forward.7} parent=0 // pred_check_branch
    %1037 = sbr.rel (0) target = $region25
  $region24: #{forward.7} parent=0 // pred_region
    _
  $region25: #{forward.7} parent=0 // pred_fallthru
    _
  // Predicated region
  $region26: #{forward.7} parent=0 // pred_check
    _
  $region27: #{forward.7} parent=0 // pred_check_branch
    %1039 = sbr.rel (0) target = $region29
  $region28: #{forward.7} parent=0 // pred_region
    _
  $region29: #{forward.7} parent=0 // pred_fallthru
    _

</llo_original>
